<compile_context>
chip_gen: v6e
topology: v6e:2x2x1
jax: 0.10.0
libtpu: 0.0.40
codegen_flags: <defaults>
</compile_context>

<pallas_src>
import math
from functools import partial

import jax
import jax.numpy as jnp
from jax.experimental import pallas as pl
from jax.experimental.pallas import tpu as pltpu


def _round_up(x, m):
    return (x + m - 1) // m * m


def _vmem_budget():
    """Scoped-VMEM budget: half of physical, capped at 64 MiB (portable v5e/v6e/v7x)."""
    try:
        phys = int(pltpu.get_tpu_info().vmem_capacity_bytes)
    except Exception:
        phys = 64 * 1024 * 1024
    return int(min(phys // 2, 64 * 1024 * 1024))


def _pick_row_tile(T, C, scoped_vmem):
    """Largest window-tile TW (multiple of 8) whose live f32 intermediates fit VMEM."""
    fixed = 64 * C * C            # double-buffered stacked q/k/v/o weights, 2 layers, f32
    fixed += 8 * (T + 8) * C      # double-buffered input sequence row (upper bound)
    avail = max(scoped_vmem - fixed, 2 * 1024 * 1024)
    cap = max(8, avail // (28 * 4 * C))   # ~28 live (TW, C) f32 tensors per grid step
    tw = min(1024, cap, _round_up(T, 8))
    return max(8, (tw // 8) * 8)


# ----------------------------- Pallas kernel -----------------------------

def _past_obs_fusion_kernel(x_ref, pos_ref, w1_ref, b1_ref, w2_ref, b2_ref,
                            g_ref, gt_ref, o_ref, *, S, H, TW):
    C = o_ref.shape[-1]
    d = C // H
    scale = 1.0 / math.sqrt(d)

    t0 = pl.multiple_of(pl.program_id(1) * TW, TW)
    pos = pos_ref[...]            # (S, C)
    g = g_ref[...]                # (C, H) head-group indicator
    gt = gt_ref[...]              # (H, C)

    # Window position i of the TW windows in this tile == sequence rows
    # [t0 + i, t0 + i + TW).  Positional embedding added here (before layer 1).
    xs = [x_ref[0, pl.ds(t0 + i, TW), :] + pos[i:i + 1, :] for i in range(S)]

    def mha(q_inputs, kv_inputs, w_ref_l, b_ref_l):
        bmat = b_ref_l[...]                                   # (4, C)
        wq, wk, wv, wo = w_ref_l[0], w_ref_l[1], w_ref_l[2], w_ref_l[3]
        bq, bk, bv, bo = [bmat[i:i + 1, :] for i in range(4)]
        ks = [jnp.dot(x, wk, preferred_element_type=jnp.float32) + bk for x in kv_inputs]
        vs = [jnp.dot(x, wv, preferred_element_type=jnp.float32) + bv for x in kv_inputs]
        outs = []
        for xq in q_inputs:
            q = jnp.dot(xq, wq, preferred_element_type=jnp.float32) + bq
            # per-head scores against each of the S key positions: (TW, H)
            s = [jnp.dot(q * k, g, preferred_element_type=jnp.float32) * scale for k in ks]
            m = s[0]
            for t in s[1:]:
                m = jnp.maximum(m, t)
            e = [jnp.exp(t - m) for t in s]
            denom = e[0]
            for t in e[1:]:
                denom = denom + t
            inv = pl.reciprocal(denom, approx=True)           # EUP: softmax denom
            ctx = jnp.zeros((TW, C), jnp.float32)
            for ej, v in zip(e, vs):
                # expand per-head prob to per-channel (block-diagonal) and weight V
                p_full = jnp.dot(ej * inv, gt, preferred_element_type=jnp.float32)
                ctx = ctx + p_full * v
            outs.append(jnp.dot(ctx, wo, preferred_element_type=jnp.float32) + bo)
        return outs

    ys = mha(xs, xs, w1_ref, b1_ref)                  # layer 1: all S window positions
    out = mha([ys[S - 1]], ys, w2_ref, b2_ref)[0]     # layer 2: only the last position
    o_ref[0] = out.astype(o_ref.dtype)


# ----------------------------- wrapper -----------------------------

def past_obs_fusion_forward(imgs, params, *, num_past_obs=3, num_heads=4):
    """imgs: (B, num_past_obs + T, C) -> (B, T, C), matching PastObsFusion.forward."""
    B, seq, C = imgs.shape
    S = num_past_obs + 1
    T = seq - num_past_obs
    assert T >= 1 and C % num_heads == 0
    d = C // num_heads

    scoped_vmem = _vmem_budget()
    TW = _pick_row_tile(T, C, scoped_vmem)
    T_pad = _round_up(T, TW)
    seq_pad = T_pad + num_past_obs
    x = imgs
    if seq_pad > seq:
        x = jnp.pad(x, ((0, 0), (0, seq_pad - seq), (0, 0)))

    head = jnp.arange(C, dtype=jnp.int32) // d
    g = (head[:, None] == jnp.arange(num_heads, dtype=jnp.int32)[None, :]).astype(jnp.float32)
    gt = g.T

    out = pl.pallas_call(
        partial(_past_obs_fusion_kernel, S=S, H=num_heads, TW=TW),
        out_shape=jax.ShapeDtypeStruct((B, T_pad, C), imgs.dtype),
        grid=(B, T_pad // TW),
        in_specs=[
            pl.BlockSpec((1, seq_pad, C), lambda b, j: (b, 0, 0)),
            pl.BlockSpec((S, C), lambda b, j: (0, 0)),
            pl.BlockSpec((4, C, C), lambda b, j: (0, 0, 0)),
            pl.BlockSpec((4, C), lambda b, j: (0, 0)),
            pl.BlockSpec((4, C, C), lambda b, j: (0, 0, 0)),
            pl.BlockSpec((4, C), lambda b, j: (0, 0)),
            pl.BlockSpec((C, num_heads), lambda b, j: (0, 0)),
            pl.BlockSpec((num_heads, C), lambda b, j: (0, 0)),
        ],
        out_specs=pl.BlockSpec((1, TW, C), lambda b, j: (b, j, 0)),
        compiler_params=pltpu.CompilerParams(
            dimension_semantics=("parallel", "parallel"),
            vmem_limit_bytes=scoped_vmem,
        ),
    )(x, params["pos"], params["w1"], params["b1"], params["w2"], params["b2"], g, gt)

    if T_pad > T:
        out = out[:, :T, :]
    return out


# ----------------------------- pure-JAX reference -----------------------------

def past_obs_fusion_reference(imgs, params, *, num_past_obs=3, num_heads=4):
    B, seq, C = imgs.shape
    S = num_past_obs + 1
    T = seq - num_past_obs
    d = C // num_heads
    hp = jax.lax.Precision.HIGHEST
    wins = jnp.stack([imgs[:, i:i + T, :] for i in range(S)], axis=2)     # (B, T, S, C)
    x = wins.reshape(B * T, S, C) + params["pos"][None, :, :]
    for w, b in ((params["w1"], params["b1"]), (params["w2"], params["b2"])):
        q = jnp.einsum("bsc,cd->bsd", x, w[0], precision=hp) + b[0]
        k = jnp.einsum("bsc,cd->bsd", x, w[1], precision=hp) + b[1]
        v = jnp.einsum("bsc,cd->bsd", x, w[2], precision=hp) + b[2]

        def split(t):
            return t.reshape(B * T, S, num_heads, d).transpose(0, 2, 1, 3)

        qh, kh, vh = split(q), split(k), split(v)
        att = jax.nn.softmax(
            jnp.einsum("bhqd,bhkd->bhqk", qh, kh, precision=hp) / math.sqrt(d), axis=-1)
        ctx = jnp.einsum("bhqk,bhkd->bhqd", att, vh, precision=hp)
        ctx = ctx.transpose(0, 2, 1, 3).reshape(B * T, S, C)
        x = jnp.einsum("bsc,cd->bsd", ctx, w[3], precision=hp) + b[3]
    return x[:, -1, :].reshape(B, T, C)


# ----------------------------- parameter init -----------------------------

def init_params(key, hidsize, *, num_heads=4, num_past_obs=3):
    S = num_past_obs + 1
    ks = jax.random.split(key, 11)

    def wmat(k):
        return jax.random.normal(k, (hidsize, hidsize), jnp.float32) / math.sqrt(hidsize)

    w1 = jnp.stack([wmat(ks[0]), wmat(ks[1]), wmat(ks[2]), wmat(ks[3])])   # q, k, v, out
    b1 = 0.02 * jax.random.normal(ks[4], (4, hidsize), jnp.float32)
    w2 = jnp.stack([wmat(ks[5]), wmat(ks[6]), wmat(ks[7]), wmat(ks[8])])
    b2 = 0.02 * jax.random.normal(ks[9], (4, hidsize), jnp.float32)
    pos = 0.02 * jax.random.normal(ks[10], (S, hidsize), jnp.float32)
    return dict(w1=w1, b1=b1, w2=w2, b2=b2, pos=pos)


# ----------------------------- demo -----------------------------

if __name__ == "__main__":
    key = jax.random.PRNGKey(0)
    pkey, xkey = jax.random.split(key)

    B, T = 2, 8
    hidsize, num_heads, num_past_obs = 32, 4, 3
    seq = T + num_past_obs

    params = init_params(pkey, hidsize, num_heads=num_heads, num_past_obs=num_past_obs)
    imgs = jax.random.normal(xkey, (B, seq, hidsize), jnp.float32)

    out = past_obs_fusion_forward(imgs, params,
                                  num_past_obs=num_past_obs, num_heads=num_heads)
    out = jax.block_until_ready(out)
    assert out.shape == (B, T, hidsize), out.shape
    assert bool(jnp.all(jnp.isfinite(out)))

    ref = past_obs_fusion_reference(imgs, params,
                                    num_past_obs=num_past_obs, num_heads=num_heads)
    assert bool(jnp.allclose(out, ref, rtol=1e-2, atol=1e-2)), \
        float(jnp.max(jnp.abs(out - ref)))
    print("KERNEL_OK")
</pallas_src>

<mosaic_0001>
module attributes {stable_mosaic.version = 11 : i64} {
  func.func @_past_obs_fusion_kernel(%arg0: i32, %arg1: i32, %arg2: memref<1x11x32xf32, #tpu.memory_space<vmem>>, %arg3: memref<4x32xf32, #tpu.memory_space<vmem>>, %arg4: memref<4x32x32xf32, #tpu.memory_space<vmem>>, %arg5: memref<4x32xf32, #tpu.memory_space<vmem>>, %arg6: memref<4x32x32xf32, #tpu.memory_space<vmem>>, %arg7: memref<4x32xf32, #tpu.memory_space<vmem>>, %arg8: memref<32x4xf32, #tpu.memory_space<vmem>>, %arg9: memref<4x32xf32, #tpu.memory_space<vmem>>, %arg10: memref<1x8x32xf32, #tpu.memory_space<vmem>>) attributes {dimension_semantics = [#tpu.dimension_semantics<parallel>, #tpu.dimension_semantics<parallel>], iteration_bounds = array<i64: 2, 1>, scalar_prefetch = 0 : i64, scratch_operands = 0 : i64, tpu.core_type = #tpu.core_type<tc>, window_params = [{transform_indices = @transform_0, window_bounds = array<i64: 1, 11, 32>}, {pipeline_mode = #tpu.pipeline_mode<synchronous>, transform_indices = @transform_1, window_bounds = array<i64: 4, 32>}, {pipeline_mode = #tpu.pipeline_mode<synchronous>, transform_indices = @transform_2, window_bounds = array<i64: 4, 32, 32>}, {pipeline_mode = #tpu.pipeline_mode<synchronous>, transform_indices = @transform_3, window_bounds = array<i64: 4, 32>}, {pipeline_mode = #tpu.pipeline_mode<synchronous>, transform_indices = @transform_4, window_bounds = array<i64: 4, 32, 32>}, {pipeline_mode = #tpu.pipeline_mode<synchronous>, transform_indices = @transform_5, window_bounds = array<i64: 4, 32>}, {pipeline_mode = #tpu.pipeline_mode<synchronous>, transform_indices = @transform_6, window_bounds = array<i64: 32, 4>}, {pipeline_mode = #tpu.pipeline_mode<synchronous>, transform_indices = @transform_7, window_bounds = array<i64: 4, 32>}, {transform_indices = @transform_8, window_bounds = array<i64: 1, 8, 32>}]} {
    %c8_i32 = arith.constant 8 : i32
    %0 = arith.muli %arg1, %c8_i32 : i32
    %1 = tpu.assume_multiple %0, 8 : i32
    %c0 = arith.constant 0 : index
    %c0_0 = arith.constant 0 : index
    %2 = vector.load %arg3[%c0, %c0_0] : memref<4x32xf32, #tpu.memory_space<vmem>>, vector<4x32xf32>
    %c0_1 = arith.constant 0 : index
    %c0_2 = arith.constant 0 : index
    %3 = vector.load %arg8[%c0_1, %c0_2] : memref<32x4xf32, #tpu.memory_space<vmem>>, vector<32x4xf32>
    %c0_3 = arith.constant 0 : index
    %c0_4 = arith.constant 0 : index
    %4 = vector.load %arg9[%c0_3, %c0_4] : memref<4x32xf32, #tpu.memory_space<vmem>>, vector<4x32xf32>
    %c0_i32 = arith.constant 0 : i32
    %5 = arith.addi %1, %c0_i32 : i32
    %c0_5 = arith.constant 0 : index
    %6 = arith.index_cast %5 : i32 to index
    %c0_6 = arith.constant 0 : index
    %7 = vector.load %arg2[%c0_5, %6, %c0_6] : memref<1x11x32xf32, #tpu.memory_space<vmem>>, vector<1x8x32xf32>
    %8 = vector.shape_cast %7 : vector<1x8x32xf32> to vector<8x32xf32>
    %9 = vector.extract_strided_slice %2 {offsets = [0, 0], sizes = [1, 32], strides = [1, 1]} : vector<4x32xf32> to vector<1x32xf32>
    %10 = vector.broadcast %9 : vector<1x32xf32> to vector<8x32xf32>
    %11 = arith.addf %8, %10 : vector<8x32xf32>
    %c1_i32 = arith.constant 1 : i32
    %12 = arith.addi %1, %c1_i32 : i32
    %c0_7 = arith.constant 0 : index
    %13 = arith.index_cast %12 : i32 to index
    %c0_8 = arith.constant 0 : index
    %14 = vector.load %arg2[%c0_7, %13, %c0_8] : memref<1x11x32xf32, #tpu.memory_space<vmem>>, vector<1x8x32xf32>
    %15 = vector.shape_cast %14 : vector<1x8x32xf32> to vector<8x32xf32>
    %16 = vector.extract_strided_slice %2 {offsets = [1, 0], sizes = [1, 32], strides = [1, 1]} : vector<4x32xf32> to vector<1x32xf32>
    %17 = vector.broadcast %16 : vector<1x32xf32> to vector<8x32xf32>
    %18 = arith.addf %15, %17 : vector<8x32xf32>
    %c2_i32 = arith.constant 2 : i32
    %19 = arith.addi %1, %c2_i32 : i32
    %c0_9 = arith.constant 0 : index
    %20 = arith.index_cast %19 : i32 to index
    %c0_10 = arith.constant 0 : index
    %21 = vector.load %arg2[%c0_9, %20, %c0_10] : memref<1x11x32xf32, #tpu.memory_space<vmem>>, vector<1x8x32xf32>
    %22 = vector.shape_cast %21 : vector<1x8x32xf32> to vector<8x32xf32>
    %23 = vector.extract_strided_slice %2 {offsets = [2, 0], sizes = [1, 32], strides = [1, 1]} : vector<4x32xf32> to vector<1x32xf32>
    %24 = vector.broadcast %23 : vector<1x32xf32> to vector<8x32xf32>
    %25 = arith.addf %22, %24 : vector<8x32xf32>
    %c3_i32 = arith.constant 3 : i32
    %26 = arith.addi %1, %c3_i32 : i32
    %c0_11 = arith.constant 0 : index
    %27 = arith.index_cast %26 : i32 to index
    %c0_12 = arith.constant 0 : index
    %28 = vector.load %arg2[%c0_11, %27, %c0_12] : memref<1x11x32xf32, #tpu.memory_space<vmem>>, vector<1x8x32xf32>
    %29 = vector.shape_cast %28 : vector<1x8x32xf32> to vector<8x32xf32>
    %30 = vector.extract_strided_slice %2 {offsets = [3, 0], sizes = [1, 32], strides = [1, 1]} : vector<4x32xf32> to vector<1x32xf32>
    %31 = vector.broadcast %30 : vector<1x32xf32> to vector<8x32xf32>
    %32 = arith.addf %29, %31 : vector<8x32xf32>
    %c0_13 = arith.constant 0 : index
    %c0_14 = arith.constant 0 : index
    %33 = vector.load %arg5[%c0_13, %c0_14] : memref<4x32xf32, #tpu.memory_space<vmem>>, vector<4x32xf32>
    %c0_15 = arith.constant 0 : index
    %c0_16 = arith.constant 0 : index
    %c0_17 = arith.constant 0 : index
    %34 = vector.load %arg4[%c0_15, %c0_16, %c0_17] : memref<4x32x32xf32, #tpu.memory_space<vmem>>, vector<1x32x32xf32>
    %35 = vector.shape_cast %34 : vector<1x32x32xf32> to vector<32x32xf32>
    %c1 = arith.constant 1 : index
    %c0_18 = arith.constant 0 : index
    %c0_19 = arith.constant 0 : index
    %36 = vector.load %arg4[%c1, %c0_18, %c0_19] : memref<4x32x32xf32, #tpu.memory_space<vmem>>, vector<1x32x32xf32>
    %37 = vector.shape_cast %36 : vector<1x32x32xf32> to vector<32x32xf32>
    %c2 = arith.constant 2 : index
    %c0_20 = arith.constant 0 : index
    %c0_21 = arith.constant 0 : index
    %38 = vector.load %arg4[%c2, %c0_20, %c0_21] : memref<4x32x32xf32, #tpu.memory_space<vmem>>, vector<1x32x32xf32>
    %39 = vector.shape_cast %38 : vector<1x32x32xf32> to vector<32x32xf32>
    %c3 = arith.constant 3 : index
    %c0_22 = arith.constant 0 : index
    %c0_23 = arith.constant 0 : index
    %40 = vector.load %arg4[%c3, %c0_22, %c0_23] : memref<4x32x32xf32, #tpu.memory_space<vmem>>, vector<1x32x32xf32>
    %41 = vector.shape_cast %40 : vector<1x32x32xf32> to vector<32x32xf32>
    %42 = vector.extract_strided_slice %33 {offsets = [0, 0], sizes = [1, 32], strides = [1, 1]} : vector<4x32xf32> to vector<1x32xf32>
    %43 = vector.extract_strided_slice %33 {offsets = [1, 0], sizes = [1, 32], strides = [1, 1]} : vector<4x32xf32> to vector<1x32xf32>
    %44 = vector.extract_strided_slice %33 {offsets = [2, 0], sizes = [1, 32], strides = [1, 1]} : vector<4x32xf32> to vector<1x32xf32>
    %45 = vector.extract_strided_slice %33 {offsets = [3, 0], sizes = [1, 32], strides = [1, 1]} : vector<4x32xf32> to vector<1x32xf32>
    %cst = arith.constant dense<0.000000e+00> : vector<8x32xf32>
    %46 = tpu.matmul %11, %37, %cst {dimension_numbers = #tpu.dot_dimension_numbers<[1], [0], [0], [1], [0, 0, 1, 1], [], []>} : vector<8x32xf32>, vector<32x32xf32>, vector<8x32xf32> -> vector<8x32xf32>
    %47 = vector.broadcast %43 : vector<1x32xf32> to vector<8x32xf32>
    %48 = arith.addf %46, %47 : vector<8x32xf32>
    %cst_24 = arith.constant dense<0.000000e+00> : vector<8x32xf32>
    %49 = tpu.matmul %18, %37, %cst_24 {dimension_numbers = #tpu.dot_dimension_numbers<[1], [0], [0], [1], [0, 0, 1, 1], [], []>} : vector<8x32xf32>, vector<32x32xf32>, vector<8x32xf32> -> vector<8x32xf32>
    %50 = vector.broadcast %43 : vector<1x32xf32> to vector<8x32xf32>
    %51 = arith.addf %49, %50 : vector<8x32xf32>
    %cst_25 = arith.constant dense<0.000000e+00> : vector<8x32xf32>
    %52 = tpu.matmul %25, %37, %cst_25 {dimension_numbers = #tpu.dot_dimension_numbers<[1], [0], [0], [1], [0, 0, 1, 1], [], []>} : vector<8x32xf32>, vector<32x32xf32>, vector<8x32xf32> -> vector<8x32xf32>
    %53 = vector.broadcast %43 : vector<1x32xf32> to vector<8x32xf32>
    %54 = arith.addf %52, %53 : vector<8x32xf32>
    %cst_26 = arith.constant dense<0.000000e+00> : vector<8x32xf32>
    %55 = tpu.matmul %32, %37, %cst_26 {dimension_numbers = #tpu.dot_dimension_numbers<[1], [0], [0], [1], [0, 0, 1, 1], [], []>} : vector<8x32xf32>, vector<32x32xf32>, vector<8x32xf32> -> vector<8x32xf32>
    %56 = vector.broadcast %43 : vector<1x32xf32> to vector<8x32xf32>
    %57 = arith.addf %55, %56 : vector<8x32xf32>
    %cst_27 = arith.constant dense<0.000000e+00> : vector<8x32xf32>
    %58 = tpu.matmul %11, %39, %cst_27 {dimension_numbers = #tpu.dot_dimension_numbers<[1], [0], [0], [1], [0, 0, 1, 1], [], []>} : vector<8x32xf32>, vector<32x32xf32>, vector<8x32xf32> -> vector<8x32xf32>
    %59 = vector.broadcast %44 : vector<1x32xf32> to vector<8x32xf32>
    %60 = arith.addf %58, %59 : vector<8x32xf32>
    %cst_28 = arith.constant dense<0.000000e+00> : vector<8x32xf32>
    %61 = tpu.matmul %18, %39, %cst_28 {dimension_numbers = #tpu.dot_dimension_numbers<[1], [0], [0], [1], [0, 0, 1, 1], [], []>} : vector<8x32xf32>, vector<32x32xf32>, vector<8x32xf32> -> vector<8x32xf32>
    %62 = vector.broadcast %44 : vector<1x32xf32> to vector<8x32xf32>
    %63 = arith.addf %61, %62 : vector<8x32xf32>
    %cst_29 = arith.constant dense<0.000000e+00> : vector<8x32xf32>
    %64 = tpu.matmul %25, %39, %cst_29 {dimension_numbers = #tpu.dot_dimension_numbers<[1], [0], [0], [1], [0, 0, 1, 1], [], []>} : vector<8x32xf32>, vector<32x32xf32>, vector<8x32xf32> -> vector<8x32xf32>
    %65 = vector.broadcast %44 : vector<1x32xf32> to vector<8x32xf32>
    %66 = arith.addf %64, %65 : vector<8x32xf32>
    %cst_30 = arith.constant dense<0.000000e+00> : vector<8x32xf32>
    %67 = tpu.matmul %32, %39, %cst_30 {dimension_numbers = #tpu.dot_dimension_numbers<[1], [0], [0], [1], [0, 0, 1, 1], [], []>} : vector<8x32xf32>, vector<32x32xf32>, vector<8x32xf32> -> vector<8x32xf32>
    %68 = vector.broadcast %44 : vector<1x32xf32> to vector<8x32xf32>
    %69 = arith.addf %67, %68 : vector<8x32xf32>
    %cst_31 = arith.constant dense<0.000000e+00> : vector<8x32xf32>
    %70 = tpu.matmul %11, %35, %cst_31 {dimension_numbers = #tpu.dot_dimension_numbers<[1], [0], [0], [1], [0, 0, 1, 1], [], []>} : vector<8x32xf32>, vector<32x32xf32>, vector<8x32xf32> -> vector<8x32xf32>
    %71 = vector.broadcast %42 : vector<1x32xf32> to vector<8x32xf32>
    %72 = arith.addf %70, %71 : vector<8x32xf32>
    %73 = arith.mulf %72, %48 : vector<8x32xf32>
    %cst_32 = arith.constant dense<0.000000e+00> : vector<8x4xf32>
    %74 = tpu.matmul %73, %3, %cst_32 {dimension_numbers = #tpu.dot_dimension_numbers<[1], [0], [0], [1], [0, 0, 1, 1], [], []>} : vector<8x32xf32>, vector<32x4xf32>, vector<8x4xf32> -> vector<8x4xf32>
    %cst_33 = arith.constant 0.353553385 : f32
    %75 = vector.broadcast %cst_33 : f32 to vector<8x4xf32>
    %76 = arith.mulf %74, %75 : vector<8x4xf32>
    %77 = arith.mulf %72, %51 : vector<8x32xf32>
    %cst_34 = arith.constant dense<0.000000e+00> : vector<8x4xf32>
    %78 = tpu.matmul %77, %3, %cst_34 {dimension_numbers = #tpu.dot_dimension_numbers<[1], [0], [0], [1], [0, 0, 1, 1], [], []>} : vector<8x32xf32>, vector<32x4xf32>, vector<8x4xf32> -> vector<8x4xf32>
    %cst_35 = arith.constant 0.353553385 : f32
    %79 = vector.broadcast %cst_35 : f32 to vector<8x4xf32>
    %80 = arith.mulf %78, %79 : vector<8x4xf32>
    %81 = arith.mulf %72, %54 : vector<8x32xf32>
    %cst_36 = arith.constant dense<0.000000e+00> : vector<8x4xf32>
    %82 = tpu.matmul %81, %3, %cst_36 {dimension_numbers = #tpu.dot_dimension_numbers<[1], [0], [0], [1], [0, 0, 1, 1], [], []>} : vector<8x32xf32>, vector<32x4xf32>, vector<8x4xf32> -> vector<8x4xf32>
    %cst_37 = arith.constant 0.353553385 : f32
    %83 = vector.broadcast %cst_37 : f32 to vector<8x4xf32>
    %84 = arith.mulf %82, %83 : vector<8x4xf32>
    %85 = arith.mulf %72, %57 : vector<8x32xf32>
    %cst_38 = arith.constant dense<0.000000e+00> : vector<8x4xf32>
    %86 = tpu.matmul %85, %3, %cst_38 {dimension_numbers = #tpu.dot_dimension_numbers<[1], [0], [0], [1], [0, 0, 1, 1], [], []>} : vector<8x32xf32>, vector<32x4xf32>, vector<8x4xf32> -> vector<8x4xf32>
    %cst_39 = arith.constant 0.353553385 : f32
    %87 = vector.broadcast %cst_39 : f32 to vector<8x4xf32>
    %88 = arith.mulf %86, %87 : vector<8x4xf32>
    %89 = arith.maximumf %76, %80 : vector<8x4xf32>
    %90 = arith.maximumf %89, %84 : vector<8x4xf32>
    %91 = arith.maximumf %90, %88 : vector<8x4xf32>
    %92 = arith.subf %76, %91 : vector<8x4xf32>
    %93 = math.exp %92 : vector<8x4xf32>
    %94 = arith.subf %80, %91 : vector<8x4xf32>
    %95 = math.exp %94 : vector<8x4xf32>
    %96 = arith.subf %84, %91 : vector<8x4xf32>
    %97 = math.exp %96 : vector<8x4xf32>
    %98 = arith.subf %88, %91 : vector<8x4xf32>
    %99 = math.exp %98 : vector<8x4xf32>
    %100 = arith.addf %93, %95 : vector<8x4xf32>
    %101 = arith.addf %100, %97 : vector<8x4xf32>
    %102 = arith.addf %101, %99 : vector<8x4xf32>
    %103 = tpu.reciprocal %102 {approx = true} : vector<8x4xf32> -> vector<8x4xf32>
    %cst_40 = arith.constant 0.000000e+00 : f32
    %104 = vector.broadcast %cst_40 : f32 to vector<8x32xf32>
    %105 = arith.mulf %93, %103 : vector<8x4xf32>
    %cst_41 = arith.constant dense<0.000000e+00> : vector<8x32xf32>
    %106 = tpu.matmul %105, %4, %cst_41 {dimension_numbers = #tpu.dot_dimension_numbers<[1], [0], [0], [1], [0, 0, 1, 1], [], []>} : vector<8x4xf32>, vector<4x32xf32>, vector<8x32xf32> -> vector<8x32xf32>
    %107 = arith.mulf %106, %60 : vector<8x32xf32>
    %108 = arith.addf %104, %107 : vector<8x32xf32>
    %109 = arith.mulf %95, %103 : vector<8x4xf32>
    %cst_42 = arith.constant dense<0.000000e+00> : vector<8x32xf32>
    %110 = tpu.matmul %109, %4, %cst_42 {dimension_numbers = #tpu.dot_dimension_numbers<[1], [0], [0], [1], [0, 0, 1, 1], [], []>} : vector<8x4xf32>, vector<4x32xf32>, vector<8x32xf32> -> vector<8x32xf32>
    %111 = arith.mulf %110, %63 : vector<8x32xf32>
    %112 = arith.addf %108, %111 : vector<8x32xf32>
    %113 = arith.mulf %97, %103 : vector<8x4xf32>
    %cst_43 = arith.constant dense<0.000000e+00> : vector<8x32xf32>
    %114 = tpu.matmul %113, %4, %cst_43 {dimension_numbers = #tpu.dot_dimension_numbers<[1], [0], [0], [1], [0, 0, 1, 1], [], []>} : vector<8x4xf32>, vector<4x32xf32>, vector<8x32xf32> -> vector<8x32xf32>
    %115 = arith.mulf %114, %66 : vector<8x32xf32>
    %116 = arith.addf %112, %115 : vector<8x32xf32>
    %117 = arith.mulf %99, %103 : vector<8x4xf32>
    %cst_44 = arith.constant dense<0.000000e+00> : vector<8x32xf32>
    %118 = tpu.matmul %117, %4, %cst_44 {dimension_numbers = #tpu.dot_dimension_numbers<[1], [0], [0], [1], [0, 0, 1, 1], [], []>} : vector<8x4xf32>, vector<4x32xf32>, vector<8x32xf32> -> vector<8x32xf32>
    %119 = arith.mulf %118, %69 : vector<8x32xf32>
    %120 = arith.addf %116, %119 : vector<8x32xf32>
    %cst_45 = arith.constant dense<0.000000e+00> : vector<8x32xf32>
    %121 = tpu.matmul %120, %41, %cst_45 {dimension_numbers = #tpu.dot_dimension_numbers<[1], [0], [0], [1], [0, 0, 1, 1], [], []>} : vector<8x32xf32>, vector<32x32xf32>, vector<8x32xf32> -> vector<8x32xf32>
    %122 = vector.broadcast %45 : vector<1x32xf32> to vector<8x32xf32>
    %123 = arith.addf %121, %122 : vector<8x32xf32>
    %cst_46 = arith.constant dense<0.000000e+00> : vector<8x32xf32>
    %124 = tpu.matmul %18, %35, %cst_46 {dimension_numbers = #tpu.dot_dimension_numbers<[1], [0], [0], [1], [0, 0, 1, 1], [], []>} : vector<8x32xf32>, vector<32x32xf32>, vector<8x32xf32> -> vector<8x32xf32>
    %125 = vector.broadcast %42 : vector<1x32xf32> to vector<8x32xf32>
    %126 = arith.addf %124, %125 : vector<8x32xf32>
    %127 = arith.mulf %126, %48 : vector<8x32xf32>
    %cst_47 = arith.constant dense<0.000000e+00> : vector<8x4xf32>
    %128 = tpu.matmul %127, %3, %cst_47 {dimension_numbers = #tpu.dot_dimension_numbers<[1], [0], [0], [1], [0, 0, 1, 1], [], []>} : vector<8x32xf32>, vector<32x4xf32>, vector<8x4xf32> -> vector<8x4xf32>
    %cst_48 = arith.constant 0.353553385 : f32
    %129 = vector.broadcast %cst_48 : f32 to vector<8x4xf32>
    %130 = arith.mulf %128, %129 : vector<8x4xf32>
    %131 = arith.mulf %126, %51 : vector<8x32xf32>
    %cst_49 = arith.constant dense<0.000000e+00> : vector<8x4xf32>
    %132 = tpu.matmul %131, %3, %cst_49 {dimension_numbers = #tpu.dot_dimension_numbers<[1], [0], [0], [1], [0, 0, 1, 1], [], []>} : vector<8x32xf32>, vector<32x4xf32>, vector<8x4xf32> -> vector<8x4xf32>
    %cst_50 = arith.constant 0.353553385 : f32
    %133 = vector.broadcast %cst_50 : f32 to vector<8x4xf32>
    %134 = arith.mulf %132, %133 : vector<8x4xf32>
    %135 = arith.mulf %126, %54 : vector<8x32xf32>
    %cst_51 = arith.constant dense<0.000000e+00> : vector<8x4xf32>
    %136 = tpu.matmul %135, %3, %cst_51 {dimension_numbers = #tpu.dot_dimension_numbers<[1], [0], [0], [1], [0, 0, 1, 1], [], []>} : vector<8x32xf32>, vector<32x4xf32>, vector<8x4xf32> -> vector<8x4xf32>
    %cst_52 = arith.constant 0.353553385 : f32
    %137 = vector.broadcast %cst_52 : f32 to vector<8x4xf32>
    %138 = arith.mulf %136, %137 : vector<8x4xf32>
    %139 = arith.mulf %126, %57 : vector<8x32xf32>
    %cst_53 = arith.constant dense<0.000000e+00> : vector<8x4xf32>
    %140 = tpu.matmul %139, %3, %cst_53 {dimension_numbers = #tpu.dot_dimension_numbers<[1], [0], [0], [1], [0, 0, 1, 1], [], []>} : vector<8x32xf32>, vector<32x4xf32>, vector<8x4xf32> -> vector<8x4xf32>
    %cst_54 = arith.constant 0.353553385 : f32
    %141 = vector.broadcast %cst_54 : f32 to vector<8x4xf32>
    %142 = arith.mulf %140, %141 : vector<8x4xf32>
    %143 = arith.maximumf %130, %134 : vector<8x4xf32>
    %144 = arith.maximumf %143, %138 : vector<8x4xf32>
    %145 = arith.maximumf %144, %142 : vector<8x4xf32>
    %146 = arith.subf %130, %145 : vector<8x4xf32>
    %147 = math.exp %146 : vector<8x4xf32>
    %148 = arith.subf %134, %145 : vector<8x4xf32>
    %149 = math.exp %148 : vector<8x4xf32>
    %150 = arith.subf %138, %145 : vector<8x4xf32>
    %151 = math.exp %150 : vector<8x4xf32>
    %152 = arith.subf %142, %145 : vector<8x4xf32>
    %153 = math.exp %152 : vector<8x4xf32>
    %154 = arith.addf %147, %149 : vector<8x4xf32>
    %155 = arith.addf %154, %151 : vector<8x4xf32>
    %156 = arith.addf %155, %153 : vector<8x4xf32>
    %157 = tpu.reciprocal %156 {approx = true} : vector<8x4xf32> -> vector<8x4xf32>
    %cst_55 = arith.constant 0.000000e+00 : f32
    %158 = vector.broadcast %cst_55 : f32 to vector<8x32xf32>
    %159 = arith.mulf %147, %157 : vector<8x4xf32>
    %cst_56 = arith.constant dense<0.000000e+00> : vector<8x32xf32>
    %160 = tpu.matmul %159, %4, %cst_56 {dimension_numbers = #tpu.dot_dimension_numbers<[1], [0], [0], [1], [0, 0, 1, 1], [], []>} : vector<8x4xf32>, vector<4x32xf32>, vector<8x32xf32> -> vector<8x32xf32>
    %161 = arith.mulf %160, %60 : vector<8x32xf32>
    %162 = arith.addf %158, %161 : vector<8x32xf32>
    %163 = arith.mulf %149, %157 : vector<8x4xf32>
    %cst_57 = arith.constant dense<0.000000e+00> : vector<8x32xf32>
    %164 = tpu.matmul %163, %4, %cst_57 {dimension_numbers = #tpu.dot_dimension_numbers<[1], [0], [0], [1], [0, 0, 1, 1], [], []>} : vector<8x4xf32>, vector<4x32xf32>, vector<8x32xf32> -> vector<8x32xf32>
    %165 = arith.mulf %164, %63 : vector<8x32xf32>
    %166 = arith.addf %162, %165 : vector<8x32xf32>
    %167 = arith.mulf %151, %157 : vector<8x4xf32>
    %cst_58 = arith.constant dense<0.000000e+00> : vector<8x32xf32>
    %168 = tpu.matmul %167, %4, %cst_58 {dimension_numbers = #tpu.dot_dimension_numbers<[1], [0], [0], [1], [0, 0, 1, 1], [], []>} : vector<8x4xf32>, vector<4x32xf32>, vector<8x32xf32> -> vector<8x32xf32>
    %169 = arith.mulf %168, %66 : vector<8x32xf32>
    %170 = arith.addf %166, %169 : vector<8x32xf32>
    %171 = arith.mulf %153, %157 : vector<8x4xf32>
    %cst_59 = arith.constant dense<0.000000e+00> : vector<8x32xf32>
    %172 = tpu.matmul %171, %4, %cst_59 {dimension_numbers = #tpu.dot_dimension_numbers<[1], [0], [0], [1], [0, 0, 1, 1], [], []>} : vector<8x4xf32>, vector<4x32xf32>, vector<8x32xf32> -> vector<8x32xf32>
    %173 = arith.mulf %172, %69 : vector<8x32xf32>
    %174 = arith.addf %170, %173 : vector<8x32xf32>
    %cst_60 = arith.constant dense<0.000000e+00> : vector<8x32xf32>
    %175 = tpu.matmul %174, %41, %cst_60 {dimension_numbers = #tpu.dot_dimension_numbers<[1], [0], [0], [1], [0, 0, 1, 1], [], []>} : vector<8x32xf32>, vector<32x32xf32>, vector<8x32xf32> -> vector<8x32xf32>
    %176 = vector.broadcast %45 : vector<1x32xf32> to vector<8x32xf32>
    %177 = arith.addf %175, %176 : vector<8x32xf32>
    %cst_61 = arith.constant dense<0.000000e+00> : vector<8x32xf32>
    %178 = tpu.matmul %25, %35, %cst_61 {dimension_numbers = #tpu.dot_dimension_numbers<[1], [0], [0], [1], [0, 0, 1, 1], [], []>} : vector<8x32xf32>, vector<32x32xf32>, vector<8x32xf32> -> vector<8x32xf32>
    %179 = vector.broadcast %42 : vector<1x32xf32> to vector<8x32xf32>
    %180 = arith.addf %178, %179 : vector<8x32xf32>
    %181 = arith.mulf %180, %48 : vector<8x32xf32>
    %cst_62 = arith.constant dense<0.000000e+00> : vector<8x4xf32>
    %182 = tpu.matmul %181, %3, %cst_62 {dimension_numbers = #tpu.dot_dimension_numbers<[1], [0], [0], [1], [0, 0, 1, 1], [], []>} : vector<8x32xf32>, vector<32x4xf32>, vector<8x4xf32> -> vector<8x4xf32>
    %cst_63 = arith.constant 0.353553385 : f32
    %183 = vector.broadcast %cst_63 : f32 to vector<8x4xf32>
    %184 = arith.mulf %182, %183 : vector<8x4xf32>
    %185 = arith.mulf %180, %51 : vector<8x32xf32>
    %cst_64 = arith.constant dense<0.000000e+00> : vector<8x4xf32>
    %186 = tpu.matmul %185, %3, %cst_64 {dimension_numbers = #tpu.dot_dimension_numbers<[1], [0], [0], [1], [0, 0, 1, 1], [], []>} : vector<8x32xf32>, vector<32x4xf32>, vector<8x4xf32> -> vector<8x4xf32>
    %cst_65 = arith.constant 0.353553385 : f32
    %187 = vector.broadcast %cst_65 : f32 to vector<8x4xf32>
    %188 = arith.mulf %186, %187 : vector<8x4xf32>
    %189 = arith.mulf %180, %54 : vector<8x32xf32>
    %cst_66 = arith.constant dense<0.000000e+00> : vector<8x4xf32>
    %190 = tpu.matmul %189, %3, %cst_66 {dimension_numbers = #tpu.dot_dimension_numbers<[1], [0], [0], [1], [0, 0, 1, 1], [], []>} : vector<8x32xf32>, vector<32x4xf32>, vector<8x4xf32> -> vector<8x4xf32>
    %cst_67 = arith.constant 0.353553385 : f32
    %191 = vector.broadcast %cst_67 : f32 to vector<8x4xf32>
    %192 = arith.mulf %190, %191 : vector<8x4xf32>
    %193 = arith.mulf %180, %57 : vector<8x32xf32>
    %cst_68 = arith.constant dense<0.000000e+00> : vector<8x4xf32>
    %194 = tpu.matmul %193, %3, %cst_68 {dimension_numbers = #tpu.dot_dimension_numbers<[1], [0], [0], [1], [0, 0, 1, 1], [], []>} : vector<8x32xf32>, vector<32x4xf32>, vector<8x4xf32> -> vector<8x4xf32>
    %cst_69 = arith.constant 0.353553385 : f32
    %195 = vector.broadcast %cst_69 : f32 to vector<8x4xf32>
    %196 = arith.mulf %194, %195 : vector<8x4xf32>
    %197 = arith.maximumf %184, %188 : vector<8x4xf32>
    %198 = arith.maximumf %197, %192 : vector<8x4xf32>
    %199 = arith.maximumf %198, %196 : vector<8x4xf32>
    %200 = arith.subf %184, %199 : vector<8x4xf32>
    %201 = math.exp %200 : vector<8x4xf32>
    %202 = arith.subf %188, %199 : vector<8x4xf32>
    %203 = math.exp %202 : vector<8x4xf32>
    %204 = arith.subf %192, %199 : vector<8x4xf32>
    %205 = math.exp %204 : vector<8x4xf32>
    %206 = arith.subf %196, %199 : vector<8x4xf32>
    %207 = math.exp %206 : vector<8x4xf32>
    %208 = arith.addf %201, %203 : vector<8x4xf32>
    %209 = arith.addf %208, %205 : vector<8x4xf32>
    %210 = arith.addf %209, %207 : vector<8x4xf32>
    %211 = tpu.reciprocal %210 {approx = true} : vector<8x4xf32> -> vector<8x4xf32>
    %cst_70 = arith.constant 0.000000e+00 : f32
    %212 = vector.broadcast %cst_70 : f32 to vector<8x32xf32>
    %213 = arith.mulf %201, %211 : vector<8x4xf32>
    %cst_71 = arith.constant dense<0.000000e+00> : vector<8x32xf32>
    %214 = tpu.matmul %213, %4, %cst_71 {dimension_numbers = #tpu.dot_dimension_numbers<[1], [0], [0], [1], [0, 0, 1, 1], [], []>} : vector<8x4xf32>, vector<4x32xf32>, vector<8x32xf32> -> vector<8x32xf32>
    %215 = arith.mulf %214, %60 : vector<8x32xf32>
    %216 = arith.addf %212, %215 : vector<8x32xf32>
    %217 = arith.mulf %203, %211 : vector<8x4xf32>
    %cst_72 = arith.constant dense<0.000000e+00> : vector<8x32xf32>
    %218 = tpu.matmul %217, %4, %cst_72 {dimension_numbers = #tpu.dot_dimension_numbers<[1], [0], [0], [1], [0, 0, 1, 1], [], []>} : vector<8x4xf32>, vector<4x32xf32>, vector<8x32xf32> -> vector<8x32xf32>
    %219 = arith.mulf %218, %63 : vector<8x32xf32>
    %220 = arith.addf %216, %219 : vector<8x32xf32>
    %221 = arith.mulf %205, %211 : vector<8x4xf32>
    %cst_73 = arith.constant dense<0.000000e+00> : vector<8x32xf32>
    %222 = tpu.matmul %221, %4, %cst_73 {dimension_numbers = #tpu.dot_dimension_numbers<[1], [0], [0], [1], [0, 0, 1, 1], [], []>} : vector<8x4xf32>, vector<4x32xf32>, vector<8x32xf32> -> vector<8x32xf32>
    %223 = arith.mulf %222, %66 : vector<8x32xf32>
    %224 = arith.addf %220, %223 : vector<8x32xf32>
    %225 = arith.mulf %207, %211 : vector<8x4xf32>
    %cst_74 = arith.constant dense<0.000000e+00> : vector<8x32xf32>
    %226 = tpu.matmul %225, %4, %cst_74 {dimension_numbers = #tpu.dot_dimension_numbers<[1], [0], [0], [1], [0, 0, 1, 1], [], []>} : vector<8x4xf32>, vector<4x32xf32>, vector<8x32xf32> -> vector<8x32xf32>
    %227 = arith.mulf %226, %69 : vector<8x32xf32>
    %228 = arith.addf %224, %227 : vector<8x32xf32>
    %cst_75 = arith.constant dense<0.000000e+00> : vector<8x32xf32>
    %229 = tpu.matmul %228, %41, %cst_75 {dimension_numbers = #tpu.dot_dimension_numbers<[1], [0], [0], [1], [0, 0, 1, 1], [], []>} : vector<8x32xf32>, vector<32x32xf32>, vector<8x32xf32> -> vector<8x32xf32>
    %230 = vector.broadcast %45 : vector<1x32xf32> to vector<8x32xf32>
    %231 = arith.addf %229, %230 : vector<8x32xf32>
    %cst_76 = arith.constant dense<0.000000e+00> : vector<8x32xf32>
    %232 = tpu.matmul %32, %35, %cst_76 {dimension_numbers = #tpu.dot_dimension_numbers<[1], [0], [0], [1], [0, 0, 1, 1], [], []>} : vector<8x32xf32>, vector<32x32xf32>, vector<8x32xf32> -> vector<8x32xf32>
    %233 = vector.broadcast %42 : vector<1x32xf32> to vector<8x32xf32>
    %234 = arith.addf %232, %233 : vector<8x32xf32>
    %235 = arith.mulf %234, %48 : vector<8x32xf32>
    %cst_77 = arith.constant dense<0.000000e+00> : vector<8x4xf32>
    %236 = tpu.matmul %235, %3, %cst_77 {dimension_numbers = #tpu.dot_dimension_numbers<[1], [0], [0], [1], [0, 0, 1, 1], [], []>} : vector<8x32xf32>, vector<32x4xf32>, vector<8x4xf32> -> vector<8x4xf32>
    %cst_78 = arith.constant 0.353553385 : f32
    %237 = vector.broadcast %cst_78 : f32 to vector<8x4xf32>
    %238 = arith.mulf %236, %237 : vector<8x4xf32>
    %239 = arith.mulf %234, %51 : vector<8x32xf32>
    %cst_79 = arith.constant dense<0.000000e+00> : vector<8x4xf32>
    %240 = tpu.matmul %239, %3, %cst_79 {dimension_numbers = #tpu.dot_dimension_numbers<[1], [0], [0], [1], [0, 0, 1, 1], [], []>} : vector<8x32xf32>, vector<32x4xf32>, vector<8x4xf32> -> vector<8x4xf32>
    %cst_80 = arith.constant 0.353553385 : f32
    %241 = vector.broadcast %cst_80 : f32 to vector<8x4xf32>
    %242 = arith.mulf %240, %241 : vector<8x4xf32>
    %243 = arith.mulf %234, %54 : vector<8x32xf32>
    %cst_81 = arith.constant dense<0.000000e+00> : vector<8x4xf32>
    %244 = tpu.matmul %243, %3, %cst_81 {dimension_numbers = #tpu.dot_dimension_numbers<[1], [0], [0], [1], [0, 0, 1, 1], [], []>} : vector<8x32xf32>, vector<32x4xf32>, vector<8x4xf32> -> vector<8x4xf32>
    %cst_82 = arith.constant 0.353553385 : f32
    %245 = vector.broadcast %cst_82 : f32 to vector<8x4xf32>
    %246 = arith.mulf %244, %245 : vector<8x4xf32>
    %247 = arith.mulf %234, %57 : vector<8x32xf32>
    %cst_83 = arith.constant dense<0.000000e+00> : vector<8x4xf32>
    %248 = tpu.matmul %247, %3, %cst_83 {dimension_numbers = #tpu.dot_dimension_numbers<[1], [0], [0], [1], [0, 0, 1, 1], [], []>} : vector<8x32xf32>, vector<32x4xf32>, vector<8x4xf32> -> vector<8x4xf32>
    %cst_84 = arith.constant 0.353553385 : f32
    %249 = vector.broadcast %cst_84 : f32 to vector<8x4xf32>
    %250 = arith.mulf %248, %249 : vector<8x4xf32>
    %251 = arith.maximumf %238, %242 : vector<8x4xf32>
    %252 = arith.maximumf %251, %246 : vector<8x4xf32>
    %253 = arith.maximumf %252, %250 : vector<8x4xf32>
    %254 = arith.subf %238, %253 : vector<8x4xf32>
    %255 = math.exp %254 : vector<8x4xf32>
    %256 = arith.subf %242, %253 : vector<8x4xf32>
    %257 = math.exp %256 : vector<8x4xf32>
    %258 = arith.subf %246, %253 : vector<8x4xf32>
    %259 = math.exp %258 : vector<8x4xf32>
    %260 = arith.subf %250, %253 : vector<8x4xf32>
    %261 = math.exp %260 : vector<8x4xf32>
    %262 = arith.addf %255, %257 : vector<8x4xf32>
    %263 = arith.addf %262, %259 : vector<8x4xf32>
    %264 = arith.addf %263, %261 : vector<8x4xf32>
    %265 = tpu.reciprocal %264 {approx = true} : vector<8x4xf32> -> vector<8x4xf32>
    %cst_85 = arith.constant 0.000000e+00 : f32
    %266 = vector.broadcast %cst_85 : f32 to vector<8x32xf32>
    %267 = arith.mulf %255, %265 : vector<8x4xf32>
    %cst_86 = arith.constant dense<0.000000e+00> : vector<8x32xf32>
    %268 = tpu.matmul %267, %4, %cst_86 {dimension_numbers = #tpu.dot_dimension_numbers<[1], [0], [0], [1], [0, 0, 1, 1], [], []>} : vector<8x4xf32>, vector<4x32xf32>, vector<8x32xf32> -> vector<8x32xf32>
    %269 = arith.mulf %268, %60 : vector<8x32xf32>
    %270 = arith.addf %266, %269 : vector<8x32xf32>
    %271 = arith.mulf %257, %265 : vector<8x4xf32>
    %cst_87 = arith.constant dense<0.000000e+00> : vector<8x32xf32>
    %272 = tpu.matmul %271, %4, %cst_87 {dimension_numbers = #tpu.dot_dimension_numbers<[1], [0], [0], [1], [0, 0, 1, 1], [], []>} : vector<8x4xf32>, vector<4x32xf32>, vector<8x32xf32> -> vector<8x32xf32>
    %273 = arith.mulf %272, %63 : vector<8x32xf32>
    %274 = arith.addf %270, %273 : vector<8x32xf32>
    %275 = arith.mulf %259, %265 : vector<8x4xf32>
    %cst_88 = arith.constant dense<0.000000e+00> : vector<8x32xf32>
    %276 = tpu.matmul %275, %4, %cst_88 {dimension_numbers = #tpu.dot_dimension_numbers<[1], [0], [0], [1], [0, 0, 1, 1], [], []>} : vector<8x4xf32>, vector<4x32xf32>, vector<8x32xf32> -> vector<8x32xf32>
    %277 = arith.mulf %276, %66 : vector<8x32xf32>
    %278 = arith.addf %274, %277 : vector<8x32xf32>
    %279 = arith.mulf %261, %265 : vector<8x4xf32>
    %cst_89 = arith.constant dense<0.000000e+00> : vector<8x32xf32>
    %280 = tpu.matmul %279, %4, %cst_89 {dimension_numbers = #tpu.dot_dimension_numbers<[1], [0], [0], [1], [0, 0, 1, 1], [], []>} : vector<8x4xf32>, vector<4x32xf32>, vector<8x32xf32> -> vector<8x32xf32>
    %281 = arith.mulf %280, %69 : vector<8x32xf32>
    %282 = arith.addf %278, %281 : vector<8x32xf32>
    %cst_90 = arith.constant dense<0.000000e+00> : vector<8x32xf32>
    %283 = tpu.matmul %282, %41, %cst_90 {dimension_numbers = #tpu.dot_dimension_numbers<[1], [0], [0], [1], [0, 0, 1, 1], [], []>} : vector<8x32xf32>, vector<32x32xf32>, vector<8x32xf32> -> vector<8x32xf32>
    %284 = vector.broadcast %45 : vector<1x32xf32> to vector<8x32xf32>
    %285 = arith.addf %283, %284 : vector<8x32xf32>
    %c0_91 = arith.constant 0 : index
    %c0_92 = arith.constant 0 : index
    %286 = vector.load %arg7[%c0_91, %c0_92] : memref<4x32xf32, #tpu.memory_space<vmem>>, vector<4x32xf32>
    %c0_93 = arith.constant 0 : index
    %c0_94 = arith.constant 0 : index
    %c0_95 = arith.constant 0 : index
    %287 = vector.load %arg6[%c0_93, %c0_94, %c0_95] : memref<4x32x32xf32, #tpu.memory_space<vmem>>, vector<1x32x32xf32>
    %288 = vector.shape_cast %287 : vector<1x32x32xf32> to vector<32x32xf32>
    %c1_96 = arith.constant 1 : index
    %c0_97 = arith.constant 0 : index
    %c0_98 = arith.constant 0 : index
    %289 = vector.load %arg6[%c1_96, %c0_97, %c0_98] : memref<4x32x32xf32, #tpu.memory_space<vmem>>, vector<1x32x32xf32>
    %290 = vector.shape_cast %289 : vector<1x32x32xf32> to vector<32x32xf32>
    %c2_99 = arith.constant 2 : index
    %c0_100 = arith.constant 0 : index
    %c0_101 = arith.constant 0 : index
    %291 = vector.load %arg6[%c2_99, %c0_100, %c0_101] : memref<4x32x32xf32, #tpu.memory_space<vmem>>, vector<1x32x32xf32>
    %292 = vector.shape_cast %291 : vector<1x32x32xf32> to vector<32x32xf32>
    %c3_102 = arith.constant 3 : index
    %c0_103 = arith.constant 0 : index
    %c0_104 = arith.constant 0 : index
    %293 = vector.load %arg6[%c3_102, %c0_103, %c0_104] : memref<4x32x32xf32, #tpu.memory_space<vmem>>, vector<1x32x32xf32>
    %294 = vector.shape_cast %293 : vector<1x32x32xf32> to vector<32x32xf32>
    %295 = vector.extract_strided_slice %286 {offsets = [0, 0], sizes = [1, 32], strides = [1, 1]} : vector<4x32xf32> to vector<1x32xf32>
    %296 = vector.extract_strided_slice %286 {offsets = [1, 0], sizes = [1, 32], strides = [1, 1]} : vector<4x32xf32> to vector<1x32xf32>
    %297 = vector.extract_strided_slice %286 {offsets = [2, 0], sizes = [1, 32], strides = [1, 1]} : vector<4x32xf32> to vector<1x32xf32>
    %298 = vector.extract_strided_slice %286 {offsets = [3, 0], sizes = [1, 32], strides = [1, 1]} : vector<4x32xf32> to vector<1x32xf32>
    %cst_105 = arith.constant dense<0.000000e+00> : vector<8x32xf32>
    %299 = tpu.matmul %123, %290, %cst_105 {dimension_numbers = #tpu.dot_dimension_numbers<[1], [0], [0], [1], [0, 0, 1, 1], [], []>} : vector<8x32xf32>, vector<32x32xf32>, vector<8x32xf32> -> vector<8x32xf32>
    %300 = vector.broadcast %296 : vector<1x32xf32> to vector<8x32xf32>
    %301 = arith.addf %299, %300 : vector<8x32xf32>
    %cst_106 = arith.constant dense<0.000000e+00> : vector<8x32xf32>
    %302 = tpu.matmul %177, %290, %cst_106 {dimension_numbers = #tpu.dot_dimension_numbers<[1], [0], [0], [1], [0, 0, 1, 1], [], []>} : vector<8x32xf32>, vector<32x32xf32>, vector<8x32xf32> -> vector<8x32xf32>
    %303 = vector.broadcast %296 : vector<1x32xf32> to vector<8x32xf32>
    %304 = arith.addf %302, %303 : vector<8x32xf32>
    %cst_107 = arith.constant dense<0.000000e+00> : vector<8x32xf32>
    %305 = tpu.matmul %231, %290, %cst_107 {dimension_numbers = #tpu.dot_dimension_numbers<[1], [0], [0], [1], [0, 0, 1, 1], [], []>} : vector<8x32xf32>, vector<32x32xf32>, vector<8x32xf32> -> vector<8x32xf32>
    %306 = vector.broadcast %296 : vector<1x32xf32> to vector<8x32xf32>
    %307 = arith.addf %305, %306 : vector<8x32xf32>
    %cst_108 = arith.constant dense<0.000000e+00> : vector<8x32xf32>
    %308 = tpu.matmul %285, %290, %cst_108 {dimension_numbers = #tpu.dot_dimension_numbers<[1], [0], [0], [1], [0, 0, 1, 1], [], []>} : vector<8x32xf32>, vector<32x32xf32>, vector<8x32xf32> -> vector<8x32xf32>
    %309 = vector.broadcast %296 : vector<1x32xf32> to vector<8x32xf32>
    %310 = arith.addf %308, %309 : vector<8x32xf32>
    %cst_109 = arith.constant dense<0.000000e+00> : vector<8x32xf32>
    %311 = tpu.matmul %123, %292, %cst_109 {dimension_numbers = #tpu.dot_dimension_numbers<[1], [0], [0], [1], [0, 0, 1, 1], [], []>} : vector<8x32xf32>, vector<32x32xf32>, vector<8x32xf32> -> vector<8x32xf32>
    %312 = vector.broadcast %297 : vector<1x32xf32> to vector<8x32xf32>
    %313 = arith.addf %311, %312 : vector<8x32xf32>
    %cst_110 = arith.constant dense<0.000000e+00> : vector<8x32xf32>
    %314 = tpu.matmul %177, %292, %cst_110 {dimension_numbers = #tpu.dot_dimension_numbers<[1], [0], [0], [1], [0, 0, 1, 1], [], []>} : vector<8x32xf32>, vector<32x32xf32>, vector<8x32xf32> -> vector<8x32xf32>
    %315 = vector.broadcast %297 : vector<1x32xf32> to vector<8x32xf32>
    %316 = arith.addf %314, %315 : vector<8x32xf32>
    %cst_111 = arith.constant dense<0.000000e+00> : vector<8x32xf32>
    %317 = tpu.matmul %231, %292, %cst_111 {dimension_numbers = #tpu.dot_dimension_numbers<[1], [0], [0], [1], [0, 0, 1, 1], [], []>} : vector<8x32xf32>, vector<32x32xf32>, vector<8x32xf32> -> vector<8x32xf32>
    %318 = vector.broadcast %297 : vector<1x32xf32> to vector<8x32xf32>
    %319 = arith.addf %317, %318 : vector<8x32xf32>
    %cst_112 = arith.constant dense<0.000000e+00> : vector<8x32xf32>
    %320 = tpu.matmul %285, %292, %cst_112 {dimension_numbers = #tpu.dot_dimension_numbers<[1], [0], [0], [1], [0, 0, 1, 1], [], []>} : vector<8x32xf32>, vector<32x32xf32>, vector<8x32xf32> -> vector<8x32xf32>
    %321 = vector.broadcast %297 : vector<1x32xf32> to vector<8x32xf32>
    %322 = arith.addf %320, %321 : vector<8x32xf32>
    %cst_113 = arith.constant dense<0.000000e+00> : vector<8x32xf32>
    %323 = tpu.matmul %285, %288, %cst_113 {dimension_numbers = #tpu.dot_dimension_numbers<[1], [0], [0], [1], [0, 0, 1, 1], [], []>} : vector<8x32xf32>, vector<32x32xf32>, vector<8x32xf32> -> vector<8x32xf32>
    %324 = vector.broadcast %295 : vector<1x32xf32> to vector<8x32xf32>
    %325 = arith.addf %323, %324 : vector<8x32xf32>
    %326 = arith.mulf %325, %301 : vector<8x32xf32>
    %cst_114 = arith.constant dense<0.000000e+00> : vector<8x4xf32>
    %327 = tpu.matmul %326, %3, %cst_114 {dimension_numbers = #tpu.dot_dimension_numbers<[1], [0], [0], [1], [0, 0, 1, 1], [], []>} : vector<8x32xf32>, vector<32x4xf32>, vector<8x4xf32> -> vector<8x4xf32>
    %cst_115 = arith.constant 0.353553385 : f32
    %328 = vector.broadcast %cst_115 : f32 to vector<8x4xf32>
    %329 = arith.mulf %327, %328 : vector<8x4xf32>
    %330 = arith.mulf %325, %304 : vector<8x32xf32>
    %cst_116 = arith.constant dense<0.000000e+00> : vector<8x4xf32>
    %331 = tpu.matmul %330, %3, %cst_116 {dimension_numbers = #tpu.dot_dimension_numbers<[1], [0], [0], [1], [0, 0, 1, 1], [], []>} : vector<8x32xf32>, vector<32x4xf32>, vector<8x4xf32> -> vector<8x4xf32>
    %cst_117 = arith.constant 0.353553385 : f32
    %332 = vector.broadcast %cst_117 : f32 to vector<8x4xf32>
    %333 = arith.mulf %331, %332 : vector<8x4xf32>
    %334 = arith.mulf %325, %307 : vector<8x32xf32>
    %cst_118 = arith.constant dense<0.000000e+00> : vector<8x4xf32>
    %335 = tpu.matmul %334, %3, %cst_118 {dimension_numbers = #tpu.dot_dimension_numbers<[1], [0], [0], [1], [0, 0, 1, 1], [], []>} : vector<8x32xf32>, vector<32x4xf32>, vector<8x4xf32> -> vector<8x4xf32>
    %cst_119 = arith.constant 0.353553385 : f32
    %336 = vector.broadcast %cst_119 : f32 to vector<8x4xf32>
    %337 = arith.mulf %335, %336 : vector<8x4xf32>
    %338 = arith.mulf %325, %310 : vector<8x32xf32>
    %cst_120 = arith.constant dense<0.000000e+00> : vector<8x4xf32>
    %339 = tpu.matmul %338, %3, %cst_120 {dimension_numbers = #tpu.dot_dimension_numbers<[1], [0], [0], [1], [0, 0, 1, 1], [], []>} : vector<8x32xf32>, vector<32x4xf32>, vector<8x4xf32> -> vector<8x4xf32>
    %cst_121 = arith.constant 0.353553385 : f32
    %340 = vector.broadcast %cst_121 : f32 to vector<8x4xf32>
    %341 = arith.mulf %339, %340 : vector<8x4xf32>
    %342 = arith.maximumf %329, %333 : vector<8x4xf32>
    %343 = arith.maximumf %342, %337 : vector<8x4xf32>
    %344 = arith.maximumf %343, %341 : vector<8x4xf32>
    %345 = arith.subf %329, %344 : vector<8x4xf32>
    %346 = math.exp %345 : vector<8x4xf32>
    %347 = arith.subf %333, %344 : vector<8x4xf32>
    %348 = math.exp %347 : vector<8x4xf32>
    %349 = arith.subf %337, %344 : vector<8x4xf32>
    %350 = math.exp %349 : vector<8x4xf32>
    %351 = arith.subf %341, %344 : vector<8x4xf32>
    %352 = math.exp %351 : vector<8x4xf32>
    %353 = arith.addf %346, %348 : vector<8x4xf32>
    %354 = arith.addf %353, %350 : vector<8x4xf32>
    %355 = arith.addf %354, %352 : vector<8x4xf32>
    %356 = tpu.reciprocal %355 {approx = true} : vector<8x4xf32> -> vector<8x4xf32>
    %cst_122 = arith.constant 0.000000e+00 : f32
    %357 = vector.broadcast %cst_122 : f32 to vector<8x32xf32>
    %358 = arith.mulf %346, %356 : vector<8x4xf32>
    %cst_123 = arith.constant dense<0.000000e+00> : vector<8x32xf32>
    %359 = tpu.matmul %358, %4, %cst_123 {dimension_numbers = #tpu.dot_dimension_numbers<[1], [0], [0], [1], [0, 0, 1, 1], [], []>} : vector<8x4xf32>, vector<4x32xf32>, vector<8x32xf32> -> vector<8x32xf32>
    %360 = arith.mulf %359, %313 : vector<8x32xf32>
    %361 = arith.addf %357, %360 : vector<8x32xf32>
    %362 = arith.mulf %348, %356 : vector<8x4xf32>
    %cst_124 = arith.constant dense<0.000000e+00> : vector<8x32xf32>
    %363 = tpu.matmul %362, %4, %cst_124 {dimension_numbers = #tpu.dot_dimension_numbers<[1], [0], [0], [1], [0, 0, 1, 1], [], []>} : vector<8x4xf32>, vector<4x32xf32>, vector<8x32xf32> -> vector<8x32xf32>
    %364 = arith.mulf %363, %316 : vector<8x32xf32>
    %365 = arith.addf %361, %364 : vector<8x32xf32>
    %366 = arith.mulf %350, %356 : vector<8x4xf32>
    %cst_125 = arith.constant dense<0.000000e+00> : vector<8x32xf32>
    %367 = tpu.matmul %366, %4, %cst_125 {dimension_numbers = #tpu.dot_dimension_numbers<[1], [0], [0], [1], [0, 0, 1, 1], [], []>} : vector<8x4xf32>, vector<4x32xf32>, vector<8x32xf32> -> vector<8x32xf32>
    %368 = arith.mulf %367, %319 : vector<8x32xf32>
    %369 = arith.addf %365, %368 : vector<8x32xf32>
    %370 = arith.mulf %352, %356 : vector<8x4xf32>
    %cst_126 = arith.constant dense<0.000000e+00> : vector<8x32xf32>
    %371 = tpu.matmul %370, %4, %cst_126 {dimension_numbers = #tpu.dot_dimension_numbers<[1], [0], [0], [1], [0, 0, 1, 1], [], []>} : vector<8x4xf32>, vector<4x32xf32>, vector<8x32xf32> -> vector<8x32xf32>
    %372 = arith.mulf %371, %322 : vector<8x32xf32>
    %373 = arith.addf %369, %372 : vector<8x32xf32>
    %cst_127 = arith.constant dense<0.000000e+00> : vector<8x32xf32>
    %374 = tpu.matmul %373, %294, %cst_127 {dimension_numbers = #tpu.dot_dimension_numbers<[1], [0], [0], [1], [0, 0, 1, 1], [], []>} : vector<8x32xf32>, vector<32x32xf32>, vector<8x32xf32> -> vector<8x32xf32>
    %375 = vector.broadcast %298 : vector<1x32xf32> to vector<8x32xf32>
    %376 = arith.addf %374, %375 : vector<8x32xf32>
    %c0_128 = arith.constant 0 : index
    %c0_129 = arith.constant 0 : index
    %c0_130 = arith.constant 0 : index
    %377 = vector.load %arg10[%c0_128, %c0_129, %c0_130] : memref<1x8x32xf32, #tpu.memory_space<vmem>>, vector<1x8x32xf32>
    %378 = vector.shape_cast %377 : vector<1x8x32xf32> to vector<8x32xf32>
    %379 = vector.shape_cast %376 : vector<8x32xf32> to vector<1x8x32xf32>
    tpu.vector_store %arg10[%c0_128, %c0_129, %c0_130], %379 {strides = array<i32>} : memref<1x8x32xf32, #tpu.memory_space<vmem>>, vector<1x8x32xf32>,
    return
  }
  func.func @transform_0(%arg0: i32, %arg1: i32) -> (i32, i32, i32) {
    %c0_i32 = arith.constant 0 : i32
    %c0_i32_0 = arith.constant 0 : i32
    %c0_i32_1 = arith.constant 0 : i32
    return %arg0, %c0_i32, %c0_i32_0 : i32, i32, i32
  }
  func.func @transform_1(%arg0: i32, %arg1: i32) -> (i32, i32) {
    %c0_i32 = arith.constant 0 : i32
    %c0_i32_0 = arith.constant 0 : i32
    %c0_i32_1 = arith.constant 0 : i32
    return %c0_i32, %c0_i32_0 : i32, i32
  }
  func.func @transform_2(%arg0: i32, %arg1: i32) -> (i32, i32, i32) {
    %c0_i32 = arith.constant 0 : i32
    %c0_i32_0 = arith.constant 0 : i32
    %c0_i32_1 = arith.constant 0 : i32
    %c0_i32_2 = arith.constant 0 : i32
    return %c0_i32, %c0_i32_0, %c0_i32_1 : i32, i32, i32
  }
  func.func @transform_3(%arg0: i32, %arg1: i32) -> (i32, i32) {
    %c0_i32 = arith.constant 0 : i32
    %c0_i32_0 = arith.constant 0 : i32
    %c0_i32_1 = arith.constant 0 : i32
    return %c0_i32, %c0_i32_0 : i32, i32
  }
  func.func @transform_4(%arg0: i32, %arg1: i32) -> (i32, i32, i32) {
    %c0_i32 = arith.constant 0 : i32
    %c0_i32_0 = arith.constant 0 : i32
    %c0_i32_1 = arith.constant 0 : i32
    %c0_i32_2 = arith.constant 0 : i32
    return %c0_i32, %c0_i32_0, %c0_i32_1 : i32, i32, i32
  }
  func.func @transform_5(%arg0: i32, %arg1: i32) -> (i32, i32) {
    %c0_i32 = arith.constant 0 : i32
    %c0_i32_0 = arith.constant 0 : i32
    %c0_i32_1 = arith.constant 0 : i32
    return %c0_i32, %c0_i32_0 : i32, i32
  }
  func.func @transform_6(%arg0: i32, %arg1: i32) -> (i32, i32) {
    %c0_i32 = arith.constant 0 : i32
    %c0_i32_0 = arith.constant 0 : i32
    %c0_i32_1 = arith.constant 0 : i32
    return %c0_i32, %c0_i32_0 : i32, i32
  }
  func.func @transform_7(%arg0: i32, %arg1: i32) -> (i32, i32) {
    %c0_i32 = arith.constant 0 : i32
    %c0_i32_0 = arith.constant 0 : i32
    %c0_i32_1 = arith.constant 0 : i32
    return %c0_i32, %c0_i32_0 : i32, i32
  }
  func.func @transform_8(%arg0: i32, %arg1: i32) -> (i32, i32, i32) {
    %c0_i32 = arith.constant 0 : i32
    %c0_i32_0 = arith.constant 0 : i32
    return %arg0, %arg1, %c0_i32 : i32, i32, i32
  }
}

</mosaic_0001>

<llo_original>
// kernel: tpu_custom_call.1
$region0: #{tpu_custom_call.1}
  #allocation0 [shape = 'u32[]', space=smem, size = 0x4, offset = 0x4, fixed_abs, tag = 'smem constant byte address 0x4 - core index']
  #allocation1 [shape = 'u32[144,128]{1,0:T(1,128)}', space=vmem, size = 0x12000, scoped, tag = 'internal scratch']
  %s0 = inlined_call_operand.vmem [shape: f32[2,11,32], index: 0, kind: input, shape index: {}]
  %s1 = inlined_call_operand.vmem [shape: f32[4,32], index: 1, kind: input, shape index: {}]
  %s2 = inlined_call_operand.hbm [shape: f32[4,32,32], index: 2, kind: input, shape index: {}]
  %s3 = inlined_call_operand.vmem [shape: f32[4,32], index: 3, kind: input, shape index: {}]
  %s4 = inlined_call_operand.hbm [shape: f32[4,32,32], index: 4, kind: input, shape index: {}]
  %s5 = inlined_call_operand.vmem [shape: f32[4,32], index: 5, kind: input, shape index: {}]
  %s6 = inlined_call_operand.vmem [shape: f32[32,4], index: 6, kind: input, shape index: {}]
  %s7 = inlined_call_operand.vmem [shape: f32[4,32], index: 7, kind: input, shape index: {}]
  %s8 = inlined_call_operand.hbm [shape: f32[2,8,32], index: 8, kind: output, shape index: {}]
  %s9 = sld [smem:[#allocation0]]
  $region73: #{tpu_custom_call.1} parent=0
    _
  %s11 = ssub.s32 1, %s9
  %s12 = scalar_select 0, %s11, %s9
  $region1: #{tpu_custom_call.1} parent=0
    #allocation2 [shape = 'u8[65536]{0}', space=vmem, size = 0x10000, scoped, tag = 'input window, operand 2, single buffered']
    #allocation3 [shape = 's32[2]{0}', space=sflag, size = 0x8, scoped, tag = 'scoped memory for tpu_custom_call.1']
    #allocation4 [shape = 's32[2]{0}', space=sflag, size = 0x8, scoped, tag = 'scoped memory for tpu_custom_call.1']
    #allocation5 [shape = 'u8[65536]{0}', space=vmem, size = 0x10000, scoped, tag = 'input window, operand 4, single buffered']
    #allocation6 [shape = 's32[1]{0}', space=sflag, size = 0x4, scoped, tag = 'scoped memory for tpu_custom_call.1']
    #allocation7 [shape = 'u8[8192]{0}', space=vmem, size = 0x2000, scoped, tag = 'output window, operand 0']
    %13 = vsyncpa [#allocation3], 0
    %14 = vsyncpa [#allocation6], 0
    %15 = vsyncpa [#allocation4], 0
    %s16 = scalar_lea.sflag [#allocation4], 1
    %17 = vsyncpa %s16, 0
    loop: start=0, step=1, limit=4
    $region2: #{tpu_custom_call.1} parent=1 // loop_pre_header
      _
    $region3: #{tpu_custom_call.1} parent=1 // loop_header
      %s19 = sphi 0, %s23
      %p20 = scmp.ge.s32.totalorder %s19, 4
      %s26 = sphi 0, %s38
      %s27 = sphi 0, %s34
      %s28 = sphi 0, %s26
      %s29 = sphi 0, %s27
      %s30 = sphi 0, %s28
      %s31 = sphi 0, %s29
      %s41 = sphi 0, %s43
      %s44 = sphi 0, %s41
      %s45 = sphi 0, %s44
      %s61 = sphi 0, %s45
      %s65 = sphi 0, %s65
      %s67 = sphi 0, %s65
      %s68 = sphi 0, %s67
      %s82 = sphi 0, %s68
      %s86 = sphi 0, %s86
      %s88 = sphi 0, %s86
      %s89 = sphi 0, %s88
      %s103 = sphi 0, %s89
      %s107 = sphi 0, %s107
      %s109 = sphi 0, %s107
      %s110 = sphi 0, %s109
      %s124 = sphi 0, %s110
      %s128 = sphi 0, %s128
      %s130 = sphi 0, %s128
      %s131 = sphi 0, %s130
      %s145 = sphi 0, %s131
      %s149 = sphi 0, %s149
      %s151 = sphi 0, %s149
      %s152 = sphi 0, %s151
      %s166 = sphi 0, %s152
      %s170 = sphi 0, %s170
      %s172 = sphi 0, %s170
      %s173 = sphi 0, %s172
      %s187 = sphi 0, %s173
      %s191 = sphi 0, %s191
      %s193 = sphi 0, %s191
      %s194 = sphi 0, %s193
      %s208 = sphi 0, %s194
      %s216 = sphi 0, %s218
      %s219 = sphi 0, %s216
      %s220 = sphi 0, %s219
      %s236 = sphi 0, %s220
    $region4: #{tpu_custom_call.1} parent=1 // loop_header_branch
      %22 = sbr.rel (%p20) target = $region8
    $region5: #{tpu_custom_call.1} parent=1 // loop_body
      %s24 = ssub.s32 %s19, 1
      %s25 = ssub.s32 %s19, 2
      %s32 = sadd.s32 1, %s27
      %p33 = scmp.ge.s32.totalorder %s32, 1
      %s34 = scalar_select %p33, 0, %s32
      %s35 = sadd.s32 1, %s26
      %s36 = scalar_select %p33, %s35, %s26
      %p37 = scmp.ge.s32.totalorder %s36, 2
      %s38 = scalar_select %p37, 0, %s36
      %s39 = ssub.s32 %s26, %s38
      %p40 = scmp.eq.s32.totalorder %s39, 0
      %s42 = sadd.s32 %s41, 1
      %s43 = scalar_select %p40, %s41, %s42
      %p46 = pneg %p40
      %p47 = scmp.eq.s32.totalorder %s19, 1
      %p48 = por %p46, %p47
      %p49 = scmp.ne.s32.totalorder %s41, %s44
      %p50 = scmp.eq.s32.totalorder %s19, 0
      %p51 = por %p49, %p50
      %p52 = scmp.ne.s32.totalorder %s41, %s44
      %p53 = scmp.eq.s32.totalorder %s24, 1
      %p54 = por %p52, %p53
      %p55 = scmp.ne.s32.totalorder %s44, %s45
      %p56 = scmp.eq.s32.totalorder %s24, 0
      %p57 = por %p55, %p56
      %p58 = scmp.ne.s32.totalorder %s44, %s45
      %p59 = scmp.eq.s32.totalorder %s25, 1
      %p60 = por %p58, %p59
      %p62 = scmp.ne.s32.totalorder %s45, %s61
      %p63 = scmp.eq.s32.totalorder %s25, 0
      %p64 = por %p62, %p63
      %s66 = sadd.s32 %s65, 1
      %p69 = scmp.eq.s32.totalorder %s19, 1
      %p70 = scmp.ne.s32.totalorder %s65, %s67
      %p71 = scmp.eq.s32.totalorder %s19, 0
      %p72 = por %p70, %p71
      %p73 = scmp.ne.s32.totalorder %s65, %s67
      %p74 = scmp.eq.s32.totalorder %s24, 1
      %p75 = por %p73, %p74
      %p76 = scmp.ne.s32.totalorder %s67, %s68
      %p77 = scmp.eq.s32.totalorder %s24, 0
      %p78 = por %p76, %p77
      %p79 = scmp.ne.s32.totalorder %s67, %s68
      %p80 = scmp.eq.s32.totalorder %s25, 1
      %p81 = por %p79, %p80
      %p83 = scmp.ne.s32.totalorder %s68, %s82
      %p84 = scmp.eq.s32.totalorder %s25, 0
      %p85 = por %p83, %p84
      %s87 = sadd.s32 %s86, 1
      %p90 = scmp.eq.s32.totalorder %s19, 1
      %p91 = scmp.ne.s32.totalorder %s86, %s88
      %p92 = scmp.eq.s32.totalorder %s19, 0
      %p93 = por %p91, %p92
      %p94 = scmp.ne.s32.totalorder %s86, %s88
      %p95 = scmp.eq.s32.totalorder %s24, 1
      %p96 = por %p94, %p95
      %p97 = scmp.ne.s32.totalorder %s88, %s89
      %p98 = scmp.eq.s32.totalorder %s24, 0
      %p99 = por %p97, %p98
      %p100 = scmp.ne.s32.totalorder %s88, %s89
      %p101 = scmp.eq.s32.totalorder %s25, 1
      %p102 = por %p100, %p101
      %p104 = scmp.ne.s32.totalorder %s89, %s103
      %p105 = scmp.eq.s32.totalorder %s25, 0
      %p106 = por %p104, %p105
      %s108 = sadd.s32 %s107, 1
      %p111 = scmp.eq.s32.totalorder %s19, 1
      %p112 = scmp.ne.s32.totalorder %s107, %s109
      %p113 = scmp.eq.s32.totalorder %s19, 0
      %p114 = por %p112, %p113
      %p115 = scmp.ne.s32.totalorder %s107, %s109
      %p116 = scmp.eq.s32.totalorder %s24, 1
      %p117 = por %p115, %p116
      %p118 = scmp.ne.s32.totalorder %s109, %s110
      %p119 = scmp.eq.s32.totalorder %s24, 0
      %p120 = por %p118, %p119
      %p121 = scmp.ne.s32.totalorder %s109, %s110
      %p122 = scmp.eq.s32.totalorder %s25, 1
      %p123 = por %p121, %p122
      %p125 = scmp.ne.s32.totalorder %s110, %s124
      %p126 = scmp.eq.s32.totalorder %s25, 0
      %p127 = por %p125, %p126
      %s129 = sadd.s32 %s128, 1
      %p132 = scmp.eq.s32.totalorder %s19, 1
      %p133 = scmp.ne.s32.totalorder %s128, %s130
      %p134 = scmp.eq.s32.totalorder %s19, 0
      %p135 = por %p133, %p134
      %p136 = scmp.ne.s32.totalorder %s128, %s130
      %p137 = scmp.eq.s32.totalorder %s24, 1
      %p138 = por %p136, %p137
      %p139 = scmp.ne.s32.totalorder %s130, %s131
      %p140 = scmp.eq.s32.totalorder %s24, 0
      %p141 = por %p139, %p140
      %p142 = scmp.ne.s32.totalorder %s130, %s131
      %p143 = scmp.eq.s32.totalorder %s25, 1
      %p144 = por %p142, %p143
      %p146 = scmp.ne.s32.totalorder %s131, %s145
      %p147 = scmp.eq.s32.totalorder %s25, 0
      %p148 = por %p146, %p147
      %s150 = sadd.s32 %s149, 1
      %p153 = scmp.eq.s32.totalorder %s19, 1
      %p154 = scmp.ne.s32.totalorder %s149, %s151
      %p155 = scmp.eq.s32.totalorder %s19, 0
      %p156 = por %p154, %p155
      %p157 = scmp.ne.s32.totalorder %s149, %s151
      %p158 = scmp.eq.s32.totalorder %s24, 1
      %p159 = por %p157, %p158
      %p160 = scmp.ne.s32.totalorder %s151, %s152
      %p161 = scmp.eq.s32.totalorder %s24, 0
      %p162 = por %p160, %p161
      %p163 = scmp.ne.s32.totalorder %s151, %s152
      %p164 = scmp.eq.s32.totalorder %s25, 1
      %p165 = por %p163, %p164
      %p167 = scmp.ne.s32.totalorder %s152, %s166
      %p168 = scmp.eq.s32.totalorder %s25, 0
      %p169 = por %p167, %p168
      %s171 = sadd.s32 %s170, 1
      %p174 = scmp.eq.s32.totalorder %s19, 1
      %p175 = scmp.ne.s32.totalorder %s170, %s172
      %p176 = scmp.eq.s32.totalorder %s19, 0
      %p177 = por %p175, %p176
      %p178 = scmp.ne.s32.totalorder %s170, %s172
      %p179 = scmp.eq.s32.totalorder %s24, 1
      %p180 = por %p178, %p179
      %p181 = scmp.ne.s32.totalorder %s172, %s173
      %p182 = scmp.eq.s32.totalorder %s24, 0
      %p183 = por %p181, %p182
      %p184 = scmp.ne.s32.totalorder %s172, %s173
      %p185 = scmp.eq.s32.totalorder %s25, 1
      %p186 = por %p184, %p185
      %p188 = scmp.ne.s32.totalorder %s173, %s187
      %p189 = scmp.eq.s32.totalorder %s25, 0
      %p190 = por %p188, %p189
      %s192 = sadd.s32 %s191, 1
      %p195 = scmp.eq.s32.totalorder %s19, 1
      %p196 = scmp.ne.s32.totalorder %s191, %s193
      %p197 = scmp.eq.s32.totalorder %s19, 0
      %p198 = por %p196, %p197
      %p199 = scmp.ne.s32.totalorder %s191, %s193
      %p200 = scmp.eq.s32.totalorder %s24, 1
      %p201 = por %p199, %p200
      %p202 = scmp.ne.s32.totalorder %s193, %s194
      %p203 = scmp.eq.s32.totalorder %s24, 0
      %p204 = por %p202, %p203
      %p205 = scmp.ne.s32.totalorder %s193, %s194
      %p206 = scmp.eq.s32.totalorder %s25, 1
      %p207 = por %p205, %p206
      %p209 = scmp.ne.s32.totalorder %s194, %s208
      %p210 = scmp.eq.s32.totalorder %s25, 0
      %p211 = por %p209, %p210
      %s212 = ssub.s32 %s26, %s38
      %s213 = ssub.s32 %s27, %s34
      %s214 = sor.u32 %s212, %s213
      %p215 = scmp.eq.s32.totalorder %s214, 0
      %s217 = sadd.s32 %s216, 1
      %s218 = scalar_select %p215, %s216, %s217
      %p221 = pneg %p215
      %p222 = scmp.eq.s32.totalorder %s19, 1
      %p223 = por %p221, %p222
      %p224 = scmp.ne.s32.totalorder %s216, %s219
      %p225 = scmp.eq.s32.totalorder %s19, 0
      %p226 = por %p224, %p225
      %p227 = scmp.ne.s32.totalorder %s216, %s219
      %p228 = scmp.eq.s32.totalorder %s24, 1
      %p229 = por %p227, %p228
      %p230 = scmp.ne.s32.totalorder %s219, %s220
      %p231 = scmp.eq.s32.totalorder %s24, 0
      %p232 = por %p230, %p231
      %p233 = scmp.ne.s32.totalorder %s219, %s220
      %p234 = scmp.eq.s32.totalorder %s25, 1
      %p235 = por %p233, %p234
      %p237 = scmp.ne.s32.totalorder %s220, %s236
      %p238 = scmp.eq.s32.totalorder %s25, 0
      %p239 = por %p237, %p238
      %p240 = scmp.le.s32.totalorder 1, %s19
      %p241 = scmp.lt.s32.totalorder %s19, 3
      %p242 = pnand %p240, %p241
      %p243 = pneg %p242
      // Predicated region
      $region9: #{tpu_custom_call.1} parent=5 // pred_check
        _
      $region10: #{tpu_custom_call.1} parent=5 // pred_check_branch
        %245 = sbr.rel (%p242) target = $region12
      $region11: #{tpu_custom_call.1} parent=5 // pred_region
        %s246 = ssub.s32 %s19, 1
        // Predicated region
        $region13: #{tpu_custom_call.1} parent=11 // pred_check
          %p247 = pneg %p78
        $region14: #{tpu_custom_call.1} parent=11 // pred_check_branch
          %249 = sbr.rel (%p247) target = $region16
        $region15: #{tpu_custom_call.1} parent=11 // pred_region
          _
        $region16: #{tpu_custom_call.1} parent=11 // pred_fallthru
          _
        // Predicated region
        $region17: #{tpu_custom_call.1} parent=11 // pred_check
          %p250 = pneg %p99
        $region18: #{tpu_custom_call.1} parent=11 // pred_check_branch
          %252 = sbr.rel (%p250) target = $region20
        $region19: #{tpu_custom_call.1} parent=11 // pred_region
          %s254 = ssub.s32 2048, 2048
          %255 = vsyncadd [#allocation3], %s254
          %s256 = sshll.u32 [#allocation2], 4
          %s257 = int_to_ptr.vmem [resolvable:$true] %s256
          %262 = dma.hbm_to_vmem [thread:$0]  %s2, 2048, %s257, [#allocation3], 128, 128, 8
        $region20: #{tpu_custom_call.1} parent=11 // pred_fallthru
          _
        // Predicated region
        $region21: #{tpu_custom_call.1} parent=11 // pred_check
          %p263 = pneg %p120
        $region22: #{tpu_custom_call.1} parent=11 // pred_check_branch
          %265 = sbr.rel (%p263) target = $region24
        $region23: #{tpu_custom_call.1} parent=11 // pred_region
          _
        $region24: #{tpu_custom_call.1} parent=11 // pred_fallthru
          _
        // Predicated region
        $region25: #{tpu_custom_call.1} parent=11 // pred_check
          %p266 = pneg %p141
        $region26: #{tpu_custom_call.1} parent=11 // pred_check_branch
          %268 = sbr.rel (%p266) target = $region28
        $region27: #{tpu_custom_call.1} parent=11 // pred_region
          %s270 = ssub.s32 2048, 2048
          %271 = vsyncadd [#allocation6], %s270
          %s272 = sshll.u32 [#allocation5], 4
          %s273 = int_to_ptr.vmem [resolvable:$true] %s272
          %278 = dma.hbm_to_vmem [thread:$0]  %s4, 2048, %s273, [#allocation6], 128, 128, 8
        $region28: #{tpu_custom_call.1} parent=11 // pred_fallthru
          _
        // Predicated region
        $region29: #{tpu_custom_call.1} parent=11 // pred_check
          %p279 = pneg %p162
        $region30: #{tpu_custom_call.1} parent=11 // pred_check_branch
          %281 = sbr.rel (%p279) target = $region32
        $region31: #{tpu_custom_call.1} parent=11 // pred_region
          _
        $region32: #{tpu_custom_call.1} parent=11 // pred_fallthru
          _
        // Predicated region
        $region33: #{tpu_custom_call.1} parent=11 // pred_check
          %p282 = pneg %p183
        $region34: #{tpu_custom_call.1} parent=11 // pred_check_branch
          %284 = sbr.rel (%p282) target = $region36
        $region35: #{tpu_custom_call.1} parent=11 // pred_region
          _
        $region36: #{tpu_custom_call.1} parent=11 // pred_fallthru
          _
        // Predicated region
        $region37: #{tpu_custom_call.1} parent=11 // pred_check
          %p285 = pneg %p204
        $region38: #{tpu_custom_call.1} parent=11 // pred_check_branch
          %287 = sbr.rel (%p285) target = $region40
        $region39: #{tpu_custom_call.1} parent=11 // pred_region
          _
        $region40: #{tpu_custom_call.1} parent=11 // pred_fallthru
          _
      $region12: #{tpu_custom_call.1} parent=5 // pred_fallthru
        _
      %p288 = scmp.lt.s32.totalorder %s19, 2
      // Predicated region
      $region41: #{tpu_custom_call.1} parent=5 // pred_check
        %p289 = pneg %p288
      $region42: #{tpu_custom_call.1} parent=5 // pred_check_branch
        %291 = sbr.rel (%p289) target = $region44
      $region43: #{tpu_custom_call.1} parent=5 // pred_region
        // Predicated region
        $region45: #{tpu_custom_call.1} parent=43 // pred_check
          %p292 = pneg %p51
        $region46: #{tpu_custom_call.1} parent=43 // pred_check_branch
          %294 = sbr.rel (%p292) target = $region48
        $region47: #{tpu_custom_call.1} parent=43 // pred_region
          %p295 = scmp.lt.s32.totalorder %s26, 1
          %s296 = scalar_select %p295, %s26, 1
          %s297 = smul.addr %s296, 2
          %s298 = smul.addr %s297, 8
          %s299 = scalar_lea.vmem %s0, %s298
        $region48: #{tpu_custom_call.1} parent=43 // pred_fallthru
          _
      $region44: #{tpu_custom_call.1} parent=5 // pred_fallthru
        _
      %p300 = scmp.le.s32.totalorder 1, %s19
      %p301 = scmp.lt.s32.totalorder %s19, 3
      %p302 = pnand %p300, %p301
      %p303 = pneg %p302
      // Predicated region
      $region49: #{tpu_custom_call.1} parent=5 // pred_check
        _
      $region50: #{tpu_custom_call.1} parent=5 // pred_check_branch
        %305 = sbr.rel (%p302) target = $region52
      $region51: #{tpu_custom_call.1} parent=5 // pred_region
        %s306 = ssub.s32 %s19, 1
        // Predicated region
        $region53: #{tpu_custom_call.1} parent=51 // pred_check
          %p307 = pneg %p99
        $region54: #{tpu_custom_call.1} parent=51 // pred_check_branch
          %309 = sbr.rel (%p307) target = $region56
        $region55: #{tpu_custom_call.1} parent=51 // pred_region
          %310 = dma.done [#allocation3], 2048
        $region56: #{tpu_custom_call.1} parent=51 // pred_fallthru
          _
        // Predicated region
        $region57: #{tpu_custom_call.1} parent=51 // pred_check
          %p311 = pneg %p141
        $region58: #{tpu_custom_call.1} parent=51 // pred_check_branch
          %313 = sbr.rel (%p311) target = $region60
        $region59: #{tpu_custom_call.1} parent=51 // pred_region
          %314 = dma.done [#allocation6], 2048
        $region60: #{tpu_custom_call.1} parent=51 // pred_fallthru
          _
        %p315 = scmp.lt.s32.totalorder %s28, 1
        %s316 = scalar_select %p315, %s28, 1
        %s317 = smul.addr %s316, 2
        %s318 = smul.addr %s317, 8
        %s319 = scalar_lea.vmem %s0, %s318
        %p320 = pneg %p57
        %p321 = pneg %p54
        %p322 = pneg %p78
        %p323 = pneg %p75
        %p324 = pneg %p99
        %p325 = pneg %p96
        %p326 = pneg %p120
        %p327 = pneg %p117
        %p328 = pneg %p141
        %p329 = pneg %p138
        %p330 = pneg %p162
        %p331 = pneg %p159
        %p332 = pneg %p183
        %p333 = pneg %p180
        %p334 = pneg %p204
        %p335 = pneg %p201
        %p336 = pneg %p232
        %p337 = pneg %p229
        %s338 = sand.u32 %s219, 1
        %s339 = scalar_lea.sflag [#allocation4], %s338
        %s340 = sand.u32 %s219, 1
        %s341 = smul.addr %s340, 8
        %s342 = scalar_lea.vmem [#allocation7], %s341
        %p343 = scmp.lt.s32.totalorder %s28, 1
        %s344 = scalar_select %p343, %s28, 1
        %s345 = smul.addr %s344, 2
        %s346 = smul.addr %s345, 8
        %s347 = scalar_lea.vmem %s0, %s346
        %s348 = smul.u32 %s29, 8
        %v349 = vld [vmem:[%s1] sm:$0xf]
        %v350 = vld [vmem:[%s6] sm:$0xff]
        %v351 = vld [vmem:[%s6 + $0x8] sm:$0xff]
        %v352 = vld [vmem:[%s6 + $0x10] sm:$0xff]
        %v353 = vld [vmem:[%s6 + $0x18] sm:$0xff]
        %v354 = vld [vmem:[%s7] sm:$0xf]
        %s355 = scalar_lea.vmem %s347, %s348
        %v356 = vld [vmem:[%s355] sm:$0xff]
        %v357 = vlaneseq
        %v358 = vshrl.u32 %v357, 7
        %v359 = vsub.s32 0, %v358
        %v360 = vrot.slane %v349, %v359
        %v361 = vadd.f32 %v356, %v360
        %s362 = sadd.s32 %s348, 1
        %s363 = scalar_lea.vmem %s347, %s362
        %v364 = vld [vmem:[%s363] sm:$0xff]
        %v365 = vlaneseq
        %v366 = vshrl.u32 %v365, 7
        %v367 = vsub.s32 1, %v366
        %v368 = vrot.slane %v349, %v367
        %v369 = vadd.f32 %v364, %v368
        %s370 = sadd.s32 %s348, 2
        %s371 = scalar_lea.vmem %s347, %s370
        %v372 = vld [vmem:[%s371] sm:$0xff]
        %v373 = vlaneseq
        %v374 = vshrl.u32 %v373, 7
        %v375 = vsub.s32 2, %v374
        %v376 = vrot.slane %v349, %v375
        %v377 = vadd.f32 %v372, %v376
        %s378 = sadd.s32 %s348, 3
        %s379 = scalar_lea.vmem %s347, %s378
        %v380 = vld [vmem:[%s379] sm:$0xff]
        %v381 = vlaneseq
        %v382 = vshrl.u32 %v381, 7
        %v383 = vsub.s32 3, %v382
        %v384 = vrot.slane %v349, %v383
        %v385 = vadd.f32 %v380, %v384
        %v386 = vld [vmem:[%s3] sm:$0xf]
        %v387 = vld [vmem:[#allocation2] sm:$0xff]
        %v388 = vld [vmem:[#allocation2 + $0x8] sm:$0xff]
        %v389 = vld [vmem:[#allocation2 + $0x10] sm:$0xff]
        %v390 = vld [vmem:[#allocation2 + $0x18] sm:$0xff]
        %s391 = scalar_lea.vmem [#allocation2], 32
        %v392 = vld [vmem:[%s391] sm:$0xff]
        %v393 = vld [vmem:[%s391 + $0x8] sm:$0xff]
        %v394 = vld [vmem:[%s391 + $0x10] sm:$0xff]
        %v395 = vld [vmem:[%s391 + $0x18] sm:$0xff]
        %s396 = scalar_lea.vmem [#allocation2], 64
        %v397 = vld [vmem:[%s396] sm:$0xff]
        %v398 = vld [vmem:[%s396 + $0x8] sm:$0xff]
        %v399 = vld [vmem:[%s396 + $0x10] sm:$0xff]
        %v400 = vld [vmem:[%s396 + $0x18] sm:$0xff]
        %s401 = scalar_lea.vmem [#allocation2], 96
        %v402 = vld [vmem:[%s401] sm:$0xff]
        %v403 = vld [vmem:[%s401 + $0x8] sm:$0xff]
        %v404 = vld [vmem:[%s401 + $0x10] sm:$0xff]
        %v405 = vld [vmem:[%s401 + $0x18] sm:$0xff]
        %v406 = vlaneseq
        %v407 = vshrl.u32 %v406, 7
        %v408 = vsub.s32 1, %v407
        %v409 = vrot.slane %v386, %v408
        %vm410 = vcmask 261120
        %v412 = vsel %vm410, %v361, 0
        %414 = vmatprep.subr.mxu0 0.0
        %415 = vmatpush1.msra.mxu0 0.0
        %416 = vmatprep.subr.mxu0 0.0
        %417 = vmatpush1.msra.mxu0 0.0
        %418 = vmatprep.subr.mxu0 0.0
        %419 = vmatpush1.msra.mxu0 0.0
        %420 = vmatprep.subr.mxu0 0.0
        %421 = vmatpush1.msra.mxu0 0.0
        %422 = vmatprep.subr.mxu0 0.0
        %423 = vmatpush1.msra.mxu0 0.0
        %424 = vmatprep.subr.mxu0 0.0
        %425 = vmatpush1.msra.mxu0 0.0
        %426 = vmatprep.subr.mxu0 0.0
        %427 = vmatpush1.msra.mxu0 0.0
        %428 = vmatprep.subr.mxu0 0.0
        %429 = vmatpush1.msra.mxu0 0.0
        %430 = vmatprep.subr.mxu0 0.0
        %431 = vmatpush1.msra.mxu0 0.0
        %432 = vmatprep.subr.mxu0 0.0
        %433 = vmatpush1.msra.mxu0 0.0
        %434 = vmatprep.subr.mxu0 0.0
        %435 = vmatpush1.msra.mxu0 0.0
        %436 = vmatprep.subr.mxu0 0.0
        %437 = vmatpush1.msra.mxu0 0.0
        %438 = vmatprep.subr.mxu0 0.0
        %439 = vmatpush1.msra.mxu0 %v395
        %440 = vmatprep.subr.mxu0 0.0
        %441 = vmatpush1.msra.mxu0 %v394
        %442 = vmatprep.subr.mxu0 0.0
        %443 = vmatpush1.msra.mxu0 %v393
        %444 = vmatprep.subr.mxu0 0.0
        %445 = vmatpush1.msra.mxu0 %v392
        %446 = vmatprep.subr.mxu0 0.0
        %447 = vmatpush2.msra.mxu0 0.0
        %448 = vmatprep.subr.mxu0 0.0
        %449 = vmatpush2.msra.mxu0 0.0
        %450 = vmatprep.subr.mxu0 0.0
        %451 = vmatpush2.msra.mxu0 0.0
        %452 = vmatprep.subr.mxu0 0.0
        %453 = vmatpush2.msra.mxu0 0.0
        %454 = vmatprep.subr.mxu0 0.0
        %455 = vmatpush2.msra.mxu0 0.0
        %456 = vmatprep.subr.mxu0 0.0
        %457 = vmatpush2.msra.mxu0 0.0
        %458 = vmatprep.subr.mxu0 0.0
        %459 = vmatpush2.msra.mxu0 0.0
        %460 = vmatprep.subr.mxu0 0.0
        %461 = vmatpush2.msra.mxu0 0.0
        %462 = vmatprep.subr.mxu0 0.0
        %463 = vmatpush2.msra.mxu0 0.0
        %464 = vmatprep.subr.mxu0 0.0
        %465 = vmatpush2.msra.mxu0 0.0
        %466 = vmatprep.subr.mxu0 0.0
        %467 = vmatpush2.msra.mxu0 0.0
        %468 = vmatprep.subr.mxu0 0.0
        %469 = vmatpush2.msra.mxu0 0.0
        %470 = vmatprep.subr.mxu0 0.0
        %471 = vmatpush2.msra.mxu0 0.0
        %472 = vmatprep.subr.mxu0 0.0
        %473 = vmatpush2.msra.mxu0 0.0
        %474 = vmatprep.subr.mxu0 0.0
        %475 = vmatpush2.msra.mxu0 0.0
        %476 = vmatprep.subr.mxu0 0.0
        %477 = vmatpush2.msra.mxu0 0.0
        %478 = vmatprep.mubr.f32.mxu0 0.0
        %479 = vmatmul.mubr.f32.gmra.mxu0 %v412
        %v480 = vpop.f32.mrf.mxu0
        %v481 = vadd.f32 %v409, %v480
        %v482 = vpop.f32.mrf.mxu0
        %483 = vdwg.mxu0
        %v485 = vsel %vm410, %v369, 0
        %487 = vmatprep.subr.mxu0 0.0
        %488 = vmatpush1.msra.mxu0 0.0
        %489 = vmatprep.subr.mxu0 0.0
        %490 = vmatpush1.msra.mxu0 0.0
        %491 = vmatprep.subr.mxu0 0.0
        %492 = vmatpush1.msra.mxu0 0.0
        %493 = vmatprep.subr.mxu0 0.0
        %494 = vmatpush1.msra.mxu0 0.0
        %495 = vmatprep.subr.mxu0 0.0
        %496 = vmatpush1.msra.mxu0 0.0
        %497 = vmatprep.subr.mxu0 0.0
        %498 = vmatpush1.msra.mxu0 0.0
        %499 = vmatprep.subr.mxu0 0.0
        %500 = vmatpush1.msra.mxu0 0.0
        %501 = vmatprep.subr.mxu0 0.0
        %502 = vmatpush1.msra.mxu0 0.0
        %503 = vmatprep.subr.mxu0 0.0
        %504 = vmatpush1.msra.mxu0 0.0
        %505 = vmatprep.subr.mxu0 0.0
        %506 = vmatpush1.msra.mxu0 0.0
        %507 = vmatprep.subr.mxu0 0.0
        %508 = vmatpush1.msra.mxu0 0.0
        %509 = vmatprep.subr.mxu0 0.0
        %510 = vmatpush1.msra.mxu0 0.0
        %511 = vmatprep.subr.mxu0 0.0
        %512 = vmatpush1.msra.mxu0 %v395
        %513 = vmatprep.subr.mxu0 0.0
        %514 = vmatpush1.msra.mxu0 %v394
        %515 = vmatprep.subr.mxu0 0.0
        %516 = vmatpush1.msra.mxu0 %v393
        %517 = vmatprep.subr.mxu0 0.0
        %518 = vmatpush1.msra.mxu0 %v392
        %519 = vmatprep.subr.mxu0 0.0
        %520 = vmatpush2.msra.mxu0 0.0
        %521 = vmatprep.subr.mxu0 0.0
        %522 = vmatpush2.msra.mxu0 0.0
        %523 = vmatprep.subr.mxu0 0.0
        %524 = vmatpush2.msra.mxu0 0.0
        %525 = vmatprep.subr.mxu0 0.0
        %526 = vmatpush2.msra.mxu0 0.0
        %527 = vmatprep.subr.mxu0 0.0
        %528 = vmatpush2.msra.mxu0 0.0
        %529 = vmatprep.subr.mxu0 0.0
        %530 = vmatpush2.msra.mxu0 0.0
        %531 = vmatprep.subr.mxu0 0.0
        %532 = vmatpush2.msra.mxu0 0.0
        %533 = vmatprep.subr.mxu0 0.0
        %534 = vmatpush2.msra.mxu0 0.0
        %535 = vmatprep.subr.mxu0 0.0
        %536 = vmatpush2.msra.mxu0 0.0
        %537 = vmatprep.subr.mxu0 0.0
        %538 = vmatpush2.msra.mxu0 0.0
        %539 = vmatprep.subr.mxu0 0.0
        %540 = vmatpush2.msra.mxu0 0.0
        %541 = vmatprep.subr.mxu0 0.0
        %542 = vmatpush2.msra.mxu0 0.0
        %543 = vmatprep.subr.mxu0 0.0
        %544 = vmatpush2.msra.mxu0 0.0
        %545 = vmatprep.subr.mxu0 0.0
        %546 = vmatpush2.msra.mxu0 0.0
        %547 = vmatprep.subr.mxu0 0.0
        %548 = vmatpush2.msra.mxu0 0.0
        %549 = vmatprep.subr.mxu0 0.0
        %550 = vmatpush2.msra.mxu0 0.0
        %551 = vmatprep.mubr.f32.mxu0 0.0
        %552 = vmatmul.mubr.f32.gmra.mxu0 %v485
        %v553 = vpop.f32.mrf.mxu0
        %v554 = vadd.f32 %v409, %v553
        %v555 = vpop.f32.mrf.mxu0
        %556 = vdwg.mxu0
        %v558 = vsel %vm410, %v377, 0
        %560 = vmatprep.subr.mxu0 0.0
        %561 = vmatpush1.msra.mxu0 0.0
        %562 = vmatprep.subr.mxu0 0.0
        %563 = vmatpush1.msra.mxu0 0.0
        %564 = vmatprep.subr.mxu0 0.0
        %565 = vmatpush1.msra.mxu0 0.0
        %566 = vmatprep.subr.mxu0 0.0
        %567 = vmatpush1.msra.mxu0 0.0
        %568 = vmatprep.subr.mxu0 0.0
        %569 = vmatpush1.msra.mxu0 0.0
        %570 = vmatprep.subr.mxu0 0.0
        %571 = vmatpush1.msra.mxu0 0.0
        %572 = vmatprep.subr.mxu0 0.0
        %573 = vmatpush1.msra.mxu0 0.0
        %574 = vmatprep.subr.mxu0 0.0
        %575 = vmatpush1.msra.mxu0 0.0
        %576 = vmatprep.subr.mxu0 0.0
        %577 = vmatpush1.msra.mxu0 0.0
        %578 = vmatprep.subr.mxu0 0.0
        %579 = vmatpush1.msra.mxu0 0.0
        %580 = vmatprep.subr.mxu0 0.0
        %581 = vmatpush1.msra.mxu0 0.0
        %582 = vmatprep.subr.mxu0 0.0
        %583 = vmatpush1.msra.mxu0 0.0
        %584 = vmatprep.subr.mxu0 0.0
        %585 = vmatpush1.msra.mxu0 %v395
        %586 = vmatprep.subr.mxu0 0.0
        %587 = vmatpush1.msra.mxu0 %v394
        %588 = vmatprep.subr.mxu0 0.0
        %589 = vmatpush1.msra.mxu0 %v393
        %590 = vmatprep.subr.mxu0 0.0
        %591 = vmatpush1.msra.mxu0 %v392
        %592 = vmatprep.subr.mxu0 0.0
        %593 = vmatpush2.msra.mxu0 0.0
        %594 = vmatprep.subr.mxu0 0.0
        %595 = vmatpush2.msra.mxu0 0.0
        %596 = vmatprep.subr.mxu0 0.0
        %597 = vmatpush2.msra.mxu0 0.0
        %598 = vmatprep.subr.mxu0 0.0
        %599 = vmatpush2.msra.mxu0 0.0
        %600 = vmatprep.subr.mxu0 0.0
        %601 = vmatpush2.msra.mxu0 0.0
        %602 = vmatprep.subr.mxu0 0.0
        %603 = vmatpush2.msra.mxu0 0.0
        %604 = vmatprep.subr.mxu0 0.0
        %605 = vmatpush2.msra.mxu0 0.0
        %606 = vmatprep.subr.mxu0 0.0
        %607 = vmatpush2.msra.mxu0 0.0
        %608 = vmatprep.subr.mxu0 0.0
        %609 = vmatpush2.msra.mxu0 0.0
        %610 = vmatprep.subr.mxu0 0.0
        %611 = vmatpush2.msra.mxu0 0.0
        %612 = vmatprep.subr.mxu0 0.0
        %613 = vmatpush2.msra.mxu0 0.0
        %614 = vmatprep.subr.mxu0 0.0
        %615 = vmatpush2.msra.mxu0 0.0
        %616 = vmatprep.subr.mxu0 0.0
        %617 = vmatpush2.msra.mxu0 0.0
        %618 = vmatprep.subr.mxu0 0.0
        %619 = vmatpush2.msra.mxu0 0.0
        %620 = vmatprep.subr.mxu0 0.0
        %621 = vmatpush2.msra.mxu0 0.0
        %622 = vmatprep.subr.mxu0 0.0
        %623 = vmatpush2.msra.mxu0 0.0
        %624 = vmatprep.mubr.f32.mxu0 0.0
        %625 = vmatmul.mubr.f32.gmra.mxu0 %v558
        %v626 = vpop.f32.mrf.mxu0
        %v627 = vadd.f32 %v409, %v626
        %v628 = vpop.f32.mrf.mxu0
        %629 = vdwg.mxu0
        %v631 = vsel %vm410, %v385, 0
        %633 = vmatprep.subr.mxu0 0.0
        %634 = vmatpush1.msra.mxu0 0.0
        %635 = vmatprep.subr.mxu0 0.0
        %636 = vmatpush1.msra.mxu0 0.0
        %637 = vmatprep.subr.mxu0 0.0
        %638 = vmatpush1.msra.mxu0 0.0
        %639 = vmatprep.subr.mxu0 0.0
        %640 = vmatpush1.msra.mxu0 0.0
        %641 = vmatprep.subr.mxu0 0.0
        %642 = vmatpush1.msra.mxu0 0.0
        %643 = vmatprep.subr.mxu0 0.0
        %644 = vmatpush1.msra.mxu0 0.0
        %645 = vmatprep.subr.mxu0 0.0
        %646 = vmatpush1.msra.mxu0 0.0
        %647 = vmatprep.subr.mxu0 0.0
        %648 = vmatpush1.msra.mxu0 0.0
        %649 = vmatprep.subr.mxu0 0.0
        %650 = vmatpush1.msra.mxu0 0.0
        %651 = vmatprep.subr.mxu0 0.0
        %652 = vmatpush1.msra.mxu0 0.0
        %653 = vmatprep.subr.mxu0 0.0
        %654 = vmatpush1.msra.mxu0 0.0
        %655 = vmatprep.subr.mxu0 0.0
        %656 = vmatpush1.msra.mxu0 0.0
        %657 = vmatprep.subr.mxu0 0.0
        %658 = vmatpush1.msra.mxu0 %v395
        %659 = vmatprep.subr.mxu0 0.0
        %660 = vmatpush1.msra.mxu0 %v394
        %661 = vmatprep.subr.mxu0 0.0
        %662 = vmatpush1.msra.mxu0 %v393
        %663 = vmatprep.subr.mxu0 0.0
        %664 = vmatpush1.msra.mxu0 %v392
        %665 = vmatprep.subr.mxu0 0.0
        %666 = vmatpush2.msra.mxu0 0.0
        %667 = vmatprep.subr.mxu0 0.0
        %668 = vmatpush2.msra.mxu0 0.0
        %669 = vmatprep.subr.mxu0 0.0
        %670 = vmatpush2.msra.mxu0 0.0
        %671 = vmatprep.subr.mxu0 0.0
        %672 = vmatpush2.msra.mxu0 0.0
        %673 = vmatprep.subr.mxu0 0.0
        %674 = vmatpush2.msra.mxu0 0.0
        %675 = vmatprep.subr.mxu0 0.0
        %676 = vmatpush2.msra.mxu0 0.0
        %677 = vmatprep.subr.mxu0 0.0
        %678 = vmatpush2.msra.mxu0 0.0
        %679 = vmatprep.subr.mxu0 0.0
        %680 = vmatpush2.msra.mxu0 0.0
        %681 = vmatprep.subr.mxu0 0.0
        %682 = vmatpush2.msra.mxu0 0.0
        %683 = vmatprep.subr.mxu0 0.0
        %684 = vmatpush2.msra.mxu0 0.0
        %685 = vmatprep.subr.mxu0 0.0
        %686 = vmatpush2.msra.mxu0 0.0
        %687 = vmatprep.subr.mxu0 0.0
        %688 = vmatpush2.msra.mxu0 0.0
        %689 = vmatprep.subr.mxu0 0.0
        %690 = vmatpush2.msra.mxu0 0.0
        %691 = vmatprep.subr.mxu0 0.0
        %692 = vmatpush2.msra.mxu0 0.0
        %693 = vmatprep.subr.mxu0 0.0
        %694 = vmatpush2.msra.mxu0 0.0
        %695 = vmatprep.subr.mxu0 0.0
        %696 = vmatpush2.msra.mxu0 0.0
        %697 = vmatprep.mubr.f32.mxu0 0.0
        %698 = vmatmul.mubr.f32.gmra.mxu0 %v631
        %v699 = vpop.f32.mrf.mxu0
        %v700 = vadd.f32 %v409, %v699
        %v701 = vpop.f32.mrf.mxu0
        %702 = vdwg.mxu0
        %v703 = vlaneseq
        %v704 = vshrl.u32 %v703, 7
        %v705 = vsub.s32 2, %v704
        %v706 = vrot.slane %v386, %v705
        %707 = vmatprep.subr.mxu0 0.0
        %708 = vmatpush1.msra.mxu0 0.0
        %709 = vmatprep.subr.mxu0 0.0
        %710 = vmatpush1.msra.mxu0 0.0
        %711 = vmatprep.subr.mxu0 0.0
        %712 = vmatpush1.msra.mxu0 0.0
        %713 = vmatprep.subr.mxu0 0.0
        %714 = vmatpush1.msra.mxu0 0.0
        %715 = vmatprep.subr.mxu0 0.0
        %716 = vmatpush1.msra.mxu0 0.0
        %717 = vmatprep.subr.mxu0 0.0
        %718 = vmatpush1.msra.mxu0 0.0
        %719 = vmatprep.subr.mxu0 0.0
        %720 = vmatpush1.msra.mxu0 0.0
        %721 = vmatprep.subr.mxu0 0.0
        %722 = vmatpush1.msra.mxu0 0.0
        %723 = vmatprep.subr.mxu0 0.0
        %724 = vmatpush1.msra.mxu0 0.0
        %725 = vmatprep.subr.mxu0 0.0
        %726 = vmatpush1.msra.mxu0 0.0
        %727 = vmatprep.subr.mxu0 0.0
        %728 = vmatpush1.msra.mxu0 0.0
        %729 = vmatprep.subr.mxu0 0.0
        %730 = vmatpush1.msra.mxu0 0.0
        %731 = vmatprep.subr.mxu0 0.0
        %732 = vmatpush1.msra.mxu0 %v400
        %733 = vmatprep.subr.mxu0 0.0
        %734 = vmatpush1.msra.mxu0 %v399
        %735 = vmatprep.subr.mxu0 0.0
        %736 = vmatpush1.msra.mxu0 %v398
        %737 = vmatprep.subr.mxu0 0.0
        %738 = vmatpush1.msra.mxu0 %v397
        %739 = vmatprep.subr.mxu0 0.0
        %740 = vmatpush2.msra.mxu0 0.0
        %741 = vmatprep.subr.mxu0 0.0
        %742 = vmatpush2.msra.mxu0 0.0
        %743 = vmatprep.subr.mxu0 0.0
        %744 = vmatpush2.msra.mxu0 0.0
        %745 = vmatprep.subr.mxu0 0.0
        %746 = vmatpush2.msra.mxu0 0.0
        %747 = vmatprep.subr.mxu0 0.0
        %748 = vmatpush2.msra.mxu0 0.0
        %749 = vmatprep.subr.mxu0 0.0
        %750 = vmatpush2.msra.mxu0 0.0
        %751 = vmatprep.subr.mxu0 0.0
        %752 = vmatpush2.msra.mxu0 0.0
        %753 = vmatprep.subr.mxu0 0.0
        %754 = vmatpush2.msra.mxu0 0.0
        %755 = vmatprep.subr.mxu0 0.0
        %756 = vmatpush2.msra.mxu0 0.0
        %757 = vmatprep.subr.mxu0 0.0
        %758 = vmatpush2.msra.mxu0 0.0
        %759 = vmatprep.subr.mxu0 0.0
        %760 = vmatpush2.msra.mxu0 0.0
        %761 = vmatprep.subr.mxu0 0.0
        %762 = vmatpush2.msra.mxu0 0.0
        %763 = vmatprep.subr.mxu0 0.0
        %764 = vmatpush2.msra.mxu0 0.0
        %765 = vmatprep.subr.mxu0 0.0
        %766 = vmatpush2.msra.mxu0 0.0
        %767 = vmatprep.subr.mxu0 0.0
        %768 = vmatpush2.msra.mxu0 0.0
        %769 = vmatprep.subr.mxu0 0.0
        %770 = vmatpush2.msra.mxu0 0.0
        %771 = vmatprep.mubr.f32.mxu0 0.0
        %772 = vmatmul.mubr.f32.gmra.mxu0 %v412
        %v773 = vpop.f32.mrf.mxu0
        %v774 = vadd.f32 %v706, %v773
        %v775 = vpop.f32.mrf.mxu0
        %776 = vdwg.mxu0
        %777 = vmatprep.subr.mxu0 0.0
        %778 = vmatpush1.msra.mxu0 0.0
        %779 = vmatprep.subr.mxu0 0.0
        %780 = vmatpush1.msra.mxu0 0.0
        %781 = vmatprep.subr.mxu0 0.0
        %782 = vmatpush1.msra.mxu0 0.0
        %783 = vmatprep.subr.mxu0 0.0
        %784 = vmatpush1.msra.mxu0 0.0
        %785 = vmatprep.subr.mxu0 0.0
        %786 = vmatpush1.msra.mxu0 0.0
        %787 = vmatprep.subr.mxu0 0.0
        %788 = vmatpush1.msra.mxu0 0.0
        %789 = vmatprep.subr.mxu0 0.0
        %790 = vmatpush1.msra.mxu0 0.0
        %791 = vmatprep.subr.mxu0 0.0
        %792 = vmatpush1.msra.mxu0 0.0
        %793 = vmatprep.subr.mxu0 0.0
        %794 = vmatpush1.msra.mxu0 0.0
        %795 = vmatprep.subr.mxu0 0.0
        %796 = vmatpush1.msra.mxu0 0.0
        %797 = vmatprep.subr.mxu0 0.0
        %798 = vmatpush1.msra.mxu0 0.0
        %799 = vmatprep.subr.mxu0 0.0
        %800 = vmatpush1.msra.mxu0 0.0
        %801 = vmatprep.subr.mxu0 0.0
        %802 = vmatpush1.msra.mxu0 %v400
        %803 = vmatprep.subr.mxu0 0.0
        %804 = vmatpush1.msra.mxu0 %v399
        %805 = vmatprep.subr.mxu0 0.0
        %806 = vmatpush1.msra.mxu0 %v398
        %807 = vmatprep.subr.mxu0 0.0
        %808 = vmatpush1.msra.mxu0 %v397
        %809 = vmatprep.subr.mxu0 0.0
        %810 = vmatpush2.msra.mxu0 0.0
        %811 = vmatprep.subr.mxu0 0.0
        %812 = vmatpush2.msra.mxu0 0.0
        %813 = vmatprep.subr.mxu0 0.0
        %814 = vmatpush2.msra.mxu0 0.0
        %815 = vmatprep.subr.mxu0 0.0
        %816 = vmatpush2.msra.mxu0 0.0
        %817 = vmatprep.subr.mxu0 0.0
        %818 = vmatpush2.msra.mxu0 0.0
        %819 = vmatprep.subr.mxu0 0.0
        %820 = vmatpush2.msra.mxu0 0.0
        %821 = vmatprep.subr.mxu0 0.0
        %822 = vmatpush2.msra.mxu0 0.0
        %823 = vmatprep.subr.mxu0 0.0
        %824 = vmatpush2.msra.mxu0 0.0
        %825 = vmatprep.subr.mxu0 0.0
        %826 = vmatpush2.msra.mxu0 0.0
        %827 = vmatprep.subr.mxu0 0.0
        %828 = vmatpush2.msra.mxu0 0.0
        %829 = vmatprep.subr.mxu0 0.0
        %830 = vmatpush2.msra.mxu0 0.0
        %831 = vmatprep.subr.mxu0 0.0
        %832 = vmatpush2.msra.mxu0 0.0
        %833 = vmatprep.subr.mxu0 0.0
        %834 = vmatpush2.msra.mxu0 0.0
        %835 = vmatprep.subr.mxu0 0.0
        %836 = vmatpush2.msra.mxu0 0.0
        %837 = vmatprep.subr.mxu0 0.0
        %838 = vmatpush2.msra.mxu0 0.0
        %839 = vmatprep.subr.mxu0 0.0
        %840 = vmatpush2.msra.mxu0 0.0
        %841 = vmatprep.mubr.f32.mxu0 0.0
        %842 = vmatmul.mubr.f32.gmra.mxu0 %v485
        %v843 = vpop.f32.mrf.mxu0
        %v844 = vadd.f32 %v706, %v843
        %v845 = vpop.f32.mrf.mxu0
        %846 = vdwg.mxu0
        %847 = vmatprep.subr.mxu0 0.0
        %848 = vmatpush1.msra.mxu0 0.0
        %849 = vmatprep.subr.mxu0 0.0
        %850 = vmatpush1.msra.mxu0 0.0
        %851 = vmatprep.subr.mxu0 0.0
        %852 = vmatpush1.msra.mxu0 0.0
        %853 = vmatprep.subr.mxu0 0.0
        %854 = vmatpush1.msra.mxu0 0.0
        %855 = vmatprep.subr.mxu0 0.0
        %856 = vmatpush1.msra.mxu0 0.0
        %857 = vmatprep.subr.mxu0 0.0
        %858 = vmatpush1.msra.mxu0 0.0
        %859 = vmatprep.subr.mxu0 0.0
        %860 = vmatpush1.msra.mxu0 0.0
        %861 = vmatprep.subr.mxu0 0.0
        %862 = vmatpush1.msra.mxu0 0.0
        %863 = vmatprep.subr.mxu0 0.0
        %864 = vmatpush1.msra.mxu0 0.0
        %865 = vmatprep.subr.mxu0 0.0
        %866 = vmatpush1.msra.mxu0 0.0
        %867 = vmatprep.subr.mxu0 0.0
        %868 = vmatpush1.msra.mxu0 0.0
        %869 = vmatprep.subr.mxu0 0.0
        %870 = vmatpush1.msra.mxu0 0.0
        %871 = vmatprep.subr.mxu0 0.0
        %872 = vmatpush1.msra.mxu0 %v400
        %873 = vmatprep.subr.mxu0 0.0
        %874 = vmatpush1.msra.mxu0 %v399
        %875 = vmatprep.subr.mxu0 0.0
        %876 = vmatpush1.msra.mxu0 %v398
        %877 = vmatprep.subr.mxu0 0.0
        %878 = vmatpush1.msra.mxu0 %v397
        %879 = vmatprep.subr.mxu0 0.0
        %880 = vmatpush2.msra.mxu0 0.0
        %881 = vmatprep.subr.mxu0 0.0
        %882 = vmatpush2.msra.mxu0 0.0
        %883 = vmatprep.subr.mxu0 0.0
        %884 = vmatpush2.msra.mxu0 0.0
        %885 = vmatprep.subr.mxu0 0.0
        %886 = vmatpush2.msra.mxu0 0.0
        %887 = vmatprep.subr.mxu0 0.0
        %888 = vmatpush2.msra.mxu0 0.0
        %889 = vmatprep.subr.mxu0 0.0
        %890 = vmatpush2.msra.mxu0 0.0
        %891 = vmatprep.subr.mxu0 0.0
        %892 = vmatpush2.msra.mxu0 0.0
        %893 = vmatprep.subr.mxu0 0.0
        %894 = vmatpush2.msra.mxu0 0.0
        %895 = vmatprep.subr.mxu0 0.0
        %896 = vmatpush2.msra.mxu0 0.0
        %897 = vmatprep.subr.mxu0 0.0
        %898 = vmatpush2.msra.mxu0 0.0
        %899 = vmatprep.subr.mxu0 0.0
        %900 = vmatpush2.msra.mxu0 0.0
        %901 = vmatprep.subr.mxu0 0.0
        %902 = vmatpush2.msra.mxu0 0.0
        %903 = vmatprep.subr.mxu0 0.0
        %904 = vmatpush2.msra.mxu0 0.0
        %905 = vmatprep.subr.mxu0 0.0
        %906 = vmatpush2.msra.mxu0 0.0
        %907 = vmatprep.subr.mxu0 0.0
        %908 = vmatpush2.msra.mxu0 0.0
        %909 = vmatprep.subr.mxu0 0.0
        %910 = vmatpush2.msra.mxu0 0.0
        %911 = vmatprep.mubr.f32.mxu0 0.0
        %912 = vmatmul.mubr.f32.gmra.mxu0 %v558
        %v913 = vpop.f32.mrf.mxu0
        %v914 = vadd.f32 %v706, %v913
        %v915 = vpop.f32.mrf.mxu0
        %916 = vdwg.mxu0
        %917 = vmatprep.subr.mxu0 0.0
        %918 = vmatpush1.msra.mxu0 0.0
        %919 = vmatprep.subr.mxu0 0.0
        %920 = vmatpush1.msra.mxu0 0.0
        %921 = vmatprep.subr.mxu0 0.0
        %922 = vmatpush1.msra.mxu0 0.0
        %923 = vmatprep.subr.mxu0 0.0
        %924 = vmatpush1.msra.mxu0 0.0
        %925 = vmatprep.subr.mxu0 0.0
        %926 = vmatpush1.msra.mxu0 0.0
        %927 = vmatprep.subr.mxu0 0.0
        %928 = vmatpush1.msra.mxu0 0.0
        %929 = vmatprep.subr.mxu0 0.0
        %930 = vmatpush1.msra.mxu0 0.0
        %931 = vmatprep.subr.mxu0 0.0
        %932 = vmatpush1.msra.mxu0 0.0
        %933 = vmatprep.subr.mxu0 0.0
        %934 = vmatpush1.msra.mxu0 0.0
        %935 = vmatprep.subr.mxu0 0.0
        %936 = vmatpush1.msra.mxu0 0.0
        %937 = vmatprep.subr.mxu0 0.0
        %938 = vmatpush1.msra.mxu0 0.0
        %939 = vmatprep.subr.mxu0 0.0
        %940 = vmatpush1.msra.mxu0 0.0
        %941 = vmatprep.subr.mxu0 0.0
        %942 = vmatpush1.msra.mxu0 %v400
        %943 = vmatprep.subr.mxu0 0.0
        %944 = vmatpush1.msra.mxu0 %v399
        %945 = vmatprep.subr.mxu0 0.0
        %946 = vmatpush1.msra.mxu0 %v398
        %947 = vmatprep.subr.mxu0 0.0
        %948 = vmatpush1.msra.mxu0 %v397
        %949 = vmatprep.subr.mxu0 0.0
        %950 = vmatpush2.msra.mxu0 0.0
        %951 = vmatprep.subr.mxu0 0.0
        %952 = vmatpush2.msra.mxu0 0.0
        %953 = vmatprep.subr.mxu0 0.0
        %954 = vmatpush2.msra.mxu0 0.0
        %955 = vmatprep.subr.mxu0 0.0
        %956 = vmatpush2.msra.mxu0 0.0
        %957 = vmatprep.subr.mxu0 0.0
        %958 = vmatpush2.msra.mxu0 0.0
        %959 = vmatprep.subr.mxu0 0.0
        %960 = vmatpush2.msra.mxu0 0.0
        %961 = vmatprep.subr.mxu0 0.0
        %962 = vmatpush2.msra.mxu0 0.0
        %963 = vmatprep.subr.mxu0 0.0
        %964 = vmatpush2.msra.mxu0 0.0
        %965 = vmatprep.subr.mxu0 0.0
        %966 = vmatpush2.msra.mxu0 0.0
        %967 = vmatprep.subr.mxu0 0.0
        %968 = vmatpush2.msra.mxu0 0.0
        %969 = vmatprep.subr.mxu0 0.0
        %970 = vmatpush2.msra.mxu0 0.0
        %971 = vmatprep.subr.mxu0 0.0
        %972 = vmatpush2.msra.mxu0 0.0
        %973 = vmatprep.subr.mxu0 0.0
        %974 = vmatpush2.msra.mxu0 0.0
        %975 = vmatprep.subr.mxu0 0.0
        %976 = vmatpush2.msra.mxu0 0.0
        %977 = vmatprep.subr.mxu0 0.0
        %978 = vmatpush2.msra.mxu0 0.0
        %979 = vmatprep.subr.mxu0 0.0
        %980 = vmatpush2.msra.mxu0 0.0
        %981 = vmatprep.mubr.f32.mxu0 0.0
        %982 = vmatmul.mubr.f32.gmra.mxu0 %v631
        %v983 = vpop.f32.mrf.mxu0
        %v984 = vadd.f32 %v706, %v983
        %v985 = vpop.f32.mrf.mxu0
        %986 = vdwg.mxu0
        %v987 = vlaneseq
        %v988 = vshrl.u32 %v987, 7
        %v989 = vsub.s32 0, %v988
        %v990 = vrot.slane %v386, %v989
        %991 = vmatprep.subr.mxu0 0.0
        %992 = vmatpush1.msra.mxu0 0.0
        %993 = vmatprep.subr.mxu0 0.0
        %994 = vmatpush1.msra.mxu0 0.0
        %995 = vmatprep.subr.mxu0 0.0
        %996 = vmatpush1.msra.mxu0 0.0
        %997 = vmatprep.subr.mxu0 0.0
        %998 = vmatpush1.msra.mxu0 0.0
        %999 = vmatprep.subr.mxu0 0.0
        %1000 = vmatpush1.msra.mxu0 0.0
        %1001 = vmatprep.subr.mxu0 0.0
        %1002 = vmatpush1.msra.mxu0 0.0
        %1003 = vmatprep.subr.mxu0 0.0
        %1004 = vmatpush1.msra.mxu0 0.0
        %1005 = vmatprep.subr.mxu0 0.0
        %1006 = vmatpush1.msra.mxu0 0.0
        %1007 = vmatprep.subr.mxu0 0.0
        %1008 = vmatpush1.msra.mxu0 0.0
        %1009 = vmatprep.subr.mxu0 0.0
        %1010 = vmatpush1.msra.mxu0 0.0
        %1011 = vmatprep.subr.mxu0 0.0
        %1012 = vmatpush1.msra.mxu0 0.0
        %1013 = vmatprep.subr.mxu0 0.0
        %1014 = vmatpush1.msra.mxu0 0.0
        %1015 = vmatprep.subr.mxu0 0.0
        %1016 = vmatpush1.msra.mxu0 %v390
        %1017 = vmatprep.subr.mxu0 0.0
        %1018 = vmatpush1.msra.mxu0 %v389
        %1019 = vmatprep.subr.mxu0 0.0
        %1020 = vmatpush1.msra.mxu0 %v388
        %1021 = vmatprep.subr.mxu0 0.0
        %1022 = vmatpush1.msra.mxu0 %v387
        %1023 = vmatprep.subr.mxu0 0.0
        %1024 = vmatpush2.msra.mxu0 0.0
        %1025 = vmatprep.subr.mxu0 0.0
        %1026 = vmatpush2.msra.mxu0 0.0
        %1027 = vmatprep.subr.mxu0 0.0
        %1028 = vmatpush2.msra.mxu0 0.0
        %1029 = vmatprep.subr.mxu0 0.0
        %1030 = vmatpush2.msra.mxu0 0.0
        %1031 = vmatprep.subr.mxu0 0.0
        %1032 = vmatpush2.msra.mxu0 0.0
        %1033 = vmatprep.subr.mxu0 0.0
        %1034 = vmatpush2.msra.mxu0 0.0
        %1035 = vmatprep.subr.mxu0 0.0
        %1036 = vmatpush2.msra.mxu0 0.0
        %1037 = vmatprep.subr.mxu0 0.0
        %1038 = vmatpush2.msra.mxu0 0.0
        %1039 = vmatprep.subr.mxu0 0.0
        %1040 = vmatpush2.msra.mxu0 0.0
        %1041 = vmatprep.subr.mxu0 0.0
        %1042 = vmatpush2.msra.mxu0 0.0
        %1043 = vmatprep.subr.mxu0 0.0
        %1044 = vmatpush2.msra.mxu0 0.0
        %1045 = vmatprep.subr.mxu0 0.0
        %1046 = vmatpush2.msra.mxu0 0.0
        %1047 = vmatprep.subr.mxu0 0.0
        %1048 = vmatpush2.msra.mxu0 0.0
        %1049 = vmatprep.subr.mxu0 0.0
        %1050 = vmatpush2.msra.mxu0 0.0
        %1051 = vmatprep.subr.mxu0 0.0
        %1052 = vmatpush2.msra.mxu0 0.0
        %1053 = vmatprep.subr.mxu0 0.0
        %1054 = vmatpush2.msra.mxu0 0.0
        %1055 = vmatprep.mubr.f32.mxu0 0.0
        %1056 = vmatmul.mubr.f32.gmra.mxu0 %v412
        %v1057 = vpop.f32.mrf.mxu0
        %v1058 = vadd.f32 %v990, %v1057
        %v1059 = vpop.f32.mrf.mxu0
        %1060 = vdwg.mxu0
        %v1061 = vmul.f32 %v1058, %v481
        %v1063 = vsel %vm410, %v1061, 0
        %1065 = vmatprep.subr.mxu0 0.0
        %1066 = vmatpush1.msra.mxu0 0.0
        %1067 = vmatprep.subr.mxu0 0.0
        %1068 = vmatpush1.msra.mxu0 0.0
        %1069 = vmatprep.subr.mxu0 0.0
        %1070 = vmatpush1.msra.mxu0 0.0
        %1071 = vmatprep.subr.mxu0 0.0
        %1072 = vmatpush1.msra.mxu0 0.0
        %1073 = vmatprep.subr.mxu0 0.0
        %1074 = vmatpush1.msra.mxu0 0.0
        %1075 = vmatprep.subr.mxu0 0.0
        %1076 = vmatpush1.msra.mxu0 0.0
        %1077 = vmatprep.subr.mxu0 0.0
        %1078 = vmatpush1.msra.mxu0 0.0
        %1079 = vmatprep.subr.mxu0 0.0
        %1080 = vmatpush1.msra.mxu0 0.0
        %1081 = vmatprep.subr.mxu0 0.0
        %1082 = vmatpush1.msra.mxu0 0.0
        %1083 = vmatprep.subr.mxu0 0.0
        %1084 = vmatpush1.msra.mxu0 0.0
        %1085 = vmatprep.subr.mxu0 0.0
        %1086 = vmatpush1.msra.mxu0 0.0
        %1087 = vmatprep.subr.mxu0 0.0
        %1088 = vmatpush1.msra.mxu0 0.0
        %1089 = vmatprep.subr.mxu0 0.0
        %1090 = vmatpush1.msra.mxu0 %v353
        %1091 = vmatprep.subr.mxu0 0.0
        %1092 = vmatpush1.msra.mxu0 %v352
        %1093 = vmatprep.subr.mxu0 0.0
        %1094 = vmatpush1.msra.mxu0 %v351
        %1095 = vmatprep.subr.mxu0 0.0
        %1096 = vmatpush1.msra.mxu0 %v350
        %1097 = vmatprep.subr.mxu0 0.0
        %1098 = vmatpush2.msra.mxu0 0.0
        %1099 = vmatprep.subr.mxu0 0.0
        %1100 = vmatpush2.msra.mxu0 0.0
        %1101 = vmatprep.subr.mxu0 0.0
        %1102 = vmatpush2.msra.mxu0 0.0
        %1103 = vmatprep.subr.mxu0 0.0
        %1104 = vmatpush2.msra.mxu0 0.0
        %1105 = vmatprep.subr.mxu0 0.0
        %1106 = vmatpush2.msra.mxu0 0.0
        %1107 = vmatprep.subr.mxu0 0.0
        %1108 = vmatpush2.msra.mxu0 0.0
        %1109 = vmatprep.subr.mxu0 0.0
        %1110 = vmatpush2.msra.mxu0 0.0
        %1111 = vmatprep.subr.mxu0 0.0
        %1112 = vmatpush2.msra.mxu0 0.0
        %1113 = vmatprep.subr.mxu0 0.0
        %1114 = vmatpush2.msra.mxu0 0.0
        %1115 = vmatprep.subr.mxu0 0.0
        %1116 = vmatpush2.msra.mxu0 0.0
        %1117 = vmatprep.subr.mxu0 0.0
        %1118 = vmatpush2.msra.mxu0 0.0
        %1119 = vmatprep.subr.mxu0 0.0
        %1120 = vmatpush2.msra.mxu0 0.0
        %1121 = vmatprep.subr.mxu0 0.0
        %1122 = vmatpush2.msra.mxu0 0.0
        %1123 = vmatprep.subr.mxu0 0.0
        %1124 = vmatpush2.msra.mxu0 0.0
        %1125 = vmatprep.subr.mxu0 0.0
        %1126 = vmatpush2.msra.mxu0 0.0
        %1127 = vmatprep.subr.mxu0 0.0
        %1128 = vmatpush2.msra.mxu0 0.0
        %1129 = vmatprep.mubr.f32.mxu0 0.0
        %1130 = vmatmul.mubr.f32.gmra.mxu0 %v1063
        %v1131 = vpop.f32.mrf.mxu0
        %v1132 = vadd.f32 0.0, %v1131
        %v1133 = vpop.f32.mrf.mxu0
        %1134 = vdwg.mxu0
        %v1135 = vmul.f32 %v1132, 0.35355338
        %v1136 = vmul.f32 %v1058, %v554
        %v1138 = vsel %vm410, %v1136, 0
        %1140 = vmatprep.subr.mxu0 0.0
        %1141 = vmatpush1.msra.mxu0 0.0
        %1142 = vmatprep.subr.mxu0 0.0
        %1143 = vmatpush1.msra.mxu0 0.0
        %1144 = vmatprep.subr.mxu0 0.0
        %1145 = vmatpush1.msra.mxu0 0.0
        %1146 = vmatprep.subr.mxu0 0.0
        %1147 = vmatpush1.msra.mxu0 0.0
        %1148 = vmatprep.subr.mxu0 0.0
        %1149 = vmatpush1.msra.mxu0 0.0
        %1150 = vmatprep.subr.mxu0 0.0
        %1151 = vmatpush1.msra.mxu0 0.0
        %1152 = vmatprep.subr.mxu0 0.0
        %1153 = vmatpush1.msra.mxu0 0.0
        %1154 = vmatprep.subr.mxu0 0.0
        %1155 = vmatpush1.msra.mxu0 0.0
        %1156 = vmatprep.subr.mxu0 0.0
        %1157 = vmatpush1.msra.mxu0 0.0
        %1158 = vmatprep.subr.mxu0 0.0
        %1159 = vmatpush1.msra.mxu0 0.0
        %1160 = vmatprep.subr.mxu0 0.0
        %1161 = vmatpush1.msra.mxu0 0.0
        %1162 = vmatprep.subr.mxu0 0.0
        %1163 = vmatpush1.msra.mxu0 0.0
        %1164 = vmatprep.subr.mxu0 0.0
        %1165 = vmatpush1.msra.mxu0 %v353
        %1166 = vmatprep.subr.mxu0 0.0
        %1167 = vmatpush1.msra.mxu0 %v352
        %1168 = vmatprep.subr.mxu0 0.0
        %1169 = vmatpush1.msra.mxu0 %v351
        %1170 = vmatprep.subr.mxu0 0.0
        %1171 = vmatpush1.msra.mxu0 %v350
        %1172 = vmatprep.subr.mxu0 0.0
        %1173 = vmatpush2.msra.mxu0 0.0
        %1174 = vmatprep.subr.mxu0 0.0
        %1175 = vmatpush2.msra.mxu0 0.0
        %1176 = vmatprep.subr.mxu0 0.0
        %1177 = vmatpush2.msra.mxu0 0.0
        %1178 = vmatprep.subr.mxu0 0.0
        %1179 = vmatpush2.msra.mxu0 0.0
        %1180 = vmatprep.subr.mxu0 0.0
        %1181 = vmatpush2.msra.mxu0 0.0
        %1182 = vmatprep.subr.mxu0 0.0
        %1183 = vmatpush2.msra.mxu0 0.0
        %1184 = vmatprep.subr.mxu0 0.0
        %1185 = vmatpush2.msra.mxu0 0.0
        %1186 = vmatprep.subr.mxu0 0.0
        %1187 = vmatpush2.msra.mxu0 0.0
        %1188 = vmatprep.subr.mxu0 0.0
        %1189 = vmatpush2.msra.mxu0 0.0
        %1190 = vmatprep.subr.mxu0 0.0
        %1191 = vmatpush2.msra.mxu0 0.0
        %1192 = vmatprep.subr.mxu0 0.0
        %1193 = vmatpush2.msra.mxu0 0.0
        %1194 = vmatprep.subr.mxu0 0.0
        %1195 = vmatpush2.msra.mxu0 0.0
        %1196 = vmatprep.subr.mxu0 0.0
        %1197 = vmatpush2.msra.mxu0 0.0
        %1198 = vmatprep.subr.mxu0 0.0
        %1199 = vmatpush2.msra.mxu0 0.0
        %1200 = vmatprep.subr.mxu0 0.0
        %1201 = vmatpush2.msra.mxu0 0.0
        %1202 = vmatprep.subr.mxu0 0.0
        %1203 = vmatpush2.msra.mxu0 0.0
        %1204 = vmatprep.mubr.f32.mxu0 0.0
        %1205 = vmatmul.mubr.f32.gmra.mxu0 %v1138
        %v1206 = vpop.f32.mrf.mxu0
        %v1207 = vadd.f32 0.0, %v1206
        %v1208 = vpop.f32.mrf.mxu0
        %1209 = vdwg.mxu0
        %v1210 = vmul.f32 %v1207, 0.35355338
        %v1211 = vmul.f32 %v1058, %v627
        %v1213 = vsel %vm410, %v1211, 0
        %1215 = vmatprep.subr.mxu0 0.0
        %1216 = vmatpush1.msra.mxu0 0.0
        %1217 = vmatprep.subr.mxu0 0.0
        %1218 = vmatpush1.msra.mxu0 0.0
        %1219 = vmatprep.subr.mxu0 0.0
        %1220 = vmatpush1.msra.mxu0 0.0
        %1221 = vmatprep.subr.mxu0 0.0
        %1222 = vmatpush1.msra.mxu0 0.0
        %1223 = vmatprep.subr.mxu0 0.0
        %1224 = vmatpush1.msra.mxu0 0.0
        %1225 = vmatprep.subr.mxu0 0.0
        %1226 = vmatpush1.msra.mxu0 0.0
        %1227 = vmatprep.subr.mxu0 0.0
        %1228 = vmatpush1.msra.mxu0 0.0
        %1229 = vmatprep.subr.mxu0 0.0
        %1230 = vmatpush1.msra.mxu0 0.0
        %1231 = vmatprep.subr.mxu0 0.0
        %1232 = vmatpush1.msra.mxu0 0.0
        %1233 = vmatprep.subr.mxu0 0.0
        %1234 = vmatpush1.msra.mxu0 0.0
        %1235 = vmatprep.subr.mxu0 0.0
        %1236 = vmatpush1.msra.mxu0 0.0
        %1237 = vmatprep.subr.mxu0 0.0
        %1238 = vmatpush1.msra.mxu0 0.0
        %1239 = vmatprep.subr.mxu0 0.0
        %1240 = vmatpush1.msra.mxu0 %v353
        %1241 = vmatprep.subr.mxu0 0.0
        %1242 = vmatpush1.msra.mxu0 %v352
        %1243 = vmatprep.subr.mxu0 0.0
        %1244 = vmatpush1.msra.mxu0 %v351
        %1245 = vmatprep.subr.mxu0 0.0
        %1246 = vmatpush1.msra.mxu0 %v350
        %1247 = vmatprep.subr.mxu0 0.0
        %1248 = vmatpush2.msra.mxu0 0.0
        %1249 = vmatprep.subr.mxu0 0.0
        %1250 = vmatpush2.msra.mxu0 0.0
        %1251 = vmatprep.subr.mxu0 0.0
        %1252 = vmatpush2.msra.mxu0 0.0
        %1253 = vmatprep.subr.mxu0 0.0
        %1254 = vmatpush2.msra.mxu0 0.0
        %1255 = vmatprep.subr.mxu0 0.0
        %1256 = vmatpush2.msra.mxu0 0.0
        %1257 = vmatprep.subr.mxu0 0.0
        %1258 = vmatpush2.msra.mxu0 0.0
        %1259 = vmatprep.subr.mxu0 0.0
        %1260 = vmatpush2.msra.mxu0 0.0
        %1261 = vmatprep.subr.mxu0 0.0
        %1262 = vmatpush2.msra.mxu0 0.0
        %1263 = vmatprep.subr.mxu0 0.0
        %1264 = vmatpush2.msra.mxu0 0.0
        %1265 = vmatprep.subr.mxu0 0.0
        %1266 = vmatpush2.msra.mxu0 0.0
        %1267 = vmatprep.subr.mxu0 0.0
        %1268 = vmatpush2.msra.mxu0 0.0
        %1269 = vmatprep.subr.mxu0 0.0
        %1270 = vmatpush2.msra.mxu0 0.0
        %1271 = vmatprep.subr.mxu0 0.0
        %1272 = vmatpush2.msra.mxu0 0.0
        %1273 = vmatprep.subr.mxu0 0.0
        %1274 = vmatpush2.msra.mxu0 0.0
        %1275 = vmatprep.subr.mxu0 0.0
        %1276 = vmatpush2.msra.mxu0 0.0
        %1277 = vmatprep.subr.mxu0 0.0
        %1278 = vmatpush2.msra.mxu0 0.0
        %1279 = vmatprep.mubr.f32.mxu0 0.0
        %1280 = vmatmul.mubr.f32.gmra.mxu0 %v1213
        %v1281 = vpop.f32.mrf.mxu0
        %v1282 = vadd.f32 0.0, %v1281
        %v1283 = vpop.f32.mrf.mxu0
        %1284 = vdwg.mxu0
        %v1285 = vmul.f32 %v1282, 0.35355338
        %v1286 = vmul.f32 %v1058, %v700
        %v1288 = vsel %vm410, %v1286, 0
        %1290 = vmatprep.subr.mxu0 0.0
        %1291 = vmatpush1.msra.mxu0 0.0
        %1292 = vmatprep.subr.mxu0 0.0
        %1293 = vmatpush1.msra.mxu0 0.0
        %1294 = vmatprep.subr.mxu0 0.0
        %1295 = vmatpush1.msra.mxu0 0.0
        %1296 = vmatprep.subr.mxu0 0.0
        %1297 = vmatpush1.msra.mxu0 0.0
        %1298 = vmatprep.subr.mxu0 0.0
        %1299 = vmatpush1.msra.mxu0 0.0
        %1300 = vmatprep.subr.mxu0 0.0
        %1301 = vmatpush1.msra.mxu0 0.0
        %1302 = vmatprep.subr.mxu0 0.0
        %1303 = vmatpush1.msra.mxu0 0.0
        %1304 = vmatprep.subr.mxu0 0.0
        %1305 = vmatpush1.msra.mxu0 0.0
        %1306 = vmatprep.subr.mxu0 0.0
        %1307 = vmatpush1.msra.mxu0 0.0
        %1308 = vmatprep.subr.mxu0 0.0
        %1309 = vmatpush1.msra.mxu0 0.0
        %1310 = vmatprep.subr.mxu0 0.0
        %1311 = vmatpush1.msra.mxu0 0.0
        %1312 = vmatprep.subr.mxu0 0.0
        %1313 = vmatpush1.msra.mxu0 0.0
        %1314 = vmatprep.subr.mxu0 0.0
        %1315 = vmatpush1.msra.mxu0 %v353
        %1316 = vmatprep.subr.mxu0 0.0
        %1317 = vmatpush1.msra.mxu0 %v352
        %1318 = vmatprep.subr.mxu0 0.0
        %1319 = vmatpush1.msra.mxu0 %v351
        %1320 = vmatprep.subr.mxu0 0.0
        %1321 = vmatpush1.msra.mxu0 %v350
        %1322 = vmatprep.subr.mxu0 0.0
        %1323 = vmatpush2.msra.mxu0 0.0
        %1324 = vmatprep.subr.mxu0 0.0
        %1325 = vmatpush2.msra.mxu0 0.0
        %1326 = vmatprep.subr.mxu0 0.0
        %1327 = vmatpush2.msra.mxu0 0.0
        %1328 = vmatprep.subr.mxu0 0.0
        %1329 = vmatpush2.msra.mxu0 0.0
        %1330 = vmatprep.subr.mxu0 0.0
        %1331 = vmatpush2.msra.mxu0 0.0
        %1332 = vmatprep.subr.mxu0 0.0
        %1333 = vmatpush2.msra.mxu0 0.0
        %1334 = vmatprep.subr.mxu0 0.0
        %1335 = vmatpush2.msra.mxu0 0.0
        %1336 = vmatprep.subr.mxu0 0.0
        %1337 = vmatpush2.msra.mxu0 0.0
        %1338 = vmatprep.subr.mxu0 0.0
        %1339 = vmatpush2.msra.mxu0 0.0
        %1340 = vmatprep.subr.mxu0 0.0
        %1341 = vmatpush2.msra.mxu0 0.0
        %1342 = vmatprep.subr.mxu0 0.0
        %1343 = vmatpush2.msra.mxu0 0.0
        %1344 = vmatprep.subr.mxu0 0.0
        %1345 = vmatpush2.msra.mxu0 0.0
        %1346 = vmatprep.subr.mxu0 0.0
        %1347 = vmatpush2.msra.mxu0 0.0
        %1348 = vmatprep.subr.mxu0 0.0
        %1349 = vmatpush2.msra.mxu0 0.0
        %1350 = vmatprep.subr.mxu0 0.0
        %1351 = vmatpush2.msra.mxu0 0.0
        %1352 = vmatprep.subr.mxu0 0.0
        %1353 = vmatpush2.msra.mxu0 0.0
        %1354 = vmatprep.mubr.f32.mxu0 0.0
        %1355 = vmatmul.mubr.f32.gmra.mxu0 %v1288
        %v1356 = vpop.f32.mrf.mxu0
        %v1357 = vadd.f32 0.0, %v1356
        %v1358 = vpop.f32.mrf.mxu0
        %1359 = vdwg.mxu0
        %v1360 = vmul.f32 %v1357, 0.35355338
        %v1361 = vmax.f32 %v1135, %v1210
        %v1362 = vmax.f32 %v1361, %v1285
        %v1363 = vmax.f32 %v1362, %v1360
        %v1364 = vsub.f32 %v1135, %v1363
        %v1365 = vmul.f32 %v1364, 1.442695
        %v1366 = vpow.pop %v1365
        %v1367 = vsub.f32 %v1210, %v1363
        %v1368 = vmul.f32 %v1367, 1.442695
        %v1369 = vpow.pop %v1368
        %v1370 = vsub.f32 %v1285, %v1363
        %v1371 = vmul.f32 %v1370, 1.442695
        %v1372 = vpow.pop %v1371
        %v1373 = vsub.f32 %v1360, %v1363
        %v1374 = vmul.f32 %v1373, 1.442695
        %v1375 = vpow.pop %v1374
        %v1376 = vadd.f32 %v1366, %v1369
        %v1377 = vadd.f32 %v1376, %v1372
        %v1378 = vadd.f32 %v1377, %v1375
        %v1379 = vrcp.pop %v1378
        %v1380 = vmul.f32 %v1366, %v1379
        %vm1381 = vcmask 31744
        %v1383 = vsel %vm1381, %v1380, 0
        %vm1385 = vcmask 1043456
        %v1387 = vsel %vm1385, %v354, 0
        %1389 = vmatprep.subr.mxu0 0.0
        %1390 = vmatpush1.msra.mxu0 0.0
        %1391 = vmatprep.subr.mxu0 0.0
        %1392 = vmatpush1.msra.mxu0 0.0
        %1393 = vmatprep.subr.mxu0 0.0
        %1394 = vmatpush1.msra.mxu0 0.0
        %1395 = vmatprep.subr.mxu0 0.0
        %1396 = vmatpush1.msra.mxu0 0.0
        %1397 = vmatprep.subr.mxu0 0.0
        %1398 = vmatpush1.msra.mxu0 0.0
        %1399 = vmatprep.subr.mxu0 0.0
        %1400 = vmatpush1.msra.mxu0 0.0
        %1401 = vmatprep.subr.mxu0 0.0
        %1402 = vmatpush1.msra.mxu0 0.0
        %1403 = vmatprep.subr.mxu0 0.0
        %1404 = vmatpush1.msra.mxu0 0.0
        %1405 = vmatprep.subr.mxu0 0.0
        %1406 = vmatpush1.msra.mxu0 0.0
        %1407 = vmatprep.subr.mxu0 0.0
        %1408 = vmatpush1.msra.mxu0 0.0
        %1409 = vmatprep.subr.mxu0 0.0
        %1410 = vmatpush1.msra.mxu0 0.0
        %1411 = vmatprep.subr.mxu0 0.0
        %1412 = vmatpush1.msra.mxu0 0.0
        %1413 = vmatprep.subr.mxu0 0.0
        %1414 = vmatpush1.msra.mxu0 0.0
        %1415 = vmatprep.subr.mxu0 0.0
        %1416 = vmatpush1.msra.mxu0 0.0
        %1417 = vmatprep.subr.mxu0 0.0
        %1418 = vmatpush1.msra.mxu0 0.0
        %1419 = vmatprep.subr.mxu0 0.0
        %1420 = vmatpush1.msra.mxu0 %v1387
        %1421 = vmatprep.subr.mxu0 0.0
        %1422 = vmatpush2.msra.mxu0 0.0
        %1423 = vmatprep.subr.mxu0 0.0
        %1424 = vmatpush2.msra.mxu0 0.0
        %1425 = vmatprep.subr.mxu0 0.0
        %1426 = vmatpush2.msra.mxu0 0.0
        %1427 = vmatprep.subr.mxu0 0.0
        %1428 = vmatpush2.msra.mxu0 0.0
        %1429 = vmatprep.subr.mxu0 0.0
        %1430 = vmatpush2.msra.mxu0 0.0
        %1431 = vmatprep.subr.mxu0 0.0
        %1432 = vmatpush2.msra.mxu0 0.0
        %1433 = vmatprep.subr.mxu0 0.0
        %1434 = vmatpush2.msra.mxu0 0.0
        %1435 = vmatprep.subr.mxu0 0.0
        %1436 = vmatpush2.msra.mxu0 0.0
        %1437 = vmatprep.subr.mxu0 0.0
        %1438 = vmatpush2.msra.mxu0 0.0
        %1439 = vmatprep.subr.mxu0 0.0
        %1440 = vmatpush2.msra.mxu0 0.0
        %1441 = vmatprep.subr.mxu0 0.0
        %1442 = vmatpush2.msra.mxu0 0.0
        %1443 = vmatprep.subr.mxu0 0.0
        %1444 = vmatpush2.msra.mxu0 0.0
        %1445 = vmatprep.subr.mxu0 0.0
        %1446 = vmatpush2.msra.mxu0 0.0
        %1447 = vmatprep.subr.mxu0 0.0
        %1448 = vmatpush2.msra.mxu0 0.0
        %1449 = vmatprep.subr.mxu0 0.0
        %1450 = vmatpush2.msra.mxu0 0.0
        %1451 = vmatprep.subr.mxu0 0.0
        %1452 = vmatpush2.msra.mxu0 0.0
        %1453 = vmatprep.mubr.f32.mxu0 0.0
        %1454 = vmatmul.mubr.f32.gmra.mxu0 %v1383
        %v1455 = vpop.f32.mrf.mxu0
        %v1456 = vadd.f32 0.0, %v1455
        %v1457 = vpop.f32.mrf.mxu0
        %1458 = vdwg.mxu0
        %v1459 = vmul.f32 %v1456, %v774
        %v1460 = vadd.f32 %v1459, 0.0
        %v1461 = vmul.f32 %v1369, %v1379
        %v1463 = vsel %vm1381, %v1461, 0
        %1465 = vmatprep.subr.mxu0 0.0
        %1466 = vmatpush1.msra.mxu0 0.0
        %1467 = vmatprep.subr.mxu0 0.0
        %1468 = vmatpush1.msra.mxu0 0.0
        %1469 = vmatprep.subr.mxu0 0.0
        %1470 = vmatpush1.msra.mxu0 0.0
        %1471 = vmatprep.subr.mxu0 0.0
        %1472 = vmatpush1.msra.mxu0 0.0
        %1473 = vmatprep.subr.mxu0 0.0
        %1474 = vmatpush1.msra.mxu0 0.0
        %1475 = vmatprep.subr.mxu0 0.0
        %1476 = vmatpush1.msra.mxu0 0.0
        %1477 = vmatprep.subr.mxu0 0.0
        %1478 = vmatpush1.msra.mxu0 0.0
        %1479 = vmatprep.subr.mxu0 0.0
        %1480 = vmatpush1.msra.mxu0 0.0
        %1481 = vmatprep.subr.mxu0 0.0
        %1482 = vmatpush1.msra.mxu0 0.0
        %1483 = vmatprep.subr.mxu0 0.0
        %1484 = vmatpush1.msra.mxu0 0.0
        %1485 = vmatprep.subr.mxu0 0.0
        %1486 = vmatpush1.msra.mxu0 0.0
        %1487 = vmatprep.subr.mxu0 0.0
        %1488 = vmatpush1.msra.mxu0 0.0
        %1489 = vmatprep.subr.mxu0 0.0
        %1490 = vmatpush1.msra.mxu0 0.0
        %1491 = vmatprep.subr.mxu0 0.0
        %1492 = vmatpush1.msra.mxu0 0.0
        %1493 = vmatprep.subr.mxu0 0.0
        %1494 = vmatpush1.msra.mxu0 0.0
        %1495 = vmatprep.subr.mxu0 0.0
        %1496 = vmatpush1.msra.mxu0 %v1387
        %1497 = vmatprep.subr.mxu0 0.0
        %1498 = vmatpush2.msra.mxu0 0.0
        %1499 = vmatprep.subr.mxu0 0.0
        %1500 = vmatpush2.msra.mxu0 0.0
        %1501 = vmatprep.subr.mxu0 0.0
        %1502 = vmatpush2.msra.mxu0 0.0
        %1503 = vmatprep.subr.mxu0 0.0
        %1504 = vmatpush2.msra.mxu0 0.0
        %1505 = vmatprep.subr.mxu0 0.0
        %1506 = vmatpush2.msra.mxu0 0.0
        %1507 = vmatprep.subr.mxu0 0.0
        %1508 = vmatpush2.msra.mxu0 0.0
        %1509 = vmatprep.subr.mxu0 0.0
        %1510 = vmatpush2.msra.mxu0 0.0
        %1511 = vmatprep.subr.mxu0 0.0
        %1512 = vmatpush2.msra.mxu0 0.0
        %1513 = vmatprep.subr.mxu0 0.0
        %1514 = vmatpush2.msra.mxu0 0.0
        %1515 = vmatprep.subr.mxu0 0.0
        %1516 = vmatpush2.msra.mxu0 0.0
        %1517 = vmatprep.subr.mxu0 0.0
        %1518 = vmatpush2.msra.mxu0 0.0
        %1519 = vmatprep.subr.mxu0 0.0
        %1520 = vmatpush2.msra.mxu0 0.0
        %1521 = vmatprep.subr.mxu0 0.0
        %1522 = vmatpush2.msra.mxu0 0.0
        %1523 = vmatprep.subr.mxu0 0.0
        %1524 = vmatpush2.msra.mxu0 0.0
        %1525 = vmatprep.subr.mxu0 0.0
        %1526 = vmatpush2.msra.mxu0 0.0
        %1527 = vmatprep.subr.mxu0 0.0
        %1528 = vmatpush2.msra.mxu0 0.0
        %1529 = vmatprep.mubr.f32.mxu0 0.0
        %1530 = vmatmul.mubr.f32.gmra.mxu0 %v1463
        %v1531 = vpop.f32.mrf.mxu0
        %v1532 = vadd.f32 0.0, %v1531
        %v1533 = vpop.f32.mrf.mxu0
        %1534 = vdwg.mxu0
        %v1535 = vmul.f32 %v1532, %v844
        %v1536 = vadd.f32 %v1460, %v1535
        %v1537 = vmul.f32 %v1372, %v1379
        %v1539 = vsel %vm1381, %v1537, 0
        %1541 = vmatprep.subr.mxu0 0.0
        %1542 = vmatpush1.msra.mxu0 0.0
        %1543 = vmatprep.subr.mxu0 0.0
        %1544 = vmatpush1.msra.mxu0 0.0
        %1545 = vmatprep.subr.mxu0 0.0
        %1546 = vmatpush1.msra.mxu0 0.0
        %1547 = vmatprep.subr.mxu0 0.0
        %1548 = vmatpush1.msra.mxu0 0.0
        %1549 = vmatprep.subr.mxu0 0.0
        %1550 = vmatpush1.msra.mxu0 0.0
        %1551 = vmatprep.subr.mxu0 0.0
        %1552 = vmatpush1.msra.mxu0 0.0
        %1553 = vmatprep.subr.mxu0 0.0
        %1554 = vmatpush1.msra.mxu0 0.0
        %1555 = vmatprep.subr.mxu0 0.0
        %1556 = vmatpush1.msra.mxu0 0.0
        %1557 = vmatprep.subr.mxu0 0.0
        %1558 = vmatpush1.msra.mxu0 0.0
        %1559 = vmatprep.subr.mxu0 0.0
        %1560 = vmatpush1.msra.mxu0 0.0
        %1561 = vmatprep.subr.mxu0 0.0
        %1562 = vmatpush1.msra.mxu0 0.0
        %1563 = vmatprep.subr.mxu0 0.0
        %1564 = vmatpush1.msra.mxu0 0.0
        %1565 = vmatprep.subr.mxu0 0.0
        %1566 = vmatpush1.msra.mxu0 0.0
        %1567 = vmatprep.subr.mxu0 0.0
        %1568 = vmatpush1.msra.mxu0 0.0
        %1569 = vmatprep.subr.mxu0 0.0
        %1570 = vmatpush1.msra.mxu0 0.0
        %1571 = vmatprep.subr.mxu0 0.0
        %1572 = vmatpush1.msra.mxu0 %v1387
        %1573 = vmatprep.subr.mxu0 0.0
        %1574 = vmatpush2.msra.mxu0 0.0
        %1575 = vmatprep.subr.mxu0 0.0
        %1576 = vmatpush2.msra.mxu0 0.0
        %1577 = vmatprep.subr.mxu0 0.0
        %1578 = vmatpush2.msra.mxu0 0.0
        %1579 = vmatprep.subr.mxu0 0.0
        %1580 = vmatpush2.msra.mxu0 0.0
        %1581 = vmatprep.subr.mxu0 0.0
        %1582 = vmatpush2.msra.mxu0 0.0
        %1583 = vmatprep.subr.mxu0 0.0
        %1584 = vmatpush2.msra.mxu0 0.0
        %1585 = vmatprep.subr.mxu0 0.0
        %1586 = vmatpush2.msra.mxu0 0.0
        %1587 = vmatprep.subr.mxu0 0.0
        %1588 = vmatpush2.msra.mxu0 0.0
        %1589 = vmatprep.subr.mxu0 0.0
        %1590 = vmatpush2.msra.mxu0 0.0
        %1591 = vmatprep.subr.mxu0 0.0
        %1592 = vmatpush2.msra.mxu0 0.0
        %1593 = vmatprep.subr.mxu0 0.0
        %1594 = vmatpush2.msra.mxu0 0.0
        %1595 = vmatprep.subr.mxu0 0.0
        %1596 = vmatpush2.msra.mxu0 0.0
        %1597 = vmatprep.subr.mxu0 0.0
        %1598 = vmatpush2.msra.mxu0 0.0
        %1599 = vmatprep.subr.mxu0 0.0
        %1600 = vmatpush2.msra.mxu0 0.0
        %1601 = vmatprep.subr.mxu0 0.0
        %1602 = vmatpush2.msra.mxu0 0.0
        %1603 = vmatprep.subr.mxu0 0.0
        %1604 = vmatpush2.msra.mxu0 0.0
        %1605 = vmatprep.mubr.f32.mxu0 0.0
        %1606 = vmatmul.mubr.f32.gmra.mxu0 %v1539
        %v1607 = vpop.f32.mrf.mxu0
        %v1608 = vadd.f32 0.0, %v1607
        %v1609 = vpop.f32.mrf.mxu0
        %1610 = vdwg.mxu0
        %v1611 = vmul.f32 %v1608, %v914
        %v1612 = vadd.f32 %v1536, %v1611
        %v1613 = vmul.f32 %v1375, %v1379
        %v1615 = vsel %vm1381, %v1613, 0
        %1617 = vmatprep.subr.mxu0 0.0
        %1618 = vmatpush1.msra.mxu0 0.0
        %1619 = vmatprep.subr.mxu0 0.0
        %1620 = vmatpush1.msra.mxu0 0.0
        %1621 = vmatprep.subr.mxu0 0.0
        %1622 = vmatpush1.msra.mxu0 0.0
        %1623 = vmatprep.subr.mxu0 0.0
        %1624 = vmatpush1.msra.mxu0 0.0
        %1625 = vmatprep.subr.mxu0 0.0
        %1626 = vmatpush1.msra.mxu0 0.0
        %1627 = vmatprep.subr.mxu0 0.0
        %1628 = vmatpush1.msra.mxu0 0.0
        %1629 = vmatprep.subr.mxu0 0.0
        %1630 = vmatpush1.msra.mxu0 0.0
        %1631 = vmatprep.subr.mxu0 0.0
        %1632 = vmatpush1.msra.mxu0 0.0
        %1633 = vmatprep.subr.mxu0 0.0
        %1634 = vmatpush1.msra.mxu0 0.0
        %1635 = vmatprep.subr.mxu0 0.0
        %1636 = vmatpush1.msra.mxu0 0.0
        %1637 = vmatprep.subr.mxu0 0.0
        %1638 = vmatpush1.msra.mxu0 0.0
        %1639 = vmatprep.subr.mxu0 0.0
        %1640 = vmatpush1.msra.mxu0 0.0
        %1641 = vmatprep.subr.mxu0 0.0
        %1642 = vmatpush1.msra.mxu0 0.0
        %1643 = vmatprep.subr.mxu0 0.0
        %1644 = vmatpush1.msra.mxu0 0.0
        %1645 = vmatprep.subr.mxu0 0.0
        %1646 = vmatpush1.msra.mxu0 0.0
        %1647 = vmatprep.subr.mxu0 0.0
        %1648 = vmatpush1.msra.mxu0 %v1387
        %1649 = vmatprep.subr.mxu0 0.0
        %1650 = vmatpush2.msra.mxu0 0.0
        %1651 = vmatprep.subr.mxu0 0.0
        %1652 = vmatpush2.msra.mxu0 0.0
        %1653 = vmatprep.subr.mxu0 0.0
        %1654 = vmatpush2.msra.mxu0 0.0
        %1655 = vmatprep.subr.mxu0 0.0
        %1656 = vmatpush2.msra.mxu0 0.0
        %1657 = vmatprep.subr.mxu0 0.0
        %1658 = vmatpush2.msra.mxu0 0.0
        %1659 = vmatprep.subr.mxu0 0.0
        %1660 = vmatpush2.msra.mxu0 0.0
        %1661 = vmatprep.subr.mxu0 0.0
        %1662 = vmatpush2.msra.mxu0 0.0
        %1663 = vmatprep.subr.mxu0 0.0
        %1664 = vmatpush2.msra.mxu0 0.0
        %1665 = vmatprep.subr.mxu0 0.0
        %1666 = vmatpush2.msra.mxu0 0.0
        %1667 = vmatprep.subr.mxu0 0.0
        %1668 = vmatpush2.msra.mxu0 0.0
        %1669 = vmatprep.subr.mxu0 0.0
        %1670 = vmatpush2.msra.mxu0 0.0
        %1671 = vmatprep.subr.mxu0 0.0
        %1672 = vmatpush2.msra.mxu0 0.0
        %1673 = vmatprep.subr.mxu0 0.0
        %1674 = vmatpush2.msra.mxu0 0.0
        %1675 = vmatprep.subr.mxu0 0.0
        %1676 = vmatpush2.msra.mxu0 0.0
        %1677 = vmatprep.subr.mxu0 0.0
        %1678 = vmatpush2.msra.mxu0 0.0
        %1679 = vmatprep.subr.mxu0 0.0
        %1680 = vmatpush2.msra.mxu0 0.0
        %1681 = vmatprep.mubr.f32.mxu0 0.0
        %1682 = vmatmul.mubr.f32.gmra.mxu0 %v1615
        %v1683 = vpop.f32.mrf.mxu0
        %v1684 = vadd.f32 0.0, %v1683
        %v1685 = vpop.f32.mrf.mxu0
        %1686 = vdwg.mxu0
        %v1687 = vmul.f32 %v1684, %v984
        %v1688 = vadd.f32 %v1612, %v1687
        %v1689 = vlaneseq
        %v1690 = vshrl.u32 %v1689, 7
        %v1691 = vsub.s32 3, %v1690
        %v1692 = vrot.slane %v386, %v1691
        %v1694 = vsel %vm410, %v1688, 0
        %1696 = vmatprep.subr.mxu0 0.0
        %1697 = vmatpush1.msra.mxu0 0.0
        %1698 = vmatprep.subr.mxu0 0.0
        %1699 = vmatpush1.msra.mxu0 0.0
        %1700 = vmatprep.subr.mxu0 0.0
        %1701 = vmatpush1.msra.mxu0 0.0
        %1702 = vmatprep.subr.mxu0 0.0
        %1703 = vmatpush1.msra.mxu0 0.0
        %1704 = vmatprep.subr.mxu0 0.0
        %1705 = vmatpush1.msra.mxu0 0.0
        %1706 = vmatprep.subr.mxu0 0.0
        %1707 = vmatpush1.msra.mxu0 0.0
        %1708 = vmatprep.subr.mxu0 0.0
        %1709 = vmatpush1.msra.mxu0 0.0
        %1710 = vmatprep.subr.mxu0 0.0
        %1711 = vmatpush1.msra.mxu0 0.0
        %1712 = vmatprep.subr.mxu0 0.0
        %1713 = vmatpush1.msra.mxu0 0.0
        %1714 = vmatprep.subr.mxu0 0.0
        %1715 = vmatpush1.msra.mxu0 0.0
        %1716 = vmatprep.subr.mxu0 0.0
        %1717 = vmatpush1.msra.mxu0 0.0
        %1718 = vmatprep.subr.mxu0 0.0
        %1719 = vmatpush1.msra.mxu0 0.0
        %1720 = vmatprep.subr.mxu0 0.0
        %1721 = vmatpush1.msra.mxu0 %v405
        %1722 = vmatprep.subr.mxu0 0.0
        %1723 = vmatpush1.msra.mxu0 %v404
        %1724 = vmatprep.subr.mxu0 0.0
        %1725 = vmatpush1.msra.mxu0 %v403
        %1726 = vmatprep.subr.mxu0 0.0
        %1727 = vmatpush1.msra.mxu0 %v402
        %1728 = vmatprep.subr.mxu0 0.0
        %1729 = vmatpush2.msra.mxu0 0.0
        %1730 = vmatprep.subr.mxu0 0.0
        %1731 = vmatpush2.msra.mxu0 0.0
        %1732 = vmatprep.subr.mxu0 0.0
        %1733 = vmatpush2.msra.mxu0 0.0
        %1734 = vmatprep.subr.mxu0 0.0
        %1735 = vmatpush2.msra.mxu0 0.0
        %1736 = vmatprep.subr.mxu0 0.0
        %1737 = vmatpush2.msra.mxu0 0.0
        %1738 = vmatprep.subr.mxu0 0.0
        %1739 = vmatpush2.msra.mxu0 0.0
        %1740 = vmatprep.subr.mxu0 0.0
        %1741 = vmatpush2.msra.mxu0 0.0
        %1742 = vmatprep.subr.mxu0 0.0
        %1743 = vmatpush2.msra.mxu0 0.0
        %1744 = vmatprep.subr.mxu0 0.0
        %1745 = vmatpush2.msra.mxu0 0.0
        %1746 = vmatprep.subr.mxu0 0.0
        %1747 = vmatpush2.msra.mxu0 0.0
        %1748 = vmatprep.subr.mxu0 0.0
        %1749 = vmatpush2.msra.mxu0 0.0
        %1750 = vmatprep.subr.mxu0 0.0
        %1751 = vmatpush2.msra.mxu0 0.0
        %1752 = vmatprep.subr.mxu0 0.0
        %1753 = vmatpush2.msra.mxu0 0.0
        %1754 = vmatprep.subr.mxu0 0.0
        %1755 = vmatpush2.msra.mxu0 0.0
        %1756 = vmatprep.subr.mxu0 0.0
        %1757 = vmatpush2.msra.mxu0 0.0
        %1758 = vmatprep.subr.mxu0 0.0
        %1759 = vmatpush2.msra.mxu0 0.0
        %1760 = vmatprep.mubr.f32.mxu0 0.0
        %1761 = vmatmul.mubr.f32.gmra.mxu0 %v1694
        %v1762 = vpop.f32.mrf.mxu0
        %v1763 = vadd.f32 %v1692, %v1762
        %v1764 = vpop.f32.mrf.mxu0
        %1765 = vdwg.mxu0
        %1766 = vmatprep.subr.mxu0 0.0
        %1767 = vmatpush1.msra.mxu0 0.0
        %1768 = vmatprep.subr.mxu0 0.0
        %1769 = vmatpush1.msra.mxu0 0.0
        %1770 = vmatprep.subr.mxu0 0.0
        %1771 = vmatpush1.msra.mxu0 0.0
        %1772 = vmatprep.subr.mxu0 0.0
        %1773 = vmatpush1.msra.mxu0 0.0
        %1774 = vmatprep.subr.mxu0 0.0
        %1775 = vmatpush1.msra.mxu0 0.0
        %1776 = vmatprep.subr.mxu0 0.0
        %1777 = vmatpush1.msra.mxu0 0.0
        %1778 = vmatprep.subr.mxu0 0.0
        %1779 = vmatpush1.msra.mxu0 0.0
        %1780 = vmatprep.subr.mxu0 0.0
        %1781 = vmatpush1.msra.mxu0 0.0
        %1782 = vmatprep.subr.mxu0 0.0
        %1783 = vmatpush1.msra.mxu0 0.0
        %1784 = vmatprep.subr.mxu0 0.0
        %1785 = vmatpush1.msra.mxu0 0.0
        %1786 = vmatprep.subr.mxu0 0.0
        %1787 = vmatpush1.msra.mxu0 0.0
        %1788 = vmatprep.subr.mxu0 0.0
        %1789 = vmatpush1.msra.mxu0 0.0
        %1790 = vmatprep.subr.mxu0 0.0
        %1791 = vmatpush1.msra.mxu0 %v390
        %1792 = vmatprep.subr.mxu0 0.0
        %1793 = vmatpush1.msra.mxu0 %v389
        %1794 = vmatprep.subr.mxu0 0.0
        %1795 = vmatpush1.msra.mxu0 %v388
        %1796 = vmatprep.subr.mxu0 0.0
        %1797 = vmatpush1.msra.mxu0 %v387
        %1798 = vmatprep.subr.mxu0 0.0
        %1799 = vmatpush2.msra.mxu0 0.0
        %1800 = vmatprep.subr.mxu0 0.0
        %1801 = vmatpush2.msra.mxu0 0.0
        %1802 = vmatprep.subr.mxu0 0.0
        %1803 = vmatpush2.msra.mxu0 0.0
        %1804 = vmatprep.subr.mxu0 0.0
        %1805 = vmatpush2.msra.mxu0 0.0
        %1806 = vmatprep.subr.mxu0 0.0
        %1807 = vmatpush2.msra.mxu0 0.0
        %1808 = vmatprep.subr.mxu0 0.0
        %1809 = vmatpush2.msra.mxu0 0.0
        %1810 = vmatprep.subr.mxu0 0.0
        %1811 = vmatpush2.msra.mxu0 0.0
        %1812 = vmatprep.subr.mxu0 0.0
        %1813 = vmatpush2.msra.mxu0 0.0
        %1814 = vmatprep.subr.mxu0 0.0
        %1815 = vmatpush2.msra.mxu0 0.0
        %1816 = vmatprep.subr.mxu0 0.0
        %1817 = vmatpush2.msra.mxu0 0.0
        %1818 = vmatprep.subr.mxu0 0.0
        %1819 = vmatpush2.msra.mxu0 0.0
        %1820 = vmatprep.subr.mxu0 0.0
        %1821 = vmatpush2.msra.mxu0 0.0
        %1822 = vmatprep.subr.mxu0 0.0
        %1823 = vmatpush2.msra.mxu0 0.0
        %1824 = vmatprep.subr.mxu0 0.0
        %1825 = vmatpush2.msra.mxu0 0.0
        %1826 = vmatprep.subr.mxu0 0.0
        %1827 = vmatpush2.msra.mxu0 0.0
        %1828 = vmatprep.subr.mxu0 0.0
        %1829 = vmatpush2.msra.mxu0 0.0
        %1830 = vmatprep.mubr.f32.mxu0 0.0
        %1831 = vmatmul.mubr.f32.gmra.mxu0 %v485
        %v1832 = vpop.f32.mrf.mxu0
        %v1833 = vadd.f32 %v990, %v1832
        %v1834 = vpop.f32.mrf.mxu0
        %1835 = vdwg.mxu0
        %v1836 = vmul.f32 %v1833, %v481
        %v1838 = vsel %vm410, %v1836, 0
        %1840 = vmatprep.subr.mxu0 0.0
        %1841 = vmatpush1.msra.mxu0 0.0
        %1842 = vmatprep.subr.mxu0 0.0
        %1843 = vmatpush1.msra.mxu0 0.0
        %1844 = vmatprep.subr.mxu0 0.0
        %1845 = vmatpush1.msra.mxu0 0.0
        %1846 = vmatprep.subr.mxu0 0.0
        %1847 = vmatpush1.msra.mxu0 0.0
        %1848 = vmatprep.subr.mxu0 0.0
        %1849 = vmatpush1.msra.mxu0 0.0
        %1850 = vmatprep.subr.mxu0 0.0
        %1851 = vmatpush1.msra.mxu0 0.0
        %1852 = vmatprep.subr.mxu0 0.0
        %1853 = vmatpush1.msra.mxu0 0.0
        %1854 = vmatprep.subr.mxu0 0.0
        %1855 = vmatpush1.msra.mxu0 0.0
        %1856 = vmatprep.subr.mxu0 0.0
        %1857 = vmatpush1.msra.mxu0 0.0
        %1858 = vmatprep.subr.mxu0 0.0
        %1859 = vmatpush1.msra.mxu0 0.0
        %1860 = vmatprep.subr.mxu0 0.0
        %1861 = vmatpush1.msra.mxu0 0.0
        %1862 = vmatprep.subr.mxu0 0.0
        %1863 = vmatpush1.msra.mxu0 0.0
        %1864 = vmatprep.subr.mxu0 0.0
        %1865 = vmatpush1.msra.mxu0 %v353
        %1866 = vmatprep.subr.mxu0 0.0
        %1867 = vmatpush1.msra.mxu0 %v352
        %1868 = vmatprep.subr.mxu0 0.0
        %1869 = vmatpush1.msra.mxu0 %v351
        %1870 = vmatprep.subr.mxu0 0.0
        %1871 = vmatpush1.msra.mxu0 %v350
        %1872 = vmatprep.subr.mxu0 0.0
        %1873 = vmatpush2.msra.mxu0 0.0
        %1874 = vmatprep.subr.mxu0 0.0
        %1875 = vmatpush2.msra.mxu0 0.0
        %1876 = vmatprep.subr.mxu0 0.0
        %1877 = vmatpush2.msra.mxu0 0.0
        %1878 = vmatprep.subr.mxu0 0.0
        %1879 = vmatpush2.msra.mxu0 0.0
        %1880 = vmatprep.subr.mxu0 0.0
        %1881 = vmatpush2.msra.mxu0 0.0
        %1882 = vmatprep.subr.mxu0 0.0
        %1883 = vmatpush2.msra.mxu0 0.0
        %1884 = vmatprep.subr.mxu0 0.0
        %1885 = vmatpush2.msra.mxu0 0.0
        %1886 = vmatprep.subr.mxu0 0.0
        %1887 = vmatpush2.msra.mxu0 0.0
        %1888 = vmatprep.subr.mxu0 0.0
        %1889 = vmatpush2.msra.mxu0 0.0
        %1890 = vmatprep.subr.mxu0 0.0
        %1891 = vmatpush2.msra.mxu0 0.0
        %1892 = vmatprep.subr.mxu0 0.0
        %1893 = vmatpush2.msra.mxu0 0.0
        %1894 = vmatprep.subr.mxu0 0.0
        %1895 = vmatpush2.msra.mxu0 0.0
        %1896 = vmatprep.subr.mxu0 0.0
        %1897 = vmatpush2.msra.mxu0 0.0
        %1898 = vmatprep.subr.mxu0 0.0
        %1899 = vmatpush2.msra.mxu0 0.0
        %1900 = vmatprep.subr.mxu0 0.0
        %1901 = vmatpush2.msra.mxu0 0.0
        %1902 = vmatprep.subr.mxu0 0.0
        %1903 = vmatpush2.msra.mxu0 0.0
        %1904 = vmatprep.mubr.f32.mxu0 0.0
        %1905 = vmatmul.mubr.f32.gmra.mxu0 %v1838
        %v1906 = vpop.f32.mrf.mxu0
        %v1907 = vadd.f32 0.0, %v1906
        %v1908 = vpop.f32.mrf.mxu0
        %1909 = vdwg.mxu0
        %v1910 = vmul.f32 %v1907, 0.35355338
        %v1911 = vmul.f32 %v1833, %v554
        %v1913 = vsel %vm410, %v1911, 0
        %1915 = vmatprep.subr.mxu0 0.0
        %1916 = vmatpush1.msra.mxu0 0.0
        %1917 = vmatprep.subr.mxu0 0.0
        %1918 = vmatpush1.msra.mxu0 0.0
        %1919 = vmatprep.subr.mxu0 0.0
        %1920 = vmatpush1.msra.mxu0 0.0
        %1921 = vmatprep.subr.mxu0 0.0
        %1922 = vmatpush1.msra.mxu0 0.0
        %1923 = vmatprep.subr.mxu0 0.0
        %1924 = vmatpush1.msra.mxu0 0.0
        %1925 = vmatprep.subr.mxu0 0.0
        %1926 = vmatpush1.msra.mxu0 0.0
        %1927 = vmatprep.subr.mxu0 0.0
        %1928 = vmatpush1.msra.mxu0 0.0
        %1929 = vmatprep.subr.mxu0 0.0
        %1930 = vmatpush1.msra.mxu0 0.0
        %1931 = vmatprep.subr.mxu0 0.0
        %1932 = vmatpush1.msra.mxu0 0.0
        %1933 = vmatprep.subr.mxu0 0.0
        %1934 = vmatpush1.msra.mxu0 0.0
        %1935 = vmatprep.subr.mxu0 0.0
        %1936 = vmatpush1.msra.mxu0 0.0
        %1937 = vmatprep.subr.mxu0 0.0
        %1938 = vmatpush1.msra.mxu0 0.0
        %1939 = vmatprep.subr.mxu0 0.0
        %1940 = vmatpush1.msra.mxu0 %v353
        %1941 = vmatprep.subr.mxu0 0.0
        %1942 = vmatpush1.msra.mxu0 %v352
        %1943 = vmatprep.subr.mxu0 0.0
        %1944 = vmatpush1.msra.mxu0 %v351
        %1945 = vmatprep.subr.mxu0 0.0
        %1946 = vmatpush1.msra.mxu0 %v350
        %1947 = vmatprep.subr.mxu0 0.0
        %1948 = vmatpush2.msra.mxu0 0.0
        %1949 = vmatprep.subr.mxu0 0.0
        %1950 = vmatpush2.msra.mxu0 0.0
        %1951 = vmatprep.subr.mxu0 0.0
        %1952 = vmatpush2.msra.mxu0 0.0
        %1953 = vmatprep.subr.mxu0 0.0
        %1954 = vmatpush2.msra.mxu0 0.0
        %1955 = vmatprep.subr.mxu0 0.0
        %1956 = vmatpush2.msra.mxu0 0.0
        %1957 = vmatprep.subr.mxu0 0.0
        %1958 = vmatpush2.msra.mxu0 0.0
        %1959 = vmatprep.subr.mxu0 0.0
        %1960 = vmatpush2.msra.mxu0 0.0
        %1961 = vmatprep.subr.mxu0 0.0
        %1962 = vmatpush2.msra.mxu0 0.0
        %1963 = vmatprep.subr.mxu0 0.0
        %1964 = vmatpush2.msra.mxu0 0.0
        %1965 = vmatprep.subr.mxu0 0.0
        %1966 = vmatpush2.msra.mxu0 0.0
        %1967 = vmatprep.subr.mxu0 0.0
        %1968 = vmatpush2.msra.mxu0 0.0
        %1969 = vmatprep.subr.mxu0 0.0
        %1970 = vmatpush2.msra.mxu0 0.0
        %1971 = vmatprep.subr.mxu0 0.0
        %1972 = vmatpush2.msra.mxu0 0.0
        %1973 = vmatprep.subr.mxu0 0.0
        %1974 = vmatpush2.msra.mxu0 0.0
        %1975 = vmatprep.subr.mxu0 0.0
        %1976 = vmatpush2.msra.mxu0 0.0
        %1977 = vmatprep.subr.mxu0 0.0
        %1978 = vmatpush2.msra.mxu0 0.0
        %1979 = vmatprep.mubr.f32.mxu0 0.0
        %1980 = vmatmul.mubr.f32.gmra.mxu0 %v1913
        %v1981 = vpop.f32.mrf.mxu0
        %v1982 = vadd.f32 0.0, %v1981
        %v1983 = vpop.f32.mrf.mxu0
        %1984 = vdwg.mxu0
        %v1985 = vmul.f32 %v1982, 0.35355338
        %v1986 = vmul.f32 %v1833, %v627
        %v1988 = vsel %vm410, %v1986, 0
        %1990 = vmatprep.subr.mxu0 0.0
        %1991 = vmatpush1.msra.mxu0 0.0
        %1992 = vmatprep.subr.mxu0 0.0
        %1993 = vmatpush1.msra.mxu0 0.0
        %1994 = vmatprep.subr.mxu0 0.0
        %1995 = vmatpush1.msra.mxu0 0.0
        %1996 = vmatprep.subr.mxu0 0.0
        %1997 = vmatpush1.msra.mxu0 0.0
        %1998 = vmatprep.subr.mxu0 0.0
        %1999 = vmatpush1.msra.mxu0 0.0
        %2000 = vmatprep.subr.mxu0 0.0
        %2001 = vmatpush1.msra.mxu0 0.0
        %2002 = vmatprep.subr.mxu0 0.0
        %2003 = vmatpush1.msra.mxu0 0.0
        %2004 = vmatprep.subr.mxu0 0.0
        %2005 = vmatpush1.msra.mxu0 0.0
        %2006 = vmatprep.subr.mxu0 0.0
        %2007 = vmatpush1.msra.mxu0 0.0
        %2008 = vmatprep.subr.mxu0 0.0
        %2009 = vmatpush1.msra.mxu0 0.0
        %2010 = vmatprep.subr.mxu0 0.0
        %2011 = vmatpush1.msra.mxu0 0.0
        %2012 = vmatprep.subr.mxu0 0.0
        %2013 = vmatpush1.msra.mxu0 0.0
        %2014 = vmatprep.subr.mxu0 0.0
        %2015 = vmatpush1.msra.mxu0 %v353
        %2016 = vmatprep.subr.mxu0 0.0
        %2017 = vmatpush1.msra.mxu0 %v352
        %2018 = vmatprep.subr.mxu0 0.0
        %2019 = vmatpush1.msra.mxu0 %v351
        %2020 = vmatprep.subr.mxu0 0.0
        %2021 = vmatpush1.msra.mxu0 %v350
        %2022 = vmatprep.subr.mxu0 0.0
        %2023 = vmatpush2.msra.mxu0 0.0
        %2024 = vmatprep.subr.mxu0 0.0
        %2025 = vmatpush2.msra.mxu0 0.0
        %2026 = vmatprep.subr.mxu0 0.0
        %2027 = vmatpush2.msra.mxu0 0.0
        %2028 = vmatprep.subr.mxu0 0.0
        %2029 = vmatpush2.msra.mxu0 0.0
        %2030 = vmatprep.subr.mxu0 0.0
        %2031 = vmatpush2.msra.mxu0 0.0
        %2032 = vmatprep.subr.mxu0 0.0
        %2033 = vmatpush2.msra.mxu0 0.0
        %2034 = vmatprep.subr.mxu0 0.0
        %2035 = vmatpush2.msra.mxu0 0.0
        %2036 = vmatprep.subr.mxu0 0.0
        %2037 = vmatpush2.msra.mxu0 0.0
        %2038 = vmatprep.subr.mxu0 0.0
        %2039 = vmatpush2.msra.mxu0 0.0
        %2040 = vmatprep.subr.mxu0 0.0
        %2041 = vmatpush2.msra.mxu0 0.0
        %2042 = vmatprep.subr.mxu0 0.0
        %2043 = vmatpush2.msra.mxu0 0.0
        %2044 = vmatprep.subr.mxu0 0.0
        %2045 = vmatpush2.msra.mxu0 0.0
        %2046 = vmatprep.subr.mxu0 0.0
        %2047 = vmatpush2.msra.mxu0 0.0
        %2048 = vmatprep.subr.mxu0 0.0
        %2049 = vmatpush2.msra.mxu0 0.0
        %2050 = vmatprep.subr.mxu0 0.0
        %2051 = vmatpush2.msra.mxu0 0.0
        %2052 = vmatprep.subr.mxu0 0.0
        %2053 = vmatpush2.msra.mxu0 0.0
        %2054 = vmatprep.mubr.f32.mxu0 0.0
        %2055 = vmatmul.mubr.f32.gmra.mxu0 %v1988
        %v2056 = vpop.f32.mrf.mxu0
        %v2057 = vadd.f32 0.0, %v2056
        %v2058 = vpop.f32.mrf.mxu0
        %2059 = vdwg.mxu0
        %v2060 = vmul.f32 %v2057, 0.35355338
        %v2061 = vmul.f32 %v1833, %v700
        %v2063 = vsel %vm410, %v2061, 0
        %2065 = vmatprep.subr.mxu0 0.0
        %2066 = vmatpush1.msra.mxu0 0.0
        %2067 = vmatprep.subr.mxu0 0.0
        %2068 = vmatpush1.msra.mxu0 0.0
        %2069 = vmatprep.subr.mxu0 0.0
        %2070 = vmatpush1.msra.mxu0 0.0
        %2071 = vmatprep.subr.mxu0 0.0
        %2072 = vmatpush1.msra.mxu0 0.0
        %2073 = vmatprep.subr.mxu0 0.0
        %2074 = vmatpush1.msra.mxu0 0.0
        %2075 = vmatprep.subr.mxu0 0.0
        %2076 = vmatpush1.msra.mxu0 0.0
        %2077 = vmatprep.subr.mxu0 0.0
        %2078 = vmatpush1.msra.mxu0 0.0
        %2079 = vmatprep.subr.mxu0 0.0
        %2080 = vmatpush1.msra.mxu0 0.0
        %2081 = vmatprep.subr.mxu0 0.0
        %2082 = vmatpush1.msra.mxu0 0.0
        %2083 = vmatprep.subr.mxu0 0.0
        %2084 = vmatpush1.msra.mxu0 0.0
        %2085 = vmatprep.subr.mxu0 0.0
        %2086 = vmatpush1.msra.mxu0 0.0
        %2087 = vmatprep.subr.mxu0 0.0
        %2088 = vmatpush1.msra.mxu0 0.0
        %2089 = vmatprep.subr.mxu0 0.0
        %2090 = vmatpush1.msra.mxu0 %v353
        %2091 = vmatprep.subr.mxu0 0.0
        %2092 = vmatpush1.msra.mxu0 %v352
        %2093 = vmatprep.subr.mxu0 0.0
        %2094 = vmatpush1.msra.mxu0 %v351
        %2095 = vmatprep.subr.mxu0 0.0
        %2096 = vmatpush1.msra.mxu0 %v350
        %2097 = vmatprep.subr.mxu0 0.0
        %2098 = vmatpush2.msra.mxu0 0.0
        %2099 = vmatprep.subr.mxu0 0.0
        %2100 = vmatpush2.msra.mxu0 0.0
        %2101 = vmatprep.subr.mxu0 0.0
        %2102 = vmatpush2.msra.mxu0 0.0
        %2103 = vmatprep.subr.mxu0 0.0
        %2104 = vmatpush2.msra.mxu0 0.0
        %2105 = vmatprep.subr.mxu0 0.0
        %2106 = vmatpush2.msra.mxu0 0.0
        %2107 = vmatprep.subr.mxu0 0.0
        %2108 = vmatpush2.msra.mxu0 0.0
        %2109 = vmatprep.subr.mxu0 0.0
        %2110 = vmatpush2.msra.mxu0 0.0
        %2111 = vmatprep.subr.mxu0 0.0
        %2112 = vmatpush2.msra.mxu0 0.0
        %2113 = vmatprep.subr.mxu0 0.0
        %2114 = vmatpush2.msra.mxu0 0.0
        %2115 = vmatprep.subr.mxu0 0.0
        %2116 = vmatpush2.msra.mxu0 0.0
        %2117 = vmatprep.subr.mxu0 0.0
        %2118 = vmatpush2.msra.mxu0 0.0
        %2119 = vmatprep.subr.mxu0 0.0
        %2120 = vmatpush2.msra.mxu0 0.0
        %2121 = vmatprep.subr.mxu0 0.0
        %2122 = vmatpush2.msra.mxu0 0.0
        %2123 = vmatprep.subr.mxu0 0.0
        %2124 = vmatpush2.msra.mxu0 0.0
        %2125 = vmatprep.subr.mxu0 0.0
        %2126 = vmatpush2.msra.mxu0 0.0
        %2127 = vmatprep.subr.mxu0 0.0
        %2128 = vmatpush2.msra.mxu0 0.0
        %2129 = vmatprep.mubr.f32.mxu0 0.0
        %2130 = vmatmul.mubr.f32.gmra.mxu0 %v2063
        %v2131 = vpop.f32.mrf.mxu0
        %v2132 = vadd.f32 0.0, %v2131
        %v2133 = vpop.f32.mrf.mxu0
        %2134 = vdwg.mxu0
        %v2135 = vmul.f32 %v2132, 0.35355338
        %v2136 = vmax.f32 %v1910, %v1985
        %v2137 = vmax.f32 %v2136, %v2060
        %v2138 = vmax.f32 %v2137, %v2135
        %v2139 = vsub.f32 %v1910, %v2138
        %v2140 = vmul.f32 %v2139, 1.442695
        %v2141 = vpow.pop %v2140
        %v2142 = vsub.f32 %v1985, %v2138
        %v2143 = vmul.f32 %v2142, 1.442695
        %v2144 = vpow.pop %v2143
        %v2145 = vsub.f32 %v2060, %v2138
        %v2146 = vmul.f32 %v2145, 1.442695
        %v2147 = vpow.pop %v2146
        %v2148 = vsub.f32 %v2135, %v2138
        %v2149 = vmul.f32 %v2148, 1.442695
        %v2150 = vpow.pop %v2149
        %v2151 = vadd.f32 %v2141, %v2144
        %v2152 = vadd.f32 %v2151, %v2147
        %v2153 = vadd.f32 %v2152, %v2150
        %v2154 = vrcp.pop %v2153
        %v2155 = vmul.f32 %v2141, %v2154
        %v2157 = vsel %vm1381, %v2155, 0
        %2159 = vmatprep.subr.mxu0 0.0
        %2160 = vmatpush1.msra.mxu0 0.0
        %2161 = vmatprep.subr.mxu0 0.0
        %2162 = vmatpush1.msra.mxu0 0.0
        %2163 = vmatprep.subr.mxu0 0.0
        %2164 = vmatpush1.msra.mxu0 0.0
        %2165 = vmatprep.subr.mxu0 0.0
        %2166 = vmatpush1.msra.mxu0 0.0
        %2167 = vmatprep.subr.mxu0 0.0
        %2168 = vmatpush1.msra.mxu0 0.0
        %2169 = vmatprep.subr.mxu0 0.0
        %2170 = vmatpush1.msra.mxu0 0.0
        %2171 = vmatprep.subr.mxu0 0.0
        %2172 = vmatpush1.msra.mxu0 0.0
        %2173 = vmatprep.subr.mxu0 0.0
        %2174 = vmatpush1.msra.mxu0 0.0
        %2175 = vmatprep.subr.mxu0 0.0
        %2176 = vmatpush1.msra.mxu0 0.0
        %2177 = vmatprep.subr.mxu0 0.0
        %2178 = vmatpush1.msra.mxu0 0.0
        %2179 = vmatprep.subr.mxu0 0.0
        %2180 = vmatpush1.msra.mxu0 0.0
        %2181 = vmatprep.subr.mxu0 0.0
        %2182 = vmatpush1.msra.mxu0 0.0
        %2183 = vmatprep.subr.mxu0 0.0
        %2184 = vmatpush1.msra.mxu0 0.0
        %2185 = vmatprep.subr.mxu0 0.0
        %2186 = vmatpush1.msra.mxu0 0.0
        %2187 = vmatprep.subr.mxu0 0.0
        %2188 = vmatpush1.msra.mxu0 0.0
        %2189 = vmatprep.subr.mxu0 0.0
        %2190 = vmatpush1.msra.mxu0 %v1387
        %2191 = vmatprep.subr.mxu0 0.0
        %2192 = vmatpush2.msra.mxu0 0.0
        %2193 = vmatprep.subr.mxu0 0.0
        %2194 = vmatpush2.msra.mxu0 0.0
        %2195 = vmatprep.subr.mxu0 0.0
        %2196 = vmatpush2.msra.mxu0 0.0
        %2197 = vmatprep.subr.mxu0 0.0
        %2198 = vmatpush2.msra.mxu0 0.0
        %2199 = vmatprep.subr.mxu0 0.0
        %2200 = vmatpush2.msra.mxu0 0.0
        %2201 = vmatprep.subr.mxu0 0.0
        %2202 = vmatpush2.msra.mxu0 0.0
        %2203 = vmatprep.subr.mxu0 0.0
        %2204 = vmatpush2.msra.mxu0 0.0
        %2205 = vmatprep.subr.mxu0 0.0
        %2206 = vmatpush2.msra.mxu0 0.0
        %2207 = vmatprep.subr.mxu0 0.0
        %2208 = vmatpush2.msra.mxu0 0.0
        %2209 = vmatprep.subr.mxu0 0.0
        %2210 = vmatpush2.msra.mxu0 0.0
        %2211 = vmatprep.subr.mxu0 0.0
        %2212 = vmatpush2.msra.mxu0 0.0
        %2213 = vmatprep.subr.mxu0 0.0
        %2214 = vmatpush2.msra.mxu0 0.0
        %2215 = vmatprep.subr.mxu0 0.0
        %2216 = vmatpush2.msra.mxu0 0.0
        %2217 = vmatprep.subr.mxu0 0.0
        %2218 = vmatpush2.msra.mxu0 0.0
        %2219 = vmatprep.subr.mxu0 0.0
        %2220 = vmatpush2.msra.mxu0 0.0
        %2221 = vmatprep.subr.mxu0 0.0
        %2222 = vmatpush2.msra.mxu0 0.0
        %2223 = vmatprep.mubr.f32.mxu0 0.0
        %2224 = vmatmul.mubr.f32.gmra.mxu0 %v2157
        %v2225 = vpop.f32.mrf.mxu0
        %v2226 = vadd.f32 0.0, %v2225
        %v2227 = vpop.f32.mrf.mxu0
        %2228 = vdwg.mxu0
        %v2229 = vmul.f32 %v2226, %v774
        %v2230 = vadd.f32 %v2229, 0.0
        %v2231 = vmul.f32 %v2144, %v2154
        %v2233 = vsel %vm1381, %v2231, 0
        %2235 = vmatprep.subr.mxu0 0.0
        %2236 = vmatpush1.msra.mxu0 0.0
        %2237 = vmatprep.subr.mxu0 0.0
        %2238 = vmatpush1.msra.mxu0 0.0
        %2239 = vmatprep.subr.mxu0 0.0
        %2240 = vmatpush1.msra.mxu0 0.0
        %2241 = vmatprep.subr.mxu0 0.0
        %2242 = vmatpush1.msra.mxu0 0.0
        %2243 = vmatprep.subr.mxu0 0.0
        %2244 = vmatpush1.msra.mxu0 0.0
        %2245 = vmatprep.subr.mxu0 0.0
        %2246 = vmatpush1.msra.mxu0 0.0
        %2247 = vmatprep.subr.mxu0 0.0
        %2248 = vmatpush1.msra.mxu0 0.0
        %2249 = vmatprep.subr.mxu0 0.0
        %2250 = vmatpush1.msra.mxu0 0.0
        %2251 = vmatprep.subr.mxu0 0.0
        %2252 = vmatpush1.msra.mxu0 0.0
        %2253 = vmatprep.subr.mxu0 0.0
        %2254 = vmatpush1.msra.mxu0 0.0
        %2255 = vmatprep.subr.mxu0 0.0
        %2256 = vmatpush1.msra.mxu0 0.0
        %2257 = vmatprep.subr.mxu0 0.0
        %2258 = vmatpush1.msra.mxu0 0.0
        %2259 = vmatprep.subr.mxu0 0.0
        %2260 = vmatpush1.msra.mxu0 0.0
        %2261 = vmatprep.subr.mxu0 0.0
        %2262 = vmatpush1.msra.mxu0 0.0
        %2263 = vmatprep.subr.mxu0 0.0
        %2264 = vmatpush1.msra.mxu0 0.0
        %2265 = vmatprep.subr.mxu0 0.0
        %2266 = vmatpush1.msra.mxu0 %v1387
        %2267 = vmatprep.subr.mxu0 0.0
        %2268 = vmatpush2.msra.mxu0 0.0
        %2269 = vmatprep.subr.mxu0 0.0
        %2270 = vmatpush2.msra.mxu0 0.0
        %2271 = vmatprep.subr.mxu0 0.0
        %2272 = vmatpush2.msra.mxu0 0.0
        %2273 = vmatprep.subr.mxu0 0.0
        %2274 = vmatpush2.msra.mxu0 0.0
        %2275 = vmatprep.subr.mxu0 0.0
        %2276 = vmatpush2.msra.mxu0 0.0
        %2277 = vmatprep.subr.mxu0 0.0
        %2278 = vmatpush2.msra.mxu0 0.0
        %2279 = vmatprep.subr.mxu0 0.0
        %2280 = vmatpush2.msra.mxu0 0.0
        %2281 = vmatprep.subr.mxu0 0.0
        %2282 = vmatpush2.msra.mxu0 0.0
        %2283 = vmatprep.subr.mxu0 0.0
        %2284 = vmatpush2.msra.mxu0 0.0
        %2285 = vmatprep.subr.mxu0 0.0
        %2286 = vmatpush2.msra.mxu0 0.0
        %2287 = vmatprep.subr.mxu0 0.0
        %2288 = vmatpush2.msra.mxu0 0.0
        %2289 = vmatprep.subr.mxu0 0.0
        %2290 = vmatpush2.msra.mxu0 0.0
        %2291 = vmatprep.subr.mxu0 0.0
        %2292 = vmatpush2.msra.mxu0 0.0
        %2293 = vmatprep.subr.mxu0 0.0
        %2294 = vmatpush2.msra.mxu0 0.0
        %2295 = vmatprep.subr.mxu0 0.0
        %2296 = vmatpush2.msra.mxu0 0.0
        %2297 = vmatprep.subr.mxu0 0.0
        %2298 = vmatpush2.msra.mxu0 0.0
        %2299 = vmatprep.mubr.f32.mxu0 0.0
        %2300 = vmatmul.mubr.f32.gmra.mxu0 %v2233
        %v2301 = vpop.f32.mrf.mxu0
        %v2302 = vadd.f32 0.0, %v2301
        %v2303 = vpop.f32.mrf.mxu0
        %2304 = vdwg.mxu0
        %v2305 = vmul.f32 %v2302, %v844
        %v2306 = vadd.f32 %v2230, %v2305
        %v2307 = vmul.f32 %v2147, %v2154
        %v2309 = vsel %vm1381, %v2307, 0
        %2311 = vmatprep.subr.mxu0 0.0
        %2312 = vmatpush1.msra.mxu0 0.0
        %2313 = vmatprep.subr.mxu0 0.0
        %2314 = vmatpush1.msra.mxu0 0.0
        %2315 = vmatprep.subr.mxu0 0.0
        %2316 = vmatpush1.msra.mxu0 0.0
        %2317 = vmatprep.subr.mxu0 0.0
        %2318 = vmatpush1.msra.mxu0 0.0
        %2319 = vmatprep.subr.mxu0 0.0
        %2320 = vmatpush1.msra.mxu0 0.0
        %2321 = vmatprep.subr.mxu0 0.0
        %2322 = vmatpush1.msra.mxu0 0.0
        %2323 = vmatprep.subr.mxu0 0.0
        %2324 = vmatpush1.msra.mxu0 0.0
        %2325 = vmatprep.subr.mxu0 0.0
        %2326 = vmatpush1.msra.mxu0 0.0
        %2327 = vmatprep.subr.mxu0 0.0
        %2328 = vmatpush1.msra.mxu0 0.0
        %2329 = vmatprep.subr.mxu0 0.0
        %2330 = vmatpush1.msra.mxu0 0.0
        %2331 = vmatprep.subr.mxu0 0.0
        %2332 = vmatpush1.msra.mxu0 0.0
        %2333 = vmatprep.subr.mxu0 0.0
        %2334 = vmatpush1.msra.mxu0 0.0
        %2335 = vmatprep.subr.mxu0 0.0
        %2336 = vmatpush1.msra.mxu0 0.0
        %2337 = vmatprep.subr.mxu0 0.0
        %2338 = vmatpush1.msra.mxu0 0.0
        %2339 = vmatprep.subr.mxu0 0.0
        %2340 = vmatpush1.msra.mxu0 0.0
        %2341 = vmatprep.subr.mxu0 0.0
        %2342 = vmatpush1.msra.mxu0 %v1387
        %2343 = vmatprep.subr.mxu0 0.0
        %2344 = vmatpush2.msra.mxu0 0.0
        %2345 = vmatprep.subr.mxu0 0.0
        %2346 = vmatpush2.msra.mxu0 0.0
        %2347 = vmatprep.subr.mxu0 0.0
        %2348 = vmatpush2.msra.mxu0 0.0
        %2349 = vmatprep.subr.mxu0 0.0
        %2350 = vmatpush2.msra.mxu0 0.0
        %2351 = vmatprep.subr.mxu0 0.0
        %2352 = vmatpush2.msra.mxu0 0.0
        %2353 = vmatprep.subr.mxu0 0.0
        %2354 = vmatpush2.msra.mxu0 0.0
        %2355 = vmatprep.subr.mxu0 0.0
        %2356 = vmatpush2.msra.mxu0 0.0
        %2357 = vmatprep.subr.mxu0 0.0
        %2358 = vmatpush2.msra.mxu0 0.0
        %2359 = vmatprep.subr.mxu0 0.0
        %2360 = vmatpush2.msra.mxu0 0.0
        %2361 = vmatprep.subr.mxu0 0.0
        %2362 = vmatpush2.msra.mxu0 0.0
        %2363 = vmatprep.subr.mxu0 0.0
        %2364 = vmatpush2.msra.mxu0 0.0
        %2365 = vmatprep.subr.mxu0 0.0
        %2366 = vmatpush2.msra.mxu0 0.0
        %2367 = vmatprep.subr.mxu0 0.0
        %2368 = vmatpush2.msra.mxu0 0.0
        %2369 = vmatprep.subr.mxu0 0.0
        %2370 = vmatpush2.msra.mxu0 0.0
        %2371 = vmatprep.subr.mxu0 0.0
        %2372 = vmatpush2.msra.mxu0 0.0
        %2373 = vmatprep.subr.mxu0 0.0
        %2374 = vmatpush2.msra.mxu0 0.0
        %2375 = vmatprep.mubr.f32.mxu0 0.0
        %2376 = vmatmul.mubr.f32.gmra.mxu0 %v2309
        %v2377 = vpop.f32.mrf.mxu0
        %v2378 = vadd.f32 0.0, %v2377
        %v2379 = vpop.f32.mrf.mxu0
        %2380 = vdwg.mxu0
        %v2381 = vmul.f32 %v2378, %v914
        %v2382 = vadd.f32 %v2306, %v2381
        %v2383 = vmul.f32 %v2150, %v2154
        %v2385 = vsel %vm1381, %v2383, 0
        %2387 = vmatprep.subr.mxu0 0.0
        %2388 = vmatpush1.msra.mxu0 0.0
        %2389 = vmatprep.subr.mxu0 0.0
        %2390 = vmatpush1.msra.mxu0 0.0
        %2391 = vmatprep.subr.mxu0 0.0
        %2392 = vmatpush1.msra.mxu0 0.0
        %2393 = vmatprep.subr.mxu0 0.0
        %2394 = vmatpush1.msra.mxu0 0.0
        %2395 = vmatprep.subr.mxu0 0.0
        %2396 = vmatpush1.msra.mxu0 0.0
        %2397 = vmatprep.subr.mxu0 0.0
        %2398 = vmatpush1.msra.mxu0 0.0
        %2399 = vmatprep.subr.mxu0 0.0
        %2400 = vmatpush1.msra.mxu0 0.0
        %2401 = vmatprep.subr.mxu0 0.0
        %2402 = vmatpush1.msra.mxu0 0.0
        %2403 = vmatprep.subr.mxu0 0.0
        %2404 = vmatpush1.msra.mxu0 0.0
        %2405 = vmatprep.subr.mxu0 0.0
        %2406 = vmatpush1.msra.mxu0 0.0
        %2407 = vmatprep.subr.mxu0 0.0
        %2408 = vmatpush1.msra.mxu0 0.0
        %2409 = vmatprep.subr.mxu0 0.0
        %2410 = vmatpush1.msra.mxu0 0.0
        %2411 = vmatprep.subr.mxu0 0.0
        %2412 = vmatpush1.msra.mxu0 0.0
        %2413 = vmatprep.subr.mxu0 0.0
        %2414 = vmatpush1.msra.mxu0 0.0
        %2415 = vmatprep.subr.mxu0 0.0
        %2416 = vmatpush1.msra.mxu0 0.0
        %2417 = vmatprep.subr.mxu0 0.0
        %2418 = vmatpush1.msra.mxu0 %v1387
        %2419 = vmatprep.subr.mxu0 0.0
        %2420 = vmatpush2.msra.mxu0 0.0
        %2421 = vmatprep.subr.mxu0 0.0
        %2422 = vmatpush2.msra.mxu0 0.0
        %2423 = vmatprep.subr.mxu0 0.0
        %2424 = vmatpush2.msra.mxu0 0.0
        %2425 = vmatprep.subr.mxu0 0.0
        %2426 = vmatpush2.msra.mxu0 0.0
        %2427 = vmatprep.subr.mxu0 0.0
        %2428 = vmatpush2.msra.mxu0 0.0
        %2429 = vmatprep.subr.mxu0 0.0
        %2430 = vmatpush2.msra.mxu0 0.0
        %2431 = vmatprep.subr.mxu0 0.0
        %2432 = vmatpush2.msra.mxu0 0.0
        %2433 = vmatprep.subr.mxu0 0.0
        %2434 = vmatpush2.msra.mxu0 0.0
        %2435 = vmatprep.subr.mxu0 0.0
        %2436 = vmatpush2.msra.mxu0 0.0
        %2437 = vmatprep.subr.mxu0 0.0
        %2438 = vmatpush2.msra.mxu0 0.0
        %2439 = vmatprep.subr.mxu0 0.0
        %2440 = vmatpush2.msra.mxu0 0.0
        %2441 = vmatprep.subr.mxu0 0.0
        %2442 = vmatpush2.msra.mxu0 0.0
        %2443 = vmatprep.subr.mxu0 0.0
        %2444 = vmatpush2.msra.mxu0 0.0
        %2445 = vmatprep.subr.mxu0 0.0
        %2446 = vmatpush2.msra.mxu0 0.0
        %2447 = vmatprep.subr.mxu0 0.0
        %2448 = vmatpush2.msra.mxu0 0.0
        %2449 = vmatprep.subr.mxu0 0.0
        %2450 = vmatpush2.msra.mxu0 0.0
        %2451 = vmatprep.mubr.f32.mxu0 0.0
        %2452 = vmatmul.mubr.f32.gmra.mxu0 %v2385
        %v2453 = vpop.f32.mrf.mxu0
        %v2454 = vadd.f32 0.0, %v2453
        %v2455 = vpop.f32.mrf.mxu0
        %2456 = vdwg.mxu0
        %v2457 = vmul.f32 %v2454, %v984
        %v2458 = vadd.f32 %v2382, %v2457
        %v2460 = vsel %vm410, %v2458, 0
        %2462 = vmatprep.subr.mxu0 0.0
        %2463 = vmatpush1.msra.mxu0 0.0
        %2464 = vmatprep.subr.mxu0 0.0
        %2465 = vmatpush1.msra.mxu0 0.0
        %2466 = vmatprep.subr.mxu0 0.0
        %2467 = vmatpush1.msra.mxu0 0.0
        %2468 = vmatprep.subr.mxu0 0.0
        %2469 = vmatpush1.msra.mxu0 0.0
        %2470 = vmatprep.subr.mxu0 0.0
        %2471 = vmatpush1.msra.mxu0 0.0
        %2472 = vmatprep.subr.mxu0 0.0
        %2473 = vmatpush1.msra.mxu0 0.0
        %2474 = vmatprep.subr.mxu0 0.0
        %2475 = vmatpush1.msra.mxu0 0.0
        %2476 = vmatprep.subr.mxu0 0.0
        %2477 = vmatpush1.msra.mxu0 0.0
        %2478 = vmatprep.subr.mxu0 0.0
        %2479 = vmatpush1.msra.mxu0 0.0
        %2480 = vmatprep.subr.mxu0 0.0
        %2481 = vmatpush1.msra.mxu0 0.0
        %2482 = vmatprep.subr.mxu0 0.0
        %2483 = vmatpush1.msra.mxu0 0.0
        %2484 = vmatprep.subr.mxu0 0.0
        %2485 = vmatpush1.msra.mxu0 0.0
        %2486 = vmatprep.subr.mxu0 0.0
        %2487 = vmatpush1.msra.mxu0 %v405
        %2488 = vmatprep.subr.mxu0 0.0
        %2489 = vmatpush1.msra.mxu0 %v404
        %2490 = vmatprep.subr.mxu0 0.0
        %2491 = vmatpush1.msra.mxu0 %v403
        %2492 = vmatprep.subr.mxu0 0.0
        %2493 = vmatpush1.msra.mxu0 %v402
        %2494 = vmatprep.subr.mxu0 0.0
        %2495 = vmatpush2.msra.mxu0 0.0
        %2496 = vmatprep.subr.mxu0 0.0
        %2497 = vmatpush2.msra.mxu0 0.0
        %2498 = vmatprep.subr.mxu0 0.0
        %2499 = vmatpush2.msra.mxu0 0.0
        %2500 = vmatprep.subr.mxu0 0.0
        %2501 = vmatpush2.msra.mxu0 0.0
        %2502 = vmatprep.subr.mxu0 0.0
        %2503 = vmatpush2.msra.mxu0 0.0
        %2504 = vmatprep.subr.mxu0 0.0
        %2505 = vmatpush2.msra.mxu0 0.0
        %2506 = vmatprep.subr.mxu0 0.0
        %2507 = vmatpush2.msra.mxu0 0.0
        %2508 = vmatprep.subr.mxu0 0.0
        %2509 = vmatpush2.msra.mxu0 0.0
        %2510 = vmatprep.subr.mxu0 0.0
        %2511 = vmatpush2.msra.mxu0 0.0
        %2512 = vmatprep.subr.mxu0 0.0
        %2513 = vmatpush2.msra.mxu0 0.0
        %2514 = vmatprep.subr.mxu0 0.0
        %2515 = vmatpush2.msra.mxu0 0.0
        %2516 = vmatprep.subr.mxu0 0.0
        %2517 = vmatpush2.msra.mxu0 0.0
        %2518 = vmatprep.subr.mxu0 0.0
        %2519 = vmatpush2.msra.mxu0 0.0
        %2520 = vmatprep.subr.mxu0 0.0
        %2521 = vmatpush2.msra.mxu0 0.0
        %2522 = vmatprep.subr.mxu0 0.0
        %2523 = vmatpush2.msra.mxu0 0.0
        %2524 = vmatprep.subr.mxu0 0.0
        %2525 = vmatpush2.msra.mxu0 0.0
        %2526 = vmatprep.mubr.f32.mxu0 0.0
        %2527 = vmatmul.mubr.f32.gmra.mxu0 %v2460
        %v2528 = vpop.f32.mrf.mxu0
        %v2529 = vadd.f32 %v1692, %v2528
        %v2530 = vpop.f32.mrf.mxu0
        %2531 = vdwg.mxu0
        %2532 = vmatprep.subr.mxu0 0.0
        %2533 = vmatpush1.msra.mxu0 0.0
        %2534 = vmatprep.subr.mxu0 0.0
        %2535 = vmatpush1.msra.mxu0 0.0
        %2536 = vmatprep.subr.mxu0 0.0
        %2537 = vmatpush1.msra.mxu0 0.0
        %2538 = vmatprep.subr.mxu0 0.0
        %2539 = vmatpush1.msra.mxu0 0.0
        %2540 = vmatprep.subr.mxu0 0.0
        %2541 = vmatpush1.msra.mxu0 0.0
        %2542 = vmatprep.subr.mxu0 0.0
        %2543 = vmatpush1.msra.mxu0 0.0
        %2544 = vmatprep.subr.mxu0 0.0
        %2545 = vmatpush1.msra.mxu0 0.0
        %2546 = vmatprep.subr.mxu0 0.0
        %2547 = vmatpush1.msra.mxu0 0.0
        %2548 = vmatprep.subr.mxu0 0.0
        %2549 = vmatpush1.msra.mxu0 0.0
        %2550 = vmatprep.subr.mxu0 0.0
        %2551 = vmatpush1.msra.mxu0 0.0
        %2552 = vmatprep.subr.mxu0 0.0
        %2553 = vmatpush1.msra.mxu0 0.0
        %2554 = vmatprep.subr.mxu0 0.0
        %2555 = vmatpush1.msra.mxu0 0.0
        %2556 = vmatprep.subr.mxu0 0.0
        %2557 = vmatpush1.msra.mxu0 %v390
        %2558 = vmatprep.subr.mxu0 0.0
        %2559 = vmatpush1.msra.mxu0 %v389
        %2560 = vmatprep.subr.mxu0 0.0
        %2561 = vmatpush1.msra.mxu0 %v388
        %2562 = vmatprep.subr.mxu0 0.0
        %2563 = vmatpush1.msra.mxu0 %v387
        %2564 = vmatprep.subr.mxu0 0.0
        %2565 = vmatpush2.msra.mxu0 0.0
        %2566 = vmatprep.subr.mxu0 0.0
        %2567 = vmatpush2.msra.mxu0 0.0
        %2568 = vmatprep.subr.mxu0 0.0
        %2569 = vmatpush2.msra.mxu0 0.0
        %2570 = vmatprep.subr.mxu0 0.0
        %2571 = vmatpush2.msra.mxu0 0.0
        %2572 = vmatprep.subr.mxu0 0.0
        %2573 = vmatpush2.msra.mxu0 0.0
        %2574 = vmatprep.subr.mxu0 0.0
        %2575 = vmatpush2.msra.mxu0 0.0
        %2576 = vmatprep.subr.mxu0 0.0
        %2577 = vmatpush2.msra.mxu0 0.0
        %2578 = vmatprep.subr.mxu0 0.0
        %2579 = vmatpush2.msra.mxu0 0.0
        %2580 = vmatprep.subr.mxu0 0.0
        %2581 = vmatpush2.msra.mxu0 0.0
        %2582 = vmatprep.subr.mxu0 0.0
        %2583 = vmatpush2.msra.mxu0 0.0
        %2584 = vmatprep.subr.mxu0 0.0
        %2585 = vmatpush2.msra.mxu0 0.0
        %2586 = vmatprep.subr.mxu0 0.0
        %2587 = vmatpush2.msra.mxu0 0.0
        %2588 = vmatprep.subr.mxu0 0.0
        %2589 = vmatpush2.msra.mxu0 0.0
        %2590 = vmatprep.subr.mxu0 0.0
        %2591 = vmatpush2.msra.mxu0 0.0
        %2592 = vmatprep.subr.mxu0 0.0
        %2593 = vmatpush2.msra.mxu0 0.0
        %2594 = vmatprep.subr.mxu0 0.0
        %2595 = vmatpush2.msra.mxu0 0.0
        %2596 = vmatprep.mubr.f32.mxu0 0.0
        %2597 = vmatmul.mubr.f32.gmra.mxu0 %v558
        %v2598 = vpop.f32.mrf.mxu0
        %v2599 = vadd.f32 %v990, %v2598
        %v2600 = vpop.f32.mrf.mxu0
        %2601 = vdwg.mxu0
        %v2602 = vmul.f32 %v2599, %v481
        %v2604 = vsel %vm410, %v2602, 0
        %2606 = vmatprep.subr.mxu0 0.0
        %2607 = vmatpush1.msra.mxu0 0.0
        %2608 = vmatprep.subr.mxu0 0.0
        %2609 = vmatpush1.msra.mxu0 0.0
        %2610 = vmatprep.subr.mxu0 0.0
        %2611 = vmatpush1.msra.mxu0 0.0
        %2612 = vmatprep.subr.mxu0 0.0
        %2613 = vmatpush1.msra.mxu0 0.0
        %2614 = vmatprep.subr.mxu0 0.0
        %2615 = vmatpush1.msra.mxu0 0.0
        %2616 = vmatprep.subr.mxu0 0.0
        %2617 = vmatpush1.msra.mxu0 0.0
        %2618 = vmatprep.subr.mxu0 0.0
        %2619 = vmatpush1.msra.mxu0 0.0
        %2620 = vmatprep.subr.mxu0 0.0
        %2621 = vmatpush1.msra.mxu0 0.0
        %2622 = vmatprep.subr.mxu0 0.0
        %2623 = vmatpush1.msra.mxu0 0.0
        %2624 = vmatprep.subr.mxu0 0.0
        %2625 = vmatpush1.msra.mxu0 0.0
        %2626 = vmatprep.subr.mxu0 0.0
        %2627 = vmatpush1.msra.mxu0 0.0
        %2628 = vmatprep.subr.mxu0 0.0
        %2629 = vmatpush1.msra.mxu0 0.0
        %2630 = vmatprep.subr.mxu0 0.0
        %2631 = vmatpush1.msra.mxu0 %v353
        %2632 = vmatprep.subr.mxu0 0.0
        %2633 = vmatpush1.msra.mxu0 %v352
        %2634 = vmatprep.subr.mxu0 0.0
        %2635 = vmatpush1.msra.mxu0 %v351
        %2636 = vmatprep.subr.mxu0 0.0
        %2637 = vmatpush1.msra.mxu0 %v350
        %2638 = vmatprep.subr.mxu0 0.0
        %2639 = vmatpush2.msra.mxu0 0.0
        %2640 = vmatprep.subr.mxu0 0.0
        %2641 = vmatpush2.msra.mxu0 0.0
        %2642 = vmatprep.subr.mxu0 0.0
        %2643 = vmatpush2.msra.mxu0 0.0
        %2644 = vmatprep.subr.mxu0 0.0
        %2645 = vmatpush2.msra.mxu0 0.0
        %2646 = vmatprep.subr.mxu0 0.0
        %2647 = vmatpush2.msra.mxu0 0.0
        %2648 = vmatprep.subr.mxu0 0.0
        %2649 = vmatpush2.msra.mxu0 0.0
        %2650 = vmatprep.subr.mxu0 0.0
        %2651 = vmatpush2.msra.mxu0 0.0
        %2652 = vmatprep.subr.mxu0 0.0
        %2653 = vmatpush2.msra.mxu0 0.0
        %2654 = vmatprep.subr.mxu0 0.0
        %2655 = vmatpush2.msra.mxu0 0.0
        %2656 = vmatprep.subr.mxu0 0.0
        %2657 = vmatpush2.msra.mxu0 0.0
        %2658 = vmatprep.subr.mxu0 0.0
        %2659 = vmatpush2.msra.mxu0 0.0
        %2660 = vmatprep.subr.mxu0 0.0
        %2661 = vmatpush2.msra.mxu0 0.0
        %2662 = vmatprep.subr.mxu0 0.0
        %2663 = vmatpush2.msra.mxu0 0.0
        %2664 = vmatprep.subr.mxu0 0.0
        %2665 = vmatpush2.msra.mxu0 0.0
        %2666 = vmatprep.subr.mxu0 0.0
        %2667 = vmatpush2.msra.mxu0 0.0
        %2668 = vmatprep.subr.mxu0 0.0
        %2669 = vmatpush2.msra.mxu0 0.0
        %2670 = vmatprep.mubr.f32.mxu0 0.0
        %2671 = vmatmul.mubr.f32.gmra.mxu0 %v2604
        %v2672 = vpop.f32.mrf.mxu0
        %v2673 = vadd.f32 0.0, %v2672
        %v2674 = vpop.f32.mrf.mxu0
        %2675 = vdwg.mxu0
        %v2676 = vmul.f32 %v2673, 0.35355338
        %v2677 = vmul.f32 %v2599, %v554
        %v2679 = vsel %vm410, %v2677, 0
        %2681 = vmatprep.subr.mxu0 0.0
        %2682 = vmatpush1.msra.mxu0 0.0
        %2683 = vmatprep.subr.mxu0 0.0
        %2684 = vmatpush1.msra.mxu0 0.0
        %2685 = vmatprep.subr.mxu0 0.0
        %2686 = vmatpush1.msra.mxu0 0.0
        %2687 = vmatprep.subr.mxu0 0.0
        %2688 = vmatpush1.msra.mxu0 0.0
        %2689 = vmatprep.subr.mxu0 0.0
        %2690 = vmatpush1.msra.mxu0 0.0
        %2691 = vmatprep.subr.mxu0 0.0
        %2692 = vmatpush1.msra.mxu0 0.0
        %2693 = vmatprep.subr.mxu0 0.0
        %2694 = vmatpush1.msra.mxu0 0.0
        %2695 = vmatprep.subr.mxu0 0.0
        %2696 = vmatpush1.msra.mxu0 0.0
        %2697 = vmatprep.subr.mxu0 0.0
        %2698 = vmatpush1.msra.mxu0 0.0
        %2699 = vmatprep.subr.mxu0 0.0
        %2700 = vmatpush1.msra.mxu0 0.0
        %2701 = vmatprep.subr.mxu0 0.0
        %2702 = vmatpush1.msra.mxu0 0.0
        %2703 = vmatprep.subr.mxu0 0.0
        %2704 = vmatpush1.msra.mxu0 0.0
        %2705 = vmatprep.subr.mxu0 0.0
        %2706 = vmatpush1.msra.mxu0 %v353
        %2707 = vmatprep.subr.mxu0 0.0
        %2708 = vmatpush1.msra.mxu0 %v352
        %2709 = vmatprep.subr.mxu0 0.0
        %2710 = vmatpush1.msra.mxu0 %v351
        %2711 = vmatprep.subr.mxu0 0.0
        %2712 = vmatpush1.msra.mxu0 %v350
        %2713 = vmatprep.subr.mxu0 0.0
        %2714 = vmatpush2.msra.mxu0 0.0
        %2715 = vmatprep.subr.mxu0 0.0
        %2716 = vmatpush2.msra.mxu0 0.0
        %2717 = vmatprep.subr.mxu0 0.0
        %2718 = vmatpush2.msra.mxu0 0.0
        %2719 = vmatprep.subr.mxu0 0.0
        %2720 = vmatpush2.msra.mxu0 0.0
        %2721 = vmatprep.subr.mxu0 0.0
        %2722 = vmatpush2.msra.mxu0 0.0
        %2723 = vmatprep.subr.mxu0 0.0
        %2724 = vmatpush2.msra.mxu0 0.0
        %2725 = vmatprep.subr.mxu0 0.0
        %2726 = vmatpush2.msra.mxu0 0.0
        %2727 = vmatprep.subr.mxu0 0.0
        %2728 = vmatpush2.msra.mxu0 0.0
        %2729 = vmatprep.subr.mxu0 0.0
        %2730 = vmatpush2.msra.mxu0 0.0
        %2731 = vmatprep.subr.mxu0 0.0
        %2732 = vmatpush2.msra.mxu0 0.0
        %2733 = vmatprep.subr.mxu0 0.0
        %2734 = vmatpush2.msra.mxu0 0.0
        %2735 = vmatprep.subr.mxu0 0.0
        %2736 = vmatpush2.msra.mxu0 0.0
        %2737 = vmatprep.subr.mxu0 0.0
        %2738 = vmatpush2.msra.mxu0 0.0
        %2739 = vmatprep.subr.mxu0 0.0
        %2740 = vmatpush2.msra.mxu0 0.0
        %2741 = vmatprep.subr.mxu0 0.0
        %2742 = vmatpush2.msra.mxu0 0.0
        %2743 = vmatprep.subr.mxu0 0.0
        %2744 = vmatpush2.msra.mxu0 0.0
        %2745 = vmatprep.mubr.f32.mxu0 0.0
        %2746 = vmatmul.mubr.f32.gmra.mxu0 %v2679
        %v2747 = vpop.f32.mrf.mxu0
        %v2748 = vadd.f32 0.0, %v2747
        %v2749 = vpop.f32.mrf.mxu0
        %2750 = vdwg.mxu0
        %v2751 = vmul.f32 %v2748, 0.35355338
        %v2752 = vmul.f32 %v2599, %v627
        %v2754 = vsel %vm410, %v2752, 0
        %2756 = vmatprep.subr.mxu0 0.0
        %2757 = vmatpush1.msra.mxu0 0.0
        %2758 = vmatprep.subr.mxu0 0.0
        %2759 = vmatpush1.msra.mxu0 0.0
        %2760 = vmatprep.subr.mxu0 0.0
        %2761 = vmatpush1.msra.mxu0 0.0
        %2762 = vmatprep.subr.mxu0 0.0
        %2763 = vmatpush1.msra.mxu0 0.0
        %2764 = vmatprep.subr.mxu0 0.0
        %2765 = vmatpush1.msra.mxu0 0.0
        %2766 = vmatprep.subr.mxu0 0.0
        %2767 = vmatpush1.msra.mxu0 0.0
        %2768 = vmatprep.subr.mxu0 0.0
        %2769 = vmatpush1.msra.mxu0 0.0
        %2770 = vmatprep.subr.mxu0 0.0
        %2771 = vmatpush1.msra.mxu0 0.0
        %2772 = vmatprep.subr.mxu0 0.0
        %2773 = vmatpush1.msra.mxu0 0.0
        %2774 = vmatprep.subr.mxu0 0.0
        %2775 = vmatpush1.msra.mxu0 0.0
        %2776 = vmatprep.subr.mxu0 0.0
        %2777 = vmatpush1.msra.mxu0 0.0
        %2778 = vmatprep.subr.mxu0 0.0
        %2779 = vmatpush1.msra.mxu0 0.0
        %2780 = vmatprep.subr.mxu0 0.0
        %2781 = vmatpush1.msra.mxu0 %v353
        %2782 = vmatprep.subr.mxu0 0.0
        %2783 = vmatpush1.msra.mxu0 %v352
        %2784 = vmatprep.subr.mxu0 0.0
        %2785 = vmatpush1.msra.mxu0 %v351
        %2786 = vmatprep.subr.mxu0 0.0
        %2787 = vmatpush1.msra.mxu0 %v350
        %2788 = vmatprep.subr.mxu0 0.0
        %2789 = vmatpush2.msra.mxu0 0.0
        %2790 = vmatprep.subr.mxu0 0.0
        %2791 = vmatpush2.msra.mxu0 0.0
        %2792 = vmatprep.subr.mxu0 0.0
        %2793 = vmatpush2.msra.mxu0 0.0
        %2794 = vmatprep.subr.mxu0 0.0
        %2795 = vmatpush2.msra.mxu0 0.0
        %2796 = vmatprep.subr.mxu0 0.0
        %2797 = vmatpush2.msra.mxu0 0.0
        %2798 = vmatprep.subr.mxu0 0.0
        %2799 = vmatpush2.msra.mxu0 0.0
        %2800 = vmatprep.subr.mxu0 0.0
        %2801 = vmatpush2.msra.mxu0 0.0
        %2802 = vmatprep.subr.mxu0 0.0
        %2803 = vmatpush2.msra.mxu0 0.0
        %2804 = vmatprep.subr.mxu0 0.0
        %2805 = vmatpush2.msra.mxu0 0.0
        %2806 = vmatprep.subr.mxu0 0.0
        %2807 = vmatpush2.msra.mxu0 0.0
        %2808 = vmatprep.subr.mxu0 0.0
        %2809 = vmatpush2.msra.mxu0 0.0
        %2810 = vmatprep.subr.mxu0 0.0
        %2811 = vmatpush2.msra.mxu0 0.0
        %2812 = vmatprep.subr.mxu0 0.0
        %2813 = vmatpush2.msra.mxu0 0.0
        %2814 = vmatprep.subr.mxu0 0.0
        %2815 = vmatpush2.msra.mxu0 0.0
        %2816 = vmatprep.subr.mxu0 0.0
        %2817 = vmatpush2.msra.mxu0 0.0
        %2818 = vmatprep.subr.mxu0 0.0
        %2819 = vmatpush2.msra.mxu0 0.0
        %2820 = vmatprep.mubr.f32.mxu0 0.0
        %2821 = vmatmul.mubr.f32.gmra.mxu0 %v2754
        %v2822 = vpop.f32.mrf.mxu0
        %v2823 = vadd.f32 0.0, %v2822
        %v2824 = vpop.f32.mrf.mxu0
        %2825 = vdwg.mxu0
        %v2826 = vmul.f32 %v2823, 0.35355338
        %v2827 = vmul.f32 %v2599, %v700
        %v2829 = vsel %vm410, %v2827, 0
        %2831 = vmatprep.subr.mxu0 0.0
        %2832 = vmatpush1.msra.mxu0 0.0
        %2833 = vmatprep.subr.mxu0 0.0
        %2834 = vmatpush1.msra.mxu0 0.0
        %2835 = vmatprep.subr.mxu0 0.0
        %2836 = vmatpush1.msra.mxu0 0.0
        %2837 = vmatprep.subr.mxu0 0.0
        %2838 = vmatpush1.msra.mxu0 0.0
        %2839 = vmatprep.subr.mxu0 0.0
        %2840 = vmatpush1.msra.mxu0 0.0
        %2841 = vmatprep.subr.mxu0 0.0
        %2842 = vmatpush1.msra.mxu0 0.0
        %2843 = vmatprep.subr.mxu0 0.0
        %2844 = vmatpush1.msra.mxu0 0.0
        %2845 = vmatprep.subr.mxu0 0.0
        %2846 = vmatpush1.msra.mxu0 0.0
        %2847 = vmatprep.subr.mxu0 0.0
        %2848 = vmatpush1.msra.mxu0 0.0
        %2849 = vmatprep.subr.mxu0 0.0
        %2850 = vmatpush1.msra.mxu0 0.0
        %2851 = vmatprep.subr.mxu0 0.0
        %2852 = vmatpush1.msra.mxu0 0.0
        %2853 = vmatprep.subr.mxu0 0.0
        %2854 = vmatpush1.msra.mxu0 0.0
        %2855 = vmatprep.subr.mxu0 0.0
        %2856 = vmatpush1.msra.mxu0 %v353
        %2857 = vmatprep.subr.mxu0 0.0
        %2858 = vmatpush1.msra.mxu0 %v352
        %2859 = vmatprep.subr.mxu0 0.0
        %2860 = vmatpush1.msra.mxu0 %v351
        %2861 = vmatprep.subr.mxu0 0.0
        %2862 = vmatpush1.msra.mxu0 %v350
        %2863 = vmatprep.subr.mxu0 0.0
        %2864 = vmatpush2.msra.mxu0 0.0
        %2865 = vmatprep.subr.mxu0 0.0
        %2866 = vmatpush2.msra.mxu0 0.0
        %2867 = vmatprep.subr.mxu0 0.0
        %2868 = vmatpush2.msra.mxu0 0.0
        %2869 = vmatprep.subr.mxu0 0.0
        %2870 = vmatpush2.msra.mxu0 0.0
        %2871 = vmatprep.subr.mxu0 0.0
        %2872 = vmatpush2.msra.mxu0 0.0
        %2873 = vmatprep.subr.mxu0 0.0
        %2874 = vmatpush2.msra.mxu0 0.0
        %2875 = vmatprep.subr.mxu0 0.0
        %2876 = vmatpush2.msra.mxu0 0.0
        %2877 = vmatprep.subr.mxu0 0.0
        %2878 = vmatpush2.msra.mxu0 0.0
        %2879 = vmatprep.subr.mxu0 0.0
        %2880 = vmatpush2.msra.mxu0 0.0
        %2881 = vmatprep.subr.mxu0 0.0
        %2882 = vmatpush2.msra.mxu0 0.0
        %2883 = vmatprep.subr.mxu0 0.0
        %2884 = vmatpush2.msra.mxu0 0.0
        %2885 = vmatprep.subr.mxu0 0.0
        %2886 = vmatpush2.msra.mxu0 0.0
        %2887 = vmatprep.subr.mxu0 0.0
        %2888 = vmatpush2.msra.mxu0 0.0
        %2889 = vmatprep.subr.mxu0 0.0
        %2890 = vmatpush2.msra.mxu0 0.0
        %2891 = vmatprep.subr.mxu0 0.0
        %2892 = vmatpush2.msra.mxu0 0.0
        %2893 = vmatprep.subr.mxu0 0.0
        %2894 = vmatpush2.msra.mxu0 0.0
        %2895 = vmatprep.mubr.f32.mxu0 0.0
        %2896 = vmatmul.mubr.f32.gmra.mxu0 %v2829
        %v2897 = vpop.f32.mrf.mxu0
        %v2898 = vadd.f32 0.0, %v2897
        %v2899 = vpop.f32.mrf.mxu0
        %2900 = vdwg.mxu0
        %v2901 = vmul.f32 %v2898, 0.35355338
        %v2902 = vmax.f32 %v2676, %v2751
        %v2903 = vmax.f32 %v2902, %v2826
        %v2904 = vmax.f32 %v2903, %v2901
        %v2905 = vsub.f32 %v2676, %v2904
        %v2906 = vmul.f32 %v2905, 1.442695
        %v2907 = vpow.pop %v2906
        %v2908 = vsub.f32 %v2751, %v2904
        %v2909 = vmul.f32 %v2908, 1.442695
        %v2910 = vpow.pop %v2909
        %v2911 = vsub.f32 %v2826, %v2904
        %v2912 = vmul.f32 %v2911, 1.442695
        %v2913 = vpow.pop %v2912
        %v2914 = vsub.f32 %v2901, %v2904
        %v2915 = vmul.f32 %v2914, 1.442695
        %v2916 = vpow.pop %v2915
        %v2917 = vadd.f32 %v2907, %v2910
        %v2918 = vadd.f32 %v2917, %v2913
        %v2919 = vadd.f32 %v2918, %v2916
        %v2920 = vrcp.pop %v2919
        %v2921 = vmul.f32 %v2907, %v2920
        %v2923 = vsel %vm1381, %v2921, 0
        %2925 = vmatprep.subr.mxu0 0.0
        %2926 = vmatpush1.msra.mxu0 0.0
        %2927 = vmatprep.subr.mxu0 0.0
        %2928 = vmatpush1.msra.mxu0 0.0
        %2929 = vmatprep.subr.mxu0 0.0
        %2930 = vmatpush1.msra.mxu0 0.0
        %2931 = vmatprep.subr.mxu0 0.0
        %2932 = vmatpush1.msra.mxu0 0.0
        %2933 = vmatprep.subr.mxu0 0.0
        %2934 = vmatpush1.msra.mxu0 0.0
        %2935 = vmatprep.subr.mxu0 0.0
        %2936 = vmatpush1.msra.mxu0 0.0
        %2937 = vmatprep.subr.mxu0 0.0
        %2938 = vmatpush1.msra.mxu0 0.0
        %2939 = vmatprep.subr.mxu0 0.0
        %2940 = vmatpush1.msra.mxu0 0.0
        %2941 = vmatprep.subr.mxu0 0.0
        %2942 = vmatpush1.msra.mxu0 0.0
        %2943 = vmatprep.subr.mxu0 0.0
        %2944 = vmatpush1.msra.mxu0 0.0
        %2945 = vmatprep.subr.mxu0 0.0
        %2946 = vmatpush1.msra.mxu0 0.0
        %2947 = vmatprep.subr.mxu0 0.0
        %2948 = vmatpush1.msra.mxu0 0.0
        %2949 = vmatprep.subr.mxu0 0.0
        %2950 = vmatpush1.msra.mxu0 0.0
        %2951 = vmatprep.subr.mxu0 0.0
        %2952 = vmatpush1.msra.mxu0 0.0
        %2953 = vmatprep.subr.mxu0 0.0
        %2954 = vmatpush1.msra.mxu0 0.0
        %2955 = vmatprep.subr.mxu0 0.0
        %2956 = vmatpush1.msra.mxu0 %v1387
        %2957 = vmatprep.subr.mxu0 0.0
        %2958 = vmatpush2.msra.mxu0 0.0
        %2959 = vmatprep.subr.mxu0 0.0
        %2960 = vmatpush2.msra.mxu0 0.0
        %2961 = vmatprep.subr.mxu0 0.0
        %2962 = vmatpush2.msra.mxu0 0.0
        %2963 = vmatprep.subr.mxu0 0.0
        %2964 = vmatpush2.msra.mxu0 0.0
        %2965 = vmatprep.subr.mxu0 0.0
        %2966 = vmatpush2.msra.mxu0 0.0
        %2967 = vmatprep.subr.mxu0 0.0
        %2968 = vmatpush2.msra.mxu0 0.0
        %2969 = vmatprep.subr.mxu0 0.0
        %2970 = vmatpush2.msra.mxu0 0.0
        %2971 = vmatprep.subr.mxu0 0.0
        %2972 = vmatpush2.msra.mxu0 0.0
        %2973 = vmatprep.subr.mxu0 0.0
        %2974 = vmatpush2.msra.mxu0 0.0
        %2975 = vmatprep.subr.mxu0 0.0
        %2976 = vmatpush2.msra.mxu0 0.0
        %2977 = vmatprep.subr.mxu0 0.0
        %2978 = vmatpush2.msra.mxu0 0.0
        %2979 = vmatprep.subr.mxu0 0.0
        %2980 = vmatpush2.msra.mxu0 0.0
        %2981 = vmatprep.subr.mxu0 0.0
        %2982 = vmatpush2.msra.mxu0 0.0
        %2983 = vmatprep.subr.mxu0 0.0
        %2984 = vmatpush2.msra.mxu0 0.0
        %2985 = vmatprep.subr.mxu0 0.0
        %2986 = vmatpush2.msra.mxu0 0.0
        %2987 = vmatprep.subr.mxu0 0.0
        %2988 = vmatpush2.msra.mxu0 0.0
        %2989 = vmatprep.mubr.f32.mxu0 0.0
        %2990 = vmatmul.mubr.f32.gmra.mxu0 %v2923
        %v2991 = vpop.f32.mrf.mxu0
        %v2992 = vadd.f32 0.0, %v2991
        %v2993 = vpop.f32.mrf.mxu0
        %2994 = vdwg.mxu0
        %v2995 = vmul.f32 %v2992, %v774
        %v2996 = vadd.f32 %v2995, 0.0
        %v2997 = vmul.f32 %v2910, %v2920
        %v2999 = vsel %vm1381, %v2997, 0
        %3001 = vmatprep.subr.mxu0 0.0
        %3002 = vmatpush1.msra.mxu0 0.0
        %3003 = vmatprep.subr.mxu0 0.0
        %3004 = vmatpush1.msra.mxu0 0.0
        %3005 = vmatprep.subr.mxu0 0.0
        %3006 = vmatpush1.msra.mxu0 0.0
        %3007 = vmatprep.subr.mxu0 0.0
        %3008 = vmatpush1.msra.mxu0 0.0
        %3009 = vmatprep.subr.mxu0 0.0
        %3010 = vmatpush1.msra.mxu0 0.0
        %3011 = vmatprep.subr.mxu0 0.0
        %3012 = vmatpush1.msra.mxu0 0.0
        %3013 = vmatprep.subr.mxu0 0.0
        %3014 = vmatpush1.msra.mxu0 0.0
        %3015 = vmatprep.subr.mxu0 0.0
        %3016 = vmatpush1.msra.mxu0 0.0
        %3017 = vmatprep.subr.mxu0 0.0
        %3018 = vmatpush1.msra.mxu0 0.0
        %3019 = vmatprep.subr.mxu0 0.0
        %3020 = vmatpush1.msra.mxu0 0.0
        %3021 = vmatprep.subr.mxu0 0.0
        %3022 = vmatpush1.msra.mxu0 0.0
        %3023 = vmatprep.subr.mxu0 0.0
        %3024 = vmatpush1.msra.mxu0 0.0
        %3025 = vmatprep.subr.mxu0 0.0
        %3026 = vmatpush1.msra.mxu0 0.0
        %3027 = vmatprep.subr.mxu0 0.0
        %3028 = vmatpush1.msra.mxu0 0.0
        %3029 = vmatprep.subr.mxu0 0.0
        %3030 = vmatpush1.msra.mxu0 0.0
        %3031 = vmatprep.subr.mxu0 0.0
        %3032 = vmatpush1.msra.mxu0 %v1387
        %3033 = vmatprep.subr.mxu0 0.0
        %3034 = vmatpush2.msra.mxu0 0.0
        %3035 = vmatprep.subr.mxu0 0.0
        %3036 = vmatpush2.msra.mxu0 0.0
        %3037 = vmatprep.subr.mxu0 0.0
        %3038 = vmatpush2.msra.mxu0 0.0
        %3039 = vmatprep.subr.mxu0 0.0
        %3040 = vmatpush2.msra.mxu0 0.0
        %3041 = vmatprep.subr.mxu0 0.0
        %3042 = vmatpush2.msra.mxu0 0.0
        %3043 = vmatprep.subr.mxu0 0.0
        %3044 = vmatpush2.msra.mxu0 0.0
        %3045 = vmatprep.subr.mxu0 0.0
        %3046 = vmatpush2.msra.mxu0 0.0
        %3047 = vmatprep.subr.mxu0 0.0
        %3048 = vmatpush2.msra.mxu0 0.0
        %3049 = vmatprep.subr.mxu0 0.0
        %3050 = vmatpush2.msra.mxu0 0.0
        %3051 = vmatprep.subr.mxu0 0.0
        %3052 = vmatpush2.msra.mxu0 0.0
        %3053 = vmatprep.subr.mxu0 0.0
        %3054 = vmatpush2.msra.mxu0 0.0
        %3055 = vmatprep.subr.mxu0 0.0
        %3056 = vmatpush2.msra.mxu0 0.0
        %3057 = vmatprep.subr.mxu0 0.0
        %3058 = vmatpush2.msra.mxu0 0.0
        %3059 = vmatprep.subr.mxu0 0.0
        %3060 = vmatpush2.msra.mxu0 0.0
        %3061 = vmatprep.subr.mxu0 0.0
        %3062 = vmatpush2.msra.mxu0 0.0
        %3063 = vmatprep.subr.mxu0 0.0
        %3064 = vmatpush2.msra.mxu0 0.0
        %3065 = vmatprep.mubr.f32.mxu0 0.0
        %3066 = vmatmul.mubr.f32.gmra.mxu0 %v2999
        %v3067 = vpop.f32.mrf.mxu0
        %v3068 = vadd.f32 0.0, %v3067
        %v3069 = vpop.f32.mrf.mxu0
        %3070 = vdwg.mxu0
        %v3071 = vmul.f32 %v3068, %v844
        %v3072 = vadd.f32 %v2996, %v3071
        %v3073 = vmul.f32 %v2913, %v2920
        %v3075 = vsel %vm1381, %v3073, 0
        %3077 = vmatprep.subr.mxu0 0.0
        %3078 = vmatpush1.msra.mxu0 0.0
        %3079 = vmatprep.subr.mxu0 0.0
        %3080 = vmatpush1.msra.mxu0 0.0
        %3081 = vmatprep.subr.mxu0 0.0
        %3082 = vmatpush1.msra.mxu0 0.0
        %3083 = vmatprep.subr.mxu0 0.0
        %3084 = vmatpush1.msra.mxu0 0.0
        %3085 = vmatprep.subr.mxu0 0.0
        %3086 = vmatpush1.msra.mxu0 0.0
        %3087 = vmatprep.subr.mxu0 0.0
        %3088 = vmatpush1.msra.mxu0 0.0
        %3089 = vmatprep.subr.mxu0 0.0
        %3090 = vmatpush1.msra.mxu0 0.0
        %3091 = vmatprep.subr.mxu0 0.0
        %3092 = vmatpush1.msra.mxu0 0.0
        %3093 = vmatprep.subr.mxu0 0.0
        %3094 = vmatpush1.msra.mxu0 0.0
        %3095 = vmatprep.subr.mxu0 0.0
        %3096 = vmatpush1.msra.mxu0 0.0
        %3097 = vmatprep.subr.mxu0 0.0
        %3098 = vmatpush1.msra.mxu0 0.0
        %3099 = vmatprep.subr.mxu0 0.0
        %3100 = vmatpush1.msra.mxu0 0.0
        %3101 = vmatprep.subr.mxu0 0.0
        %3102 = vmatpush1.msra.mxu0 0.0
        %3103 = vmatprep.subr.mxu0 0.0
        %3104 = vmatpush1.msra.mxu0 0.0
        %3105 = vmatprep.subr.mxu0 0.0
        %3106 = vmatpush1.msra.mxu0 0.0
        %3107 = vmatprep.subr.mxu0 0.0
        %3108 = vmatpush1.msra.mxu0 %v1387
        %3109 = vmatprep.subr.mxu0 0.0
        %3110 = vmatpush2.msra.mxu0 0.0
        %3111 = vmatprep.subr.mxu0 0.0
        %3112 = vmatpush2.msra.mxu0 0.0
        %3113 = vmatprep.subr.mxu0 0.0
        %3114 = vmatpush2.msra.mxu0 0.0
        %3115 = vmatprep.subr.mxu0 0.0
        %3116 = vmatpush2.msra.mxu0 0.0
        %3117 = vmatprep.subr.mxu0 0.0
        %3118 = vmatpush2.msra.mxu0 0.0
        %3119 = vmatprep.subr.mxu0 0.0
        %3120 = vmatpush2.msra.mxu0 0.0
        %3121 = vmatprep.subr.mxu0 0.0
        %3122 = vmatpush2.msra.mxu0 0.0
        %3123 = vmatprep.subr.mxu0 0.0
        %3124 = vmatpush2.msra.mxu0 0.0
        %3125 = vmatprep.subr.mxu0 0.0
        %3126 = vmatpush2.msra.mxu0 0.0
        %3127 = vmatprep.subr.mxu0 0.0
        %3128 = vmatpush2.msra.mxu0 0.0
        %3129 = vmatprep.subr.mxu0 0.0
        %3130 = vmatpush2.msra.mxu0 0.0
        %3131 = vmatprep.subr.mxu0 0.0
        %3132 = vmatpush2.msra.mxu0 0.0
        %3133 = vmatprep.subr.mxu0 0.0
        %3134 = vmatpush2.msra.mxu0 0.0
        %3135 = vmatprep.subr.mxu0 0.0
        %3136 = vmatpush2.msra.mxu0 0.0
        %3137 = vmatprep.subr.mxu0 0.0
        %3138 = vmatpush2.msra.mxu0 0.0
        %3139 = vmatprep.subr.mxu0 0.0
        %3140 = vmatpush2.msra.mxu0 0.0
        %3141 = vmatprep.mubr.f32.mxu0 0.0
        %3142 = vmatmul.mubr.f32.gmra.mxu0 %v3075
        %v3143 = vpop.f32.mrf.mxu0
        %v3144 = vadd.f32 0.0, %v3143
        %v3145 = vpop.f32.mrf.mxu0
        %3146 = vdwg.mxu0
        %v3147 = vmul.f32 %v3144, %v914
        %v3148 = vadd.f32 %v3072, %v3147
        %v3149 = vmul.f32 %v2916, %v2920
        %v3151 = vsel %vm1381, %v3149, 0
        %3153 = vmatprep.subr.mxu0 0.0
        %3154 = vmatpush1.msra.mxu0 0.0
        %3155 = vmatprep.subr.mxu0 0.0
        %3156 = vmatpush1.msra.mxu0 0.0
        %3157 = vmatprep.subr.mxu0 0.0
        %3158 = vmatpush1.msra.mxu0 0.0
        %3159 = vmatprep.subr.mxu0 0.0
        %3160 = vmatpush1.msra.mxu0 0.0
        %3161 = vmatprep.subr.mxu0 0.0
        %3162 = vmatpush1.msra.mxu0 0.0
        %3163 = vmatprep.subr.mxu0 0.0
        %3164 = vmatpush1.msra.mxu0 0.0
        %3165 = vmatprep.subr.mxu0 0.0
        %3166 = vmatpush1.msra.mxu0 0.0
        %3167 = vmatprep.subr.mxu0 0.0
        %3168 = vmatpush1.msra.mxu0 0.0
        %3169 = vmatprep.subr.mxu0 0.0
        %3170 = vmatpush1.msra.mxu0 0.0
        %3171 = vmatprep.subr.mxu0 0.0
        %3172 = vmatpush1.msra.mxu0 0.0
        %3173 = vmatprep.subr.mxu0 0.0
        %3174 = vmatpush1.msra.mxu0 0.0
        %3175 = vmatprep.subr.mxu0 0.0
        %3176 = vmatpush1.msra.mxu0 0.0
        %3177 = vmatprep.subr.mxu0 0.0
        %3178 = vmatpush1.msra.mxu0 0.0
        %3179 = vmatprep.subr.mxu0 0.0
        %3180 = vmatpush1.msra.mxu0 0.0
        %3181 = vmatprep.subr.mxu0 0.0
        %3182 = vmatpush1.msra.mxu0 0.0
        %3183 = vmatprep.subr.mxu0 0.0
        %3184 = vmatpush1.msra.mxu0 %v1387
        %3185 = vmatprep.subr.mxu0 0.0
        %3186 = vmatpush2.msra.mxu0 0.0
        %3187 = vmatprep.subr.mxu0 0.0
        %3188 = vmatpush2.msra.mxu0 0.0
        %3189 = vmatprep.subr.mxu0 0.0
        %3190 = vmatpush2.msra.mxu0 0.0
        %3191 = vmatprep.subr.mxu0 0.0
        %3192 = vmatpush2.msra.mxu0 0.0
        %3193 = vmatprep.subr.mxu0 0.0
        %3194 = vmatpush2.msra.mxu0 0.0
        %3195 = vmatprep.subr.mxu0 0.0
        %3196 = vmatpush2.msra.mxu0 0.0
        %3197 = vmatprep.subr.mxu0 0.0
        %3198 = vmatpush2.msra.mxu0 0.0
        %3199 = vmatprep.subr.mxu0 0.0
        %3200 = vmatpush2.msra.mxu0 0.0
        %3201 = vmatprep.subr.mxu0 0.0
        %3202 = vmatpush2.msra.mxu0 0.0
        %3203 = vmatprep.subr.mxu0 0.0
        %3204 = vmatpush2.msra.mxu0 0.0
        %3205 = vmatprep.subr.mxu0 0.0
        %3206 = vmatpush2.msra.mxu0 0.0
        %3207 = vmatprep.subr.mxu0 0.0
        %3208 = vmatpush2.msra.mxu0 0.0
        %3209 = vmatprep.subr.mxu0 0.0
        %3210 = vmatpush2.msra.mxu0 0.0
        %3211 = vmatprep.subr.mxu0 0.0
        %3212 = vmatpush2.msra.mxu0 0.0
        %3213 = vmatprep.subr.mxu0 0.0
        %3214 = vmatpush2.msra.mxu0 0.0
        %3215 = vmatprep.subr.mxu0 0.0
        %3216 = vmatpush2.msra.mxu0 0.0
        %3217 = vmatprep.mubr.f32.mxu0 0.0
        %3218 = vmatmul.mubr.f32.gmra.mxu0 %v3151
        %v3219 = vpop.f32.mrf.mxu0
        %v3220 = vadd.f32 0.0, %v3219
        %v3221 = vpop.f32.mrf.mxu0
        %3222 = vdwg.mxu0
        %v3223 = vmul.f32 %v3220, %v984
        %v3224 = vadd.f32 %v3148, %v3223
        %v3226 = vsel %vm410, %v3224, 0
        %3228 = vmatprep.subr.mxu0 0.0
        %3229 = vmatpush1.msra.mxu0 0.0
        %3230 = vmatprep.subr.mxu0 0.0
        %3231 = vmatpush1.msra.mxu0 0.0
        %3232 = vmatprep.subr.mxu0 0.0
        %3233 = vmatpush1.msra.mxu0 0.0
        %3234 = vmatprep.subr.mxu0 0.0
        %3235 = vmatpush1.msra.mxu0 0.0
        %3236 = vmatprep.subr.mxu0 0.0
        %3237 = vmatpush1.msra.mxu0 0.0
        %3238 = vmatprep.subr.mxu0 0.0
        %3239 = vmatpush1.msra.mxu0 0.0
        %3240 = vmatprep.subr.mxu0 0.0
        %3241 = vmatpush1.msra.mxu0 0.0
        %3242 = vmatprep.subr.mxu0 0.0
        %3243 = vmatpush1.msra.mxu0 0.0
        %3244 = vmatprep.subr.mxu0 0.0
        %3245 = vmatpush1.msra.mxu0 0.0
        %3246 = vmatprep.subr.mxu0 0.0
        %3247 = vmatpush1.msra.mxu0 0.0
        %3248 = vmatprep.subr.mxu0 0.0
        %3249 = vmatpush1.msra.mxu0 0.0
        %3250 = vmatprep.subr.mxu0 0.0
        %3251 = vmatpush1.msra.mxu0 0.0
        %3252 = vmatprep.subr.mxu0 0.0
        %3253 = vmatpush1.msra.mxu0 %v405
        %3254 = vmatprep.subr.mxu0 0.0
        %3255 = vmatpush1.msra.mxu0 %v404
        %3256 = vmatprep.subr.mxu0 0.0
        %3257 = vmatpush1.msra.mxu0 %v403
        %3258 = vmatprep.subr.mxu0 0.0
        %3259 = vmatpush1.msra.mxu0 %v402
        %3260 = vmatprep.subr.mxu0 0.0
        %3261 = vmatpush2.msra.mxu0 0.0
        %3262 = vmatprep.subr.mxu0 0.0
        %3263 = vmatpush2.msra.mxu0 0.0
        %3264 = vmatprep.subr.mxu0 0.0
        %3265 = vmatpush2.msra.mxu0 0.0
        %3266 = vmatprep.subr.mxu0 0.0
        %3267 = vmatpush2.msra.mxu0 0.0
        %3268 = vmatprep.subr.mxu0 0.0
        %3269 = vmatpush2.msra.mxu0 0.0
        %3270 = vmatprep.subr.mxu0 0.0
        %3271 = vmatpush2.msra.mxu0 0.0
        %3272 = vmatprep.subr.mxu0 0.0
        %3273 = vmatpush2.msra.mxu0 0.0
        %3274 = vmatprep.subr.mxu0 0.0
        %3275 = vmatpush2.msra.mxu0 0.0
        %3276 = vmatprep.subr.mxu0 0.0
        %3277 = vmatpush2.msra.mxu0 0.0
        %3278 = vmatprep.subr.mxu0 0.0
        %3279 = vmatpush2.msra.mxu0 0.0
        %3280 = vmatprep.subr.mxu0 0.0
        %3281 = vmatpush2.msra.mxu0 0.0
        %3282 = vmatprep.subr.mxu0 0.0
        %3283 = vmatpush2.msra.mxu0 0.0
        %3284 = vmatprep.subr.mxu0 0.0
        %3285 = vmatpush2.msra.mxu0 0.0
        %3286 = vmatprep.subr.mxu0 0.0
        %3287 = vmatpush2.msra.mxu0 0.0
        %3288 = vmatprep.subr.mxu0 0.0
        %3289 = vmatpush2.msra.mxu0 0.0
        %3290 = vmatprep.subr.mxu0 0.0
        %3291 = vmatpush2.msra.mxu0 0.0
        %3292 = vmatprep.mubr.f32.mxu0 0.0
        %3293 = vmatmul.mubr.f32.gmra.mxu0 %v3226
        %v3294 = vpop.f32.mrf.mxu0
        %v3295 = vadd.f32 %v1692, %v3294
        %v3296 = vpop.f32.mrf.mxu0
        %3297 = vdwg.mxu0
        %3298 = vmatprep.subr.mxu0 0.0
        %3299 = vmatpush1.msra.mxu0 0.0
        %3300 = vmatprep.subr.mxu0 0.0
        %3301 = vmatpush1.msra.mxu0 0.0
        %3302 = vmatprep.subr.mxu0 0.0
        %3303 = vmatpush1.msra.mxu0 0.0
        %3304 = vmatprep.subr.mxu0 0.0
        %3305 = vmatpush1.msra.mxu0 0.0
        %3306 = vmatprep.subr.mxu0 0.0
        %3307 = vmatpush1.msra.mxu0 0.0
        %3308 = vmatprep.subr.mxu0 0.0
        %3309 = vmatpush1.msra.mxu0 0.0
        %3310 = vmatprep.subr.mxu0 0.0
        %3311 = vmatpush1.msra.mxu0 0.0
        %3312 = vmatprep.subr.mxu0 0.0
        %3313 = vmatpush1.msra.mxu0 0.0
        %3314 = vmatprep.subr.mxu0 0.0
        %3315 = vmatpush1.msra.mxu0 0.0
        %3316 = vmatprep.subr.mxu0 0.0
        %3317 = vmatpush1.msra.mxu0 0.0
        %3318 = vmatprep.subr.mxu0 0.0
        %3319 = vmatpush1.msra.mxu0 0.0
        %3320 = vmatprep.subr.mxu0 0.0
        %3321 = vmatpush1.msra.mxu0 0.0
        %3322 = vmatprep.subr.mxu0 0.0
        %3323 = vmatpush1.msra.mxu0 %v390
        %3324 = vmatprep.subr.mxu0 0.0
        %3325 = vmatpush1.msra.mxu0 %v389
        %3326 = vmatprep.subr.mxu0 0.0
        %3327 = vmatpush1.msra.mxu0 %v388
        %3328 = vmatprep.subr.mxu0 0.0
        %3329 = vmatpush1.msra.mxu0 %v387
        %3330 = vmatprep.subr.mxu0 0.0
        %3331 = vmatpush2.msra.mxu0 0.0
        %3332 = vmatprep.subr.mxu0 0.0
        %3333 = vmatpush2.msra.mxu0 0.0
        %3334 = vmatprep.subr.mxu0 0.0
        %3335 = vmatpush2.msra.mxu0 0.0
        %3336 = vmatprep.subr.mxu0 0.0
        %3337 = vmatpush2.msra.mxu0 0.0
        %3338 = vmatprep.subr.mxu0 0.0
        %3339 = vmatpush2.msra.mxu0 0.0
        %3340 = vmatprep.subr.mxu0 0.0
        %3341 = vmatpush2.msra.mxu0 0.0
        %3342 = vmatprep.subr.mxu0 0.0
        %3343 = vmatpush2.msra.mxu0 0.0
        %3344 = vmatprep.subr.mxu0 0.0
        %3345 = vmatpush2.msra.mxu0 0.0
        %3346 = vmatprep.subr.mxu0 0.0
        %3347 = vmatpush2.msra.mxu0 0.0
        %3348 = vmatprep.subr.mxu0 0.0
        %3349 = vmatpush2.msra.mxu0 0.0
        %3350 = vmatprep.subr.mxu0 0.0
        %3351 = vmatpush2.msra.mxu0 0.0
        %3352 = vmatprep.subr.mxu0 0.0
        %3353 = vmatpush2.msra.mxu0 0.0
        %3354 = vmatprep.subr.mxu0 0.0
        %3355 = vmatpush2.msra.mxu0 0.0
        %3356 = vmatprep.subr.mxu0 0.0
        %3357 = vmatpush2.msra.mxu0 0.0
        %3358 = vmatprep.subr.mxu0 0.0
        %3359 = vmatpush2.msra.mxu0 0.0
        %3360 = vmatprep.subr.mxu0 0.0
        %3361 = vmatpush2.msra.mxu0 0.0
        %3362 = vmatprep.mubr.f32.mxu0 0.0
        %3363 = vmatmul.mubr.f32.gmra.mxu0 %v631
        %v3364 = vpop.f32.mrf.mxu0
        %v3365 = vadd.f32 %v990, %v3364
        %v3366 = vpop.f32.mrf.mxu0
        %3367 = vdwg.mxu0
        %v3368 = vmul.f32 %v3365, %v481
        %v3370 = vsel %vm410, %v3368, 0
        %3372 = vmatprep.subr.mxu0 0.0
        %3373 = vmatpush1.msra.mxu0 0.0
        %3374 = vmatprep.subr.mxu0 0.0
        %3375 = vmatpush1.msra.mxu0 0.0
        %3376 = vmatprep.subr.mxu0 0.0
        %3377 = vmatpush1.msra.mxu0 0.0
        %3378 = vmatprep.subr.mxu0 0.0
        %3379 = vmatpush1.msra.mxu0 0.0
        %3380 = vmatprep.subr.mxu0 0.0
        %3381 = vmatpush1.msra.mxu0 0.0
        %3382 = vmatprep.subr.mxu0 0.0
        %3383 = vmatpush1.msra.mxu0 0.0
        %3384 = vmatprep.subr.mxu0 0.0
        %3385 = vmatpush1.msra.mxu0 0.0
        %3386 = vmatprep.subr.mxu0 0.0
        %3387 = vmatpush1.msra.mxu0 0.0
        %3388 = vmatprep.subr.mxu0 0.0
        %3389 = vmatpush1.msra.mxu0 0.0
        %3390 = vmatprep.subr.mxu0 0.0
        %3391 = vmatpush1.msra.mxu0 0.0
        %3392 = vmatprep.subr.mxu0 0.0
        %3393 = vmatpush1.msra.mxu0 0.0
        %3394 = vmatprep.subr.mxu0 0.0
        %3395 = vmatpush1.msra.mxu0 0.0
        %3396 = vmatprep.subr.mxu0 0.0
        %3397 = vmatpush1.msra.mxu0 %v353
        %3398 = vmatprep.subr.mxu0 0.0
        %3399 = vmatpush1.msra.mxu0 %v352
        %3400 = vmatprep.subr.mxu0 0.0
        %3401 = vmatpush1.msra.mxu0 %v351
        %3402 = vmatprep.subr.mxu0 0.0
        %3403 = vmatpush1.msra.mxu0 %v350
        %3404 = vmatprep.subr.mxu0 0.0
        %3405 = vmatpush2.msra.mxu0 0.0
        %3406 = vmatprep.subr.mxu0 0.0
        %3407 = vmatpush2.msra.mxu0 0.0
        %3408 = vmatprep.subr.mxu0 0.0
        %3409 = vmatpush2.msra.mxu0 0.0
        %3410 = vmatprep.subr.mxu0 0.0
        %3411 = vmatpush2.msra.mxu0 0.0
        %3412 = vmatprep.subr.mxu0 0.0
        %3413 = vmatpush2.msra.mxu0 0.0
        %3414 = vmatprep.subr.mxu0 0.0
        %3415 = vmatpush2.msra.mxu0 0.0
        %3416 = vmatprep.subr.mxu0 0.0
        %3417 = vmatpush2.msra.mxu0 0.0
        %3418 = vmatprep.subr.mxu0 0.0
        %3419 = vmatpush2.msra.mxu0 0.0
        %3420 = vmatprep.subr.mxu0 0.0
        %3421 = vmatpush2.msra.mxu0 0.0
        %3422 = vmatprep.subr.mxu0 0.0
        %3423 = vmatpush2.msra.mxu0 0.0
        %3424 = vmatprep.subr.mxu0 0.0
        %3425 = vmatpush2.msra.mxu0 0.0
        %3426 = vmatprep.subr.mxu0 0.0
        %3427 = vmatpush2.msra.mxu0 0.0
        %3428 = vmatprep.subr.mxu0 0.0
        %3429 = vmatpush2.msra.mxu0 0.0
        %3430 = vmatprep.subr.mxu0 0.0
        %3431 = vmatpush2.msra.mxu0 0.0
        %3432 = vmatprep.subr.mxu0 0.0
        %3433 = vmatpush2.msra.mxu0 0.0
        %3434 = vmatprep.subr.mxu0 0.0
        %3435 = vmatpush2.msra.mxu0 0.0
        %3436 = vmatprep.mubr.f32.mxu0 0.0
        %3437 = vmatmul.mubr.f32.gmra.mxu0 %v3370
        %v3438 = vpop.f32.mrf.mxu0
        %v3439 = vadd.f32 0.0, %v3438
        %v3440 = vpop.f32.mrf.mxu0
        %3441 = vdwg.mxu0
        %v3442 = vmul.f32 %v3439, 0.35355338
        %v3443 = vmul.f32 %v3365, %v554
        %v3445 = vsel %vm410, %v3443, 0
        %3447 = vmatprep.subr.mxu0 0.0
        %3448 = vmatpush1.msra.mxu0 0.0
        %3449 = vmatprep.subr.mxu0 0.0
        %3450 = vmatpush1.msra.mxu0 0.0
        %3451 = vmatprep.subr.mxu0 0.0
        %3452 = vmatpush1.msra.mxu0 0.0
        %3453 = vmatprep.subr.mxu0 0.0
        %3454 = vmatpush1.msra.mxu0 0.0
        %3455 = vmatprep.subr.mxu0 0.0
        %3456 = vmatpush1.msra.mxu0 0.0
        %3457 = vmatprep.subr.mxu0 0.0
        %3458 = vmatpush1.msra.mxu0 0.0
        %3459 = vmatprep.subr.mxu0 0.0
        %3460 = vmatpush1.msra.mxu0 0.0
        %3461 = vmatprep.subr.mxu0 0.0
        %3462 = vmatpush1.msra.mxu0 0.0
        %3463 = vmatprep.subr.mxu0 0.0
        %3464 = vmatpush1.msra.mxu0 0.0
        %3465 = vmatprep.subr.mxu0 0.0
        %3466 = vmatpush1.msra.mxu0 0.0
        %3467 = vmatprep.subr.mxu0 0.0
        %3468 = vmatpush1.msra.mxu0 0.0
        %3469 = vmatprep.subr.mxu0 0.0
        %3470 = vmatpush1.msra.mxu0 0.0
        %3471 = vmatprep.subr.mxu0 0.0
        %3472 = vmatpush1.msra.mxu0 %v353
        %3473 = vmatprep.subr.mxu0 0.0
        %3474 = vmatpush1.msra.mxu0 %v352
        %3475 = vmatprep.subr.mxu0 0.0
        %3476 = vmatpush1.msra.mxu0 %v351
        %3477 = vmatprep.subr.mxu0 0.0
        %3478 = vmatpush1.msra.mxu0 %v350
        %3479 = vmatprep.subr.mxu0 0.0
        %3480 = vmatpush2.msra.mxu0 0.0
        %3481 = vmatprep.subr.mxu0 0.0
        %3482 = vmatpush2.msra.mxu0 0.0
        %3483 = vmatprep.subr.mxu0 0.0
        %3484 = vmatpush2.msra.mxu0 0.0
        %3485 = vmatprep.subr.mxu0 0.0
        %3486 = vmatpush2.msra.mxu0 0.0
        %3487 = vmatprep.subr.mxu0 0.0
        %3488 = vmatpush2.msra.mxu0 0.0
        %3489 = vmatprep.subr.mxu0 0.0
        %3490 = vmatpush2.msra.mxu0 0.0
        %3491 = vmatprep.subr.mxu0 0.0
        %3492 = vmatpush2.msra.mxu0 0.0
        %3493 = vmatprep.subr.mxu0 0.0
        %3494 = vmatpush2.msra.mxu0 0.0
        %3495 = vmatprep.subr.mxu0 0.0
        %3496 = vmatpush2.msra.mxu0 0.0
        %3497 = vmatprep.subr.mxu0 0.0
        %3498 = vmatpush2.msra.mxu0 0.0
        %3499 = vmatprep.subr.mxu0 0.0
        %3500 = vmatpush2.msra.mxu0 0.0
        %3501 = vmatprep.subr.mxu0 0.0
        %3502 = vmatpush2.msra.mxu0 0.0
        %3503 = vmatprep.subr.mxu0 0.0
        %3504 = vmatpush2.msra.mxu0 0.0
        %3505 = vmatprep.subr.mxu0 0.0
        %3506 = vmatpush2.msra.mxu0 0.0
        %3507 = vmatprep.subr.mxu0 0.0
        %3508 = vmatpush2.msra.mxu0 0.0
        %3509 = vmatprep.subr.mxu0 0.0
        %3510 = vmatpush2.msra.mxu0 0.0
        %3511 = vmatprep.mubr.f32.mxu0 0.0
        %3512 = vmatmul.mubr.f32.gmra.mxu0 %v3445
        %v3513 = vpop.f32.mrf.mxu0
        %v3514 = vadd.f32 0.0, %v3513
        %v3515 = vpop.f32.mrf.mxu0
        %3516 = vdwg.mxu0
        %v3517 = vmul.f32 %v3514, 0.35355338
        %v3518 = vmul.f32 %v3365, %v627
        %v3520 = vsel %vm410, %v3518, 0
        %3522 = vmatprep.subr.mxu0 0.0
        %3523 = vmatpush1.msra.mxu0 0.0
        %3524 = vmatprep.subr.mxu0 0.0
        %3525 = vmatpush1.msra.mxu0 0.0
        %3526 = vmatprep.subr.mxu0 0.0
        %3527 = vmatpush1.msra.mxu0 0.0
        %3528 = vmatprep.subr.mxu0 0.0
        %3529 = vmatpush1.msra.mxu0 0.0
        %3530 = vmatprep.subr.mxu0 0.0
        %3531 = vmatpush1.msra.mxu0 0.0
        %3532 = vmatprep.subr.mxu0 0.0
        %3533 = vmatpush1.msra.mxu0 0.0
        %3534 = vmatprep.subr.mxu0 0.0
        %3535 = vmatpush1.msra.mxu0 0.0
        %3536 = vmatprep.subr.mxu0 0.0
        %3537 = vmatpush1.msra.mxu0 0.0
        %3538 = vmatprep.subr.mxu0 0.0
        %3539 = vmatpush1.msra.mxu0 0.0
        %3540 = vmatprep.subr.mxu0 0.0
        %3541 = vmatpush1.msra.mxu0 0.0
        %3542 = vmatprep.subr.mxu0 0.0
        %3543 = vmatpush1.msra.mxu0 0.0
        %3544 = vmatprep.subr.mxu0 0.0
        %3545 = vmatpush1.msra.mxu0 0.0
        %3546 = vmatprep.subr.mxu0 0.0
        %3547 = vmatpush1.msra.mxu0 %v353
        %3548 = vmatprep.subr.mxu0 0.0
        %3549 = vmatpush1.msra.mxu0 %v352
        %3550 = vmatprep.subr.mxu0 0.0
        %3551 = vmatpush1.msra.mxu0 %v351
        %3552 = vmatprep.subr.mxu0 0.0
        %3553 = vmatpush1.msra.mxu0 %v350
        %3554 = vmatprep.subr.mxu0 0.0
        %3555 = vmatpush2.msra.mxu0 0.0
        %3556 = vmatprep.subr.mxu0 0.0
        %3557 = vmatpush2.msra.mxu0 0.0
        %3558 = vmatprep.subr.mxu0 0.0
        %3559 = vmatpush2.msra.mxu0 0.0
        %3560 = vmatprep.subr.mxu0 0.0
        %3561 = vmatpush2.msra.mxu0 0.0
        %3562 = vmatprep.subr.mxu0 0.0
        %3563 = vmatpush2.msra.mxu0 0.0
        %3564 = vmatprep.subr.mxu0 0.0
        %3565 = vmatpush2.msra.mxu0 0.0
        %3566 = vmatprep.subr.mxu0 0.0
        %3567 = vmatpush2.msra.mxu0 0.0
        %3568 = vmatprep.subr.mxu0 0.0
        %3569 = vmatpush2.msra.mxu0 0.0
        %3570 = vmatprep.subr.mxu0 0.0
        %3571 = vmatpush2.msra.mxu0 0.0
        %3572 = vmatprep.subr.mxu0 0.0
        %3573 = vmatpush2.msra.mxu0 0.0
        %3574 = vmatprep.subr.mxu0 0.0
        %3575 = vmatpush2.msra.mxu0 0.0
        %3576 = vmatprep.subr.mxu0 0.0
        %3577 = vmatpush2.msra.mxu0 0.0
        %3578 = vmatprep.subr.mxu0 0.0
        %3579 = vmatpush2.msra.mxu0 0.0
        %3580 = vmatprep.subr.mxu0 0.0
        %3581 = vmatpush2.msra.mxu0 0.0
        %3582 = vmatprep.subr.mxu0 0.0
        %3583 = vmatpush2.msra.mxu0 0.0
        %3584 = vmatprep.subr.mxu0 0.0
        %3585 = vmatpush2.msra.mxu0 0.0
        %3586 = vmatprep.mubr.f32.mxu0 0.0
        %3587 = vmatmul.mubr.f32.gmra.mxu0 %v3520
        %v3588 = vpop.f32.mrf.mxu0
        %v3589 = vadd.f32 0.0, %v3588
        %v3590 = vpop.f32.mrf.mxu0
        %3591 = vdwg.mxu0
        %v3592 = vmul.f32 %v3589, 0.35355338
        %v3593 = vmul.f32 %v3365, %v700
        %v3595 = vsel %vm410, %v3593, 0
        %3597 = vmatprep.subr.mxu0 0.0
        %3598 = vmatpush1.msra.mxu0 0.0
        %3599 = vmatprep.subr.mxu0 0.0
        %3600 = vmatpush1.msra.mxu0 0.0
        %3601 = vmatprep.subr.mxu0 0.0
        %3602 = vmatpush1.msra.mxu0 0.0
        %3603 = vmatprep.subr.mxu0 0.0
        %3604 = vmatpush1.msra.mxu0 0.0
        %3605 = vmatprep.subr.mxu0 0.0
        %3606 = vmatpush1.msra.mxu0 0.0
        %3607 = vmatprep.subr.mxu0 0.0
        %3608 = vmatpush1.msra.mxu0 0.0
        %3609 = vmatprep.subr.mxu0 0.0
        %3610 = vmatpush1.msra.mxu0 0.0
        %3611 = vmatprep.subr.mxu0 0.0
        %3612 = vmatpush1.msra.mxu0 0.0
        %3613 = vmatprep.subr.mxu0 0.0
        %3614 = vmatpush1.msra.mxu0 0.0
        %3615 = vmatprep.subr.mxu0 0.0
        %3616 = vmatpush1.msra.mxu0 0.0
        %3617 = vmatprep.subr.mxu0 0.0
        %3618 = vmatpush1.msra.mxu0 0.0
        %3619 = vmatprep.subr.mxu0 0.0
        %3620 = vmatpush1.msra.mxu0 0.0
        %3621 = vmatprep.subr.mxu0 0.0
        %3622 = vmatpush1.msra.mxu0 %v353
        %3623 = vmatprep.subr.mxu0 0.0
        %3624 = vmatpush1.msra.mxu0 %v352
        %3625 = vmatprep.subr.mxu0 0.0
        %3626 = vmatpush1.msra.mxu0 %v351
        %3627 = vmatprep.subr.mxu0 0.0
        %3628 = vmatpush1.msra.mxu0 %v350
        %3629 = vmatprep.subr.mxu0 0.0
        %3630 = vmatpush2.msra.mxu0 0.0
        %3631 = vmatprep.subr.mxu0 0.0
        %3632 = vmatpush2.msra.mxu0 0.0
        %3633 = vmatprep.subr.mxu0 0.0
        %3634 = vmatpush2.msra.mxu0 0.0
        %3635 = vmatprep.subr.mxu0 0.0
        %3636 = vmatpush2.msra.mxu0 0.0
        %3637 = vmatprep.subr.mxu0 0.0
        %3638 = vmatpush2.msra.mxu0 0.0
        %3639 = vmatprep.subr.mxu0 0.0
        %3640 = vmatpush2.msra.mxu0 0.0
        %3641 = vmatprep.subr.mxu0 0.0
        %3642 = vmatpush2.msra.mxu0 0.0
        %3643 = vmatprep.subr.mxu0 0.0
        %3644 = vmatpush2.msra.mxu0 0.0
        %3645 = vmatprep.subr.mxu0 0.0
        %3646 = vmatpush2.msra.mxu0 0.0
        %3647 = vmatprep.subr.mxu0 0.0
        %3648 = vmatpush2.msra.mxu0 0.0
        %3649 = vmatprep.subr.mxu0 0.0
        %3650 = vmatpush2.msra.mxu0 0.0
        %3651 = vmatprep.subr.mxu0 0.0
        %3652 = vmatpush2.msra.mxu0 0.0
        %3653 = vmatprep.subr.mxu0 0.0
        %3654 = vmatpush2.msra.mxu0 0.0
        %3655 = vmatprep.subr.mxu0 0.0
        %3656 = vmatpush2.msra.mxu0 0.0
        %3657 = vmatprep.subr.mxu0 0.0
        %3658 = vmatpush2.msra.mxu0 0.0
        %3659 = vmatprep.subr.mxu0 0.0
        %3660 = vmatpush2.msra.mxu0 0.0
        %3661 = vmatprep.mubr.f32.mxu0 0.0
        %3662 = vmatmul.mubr.f32.gmra.mxu0 %v3595
        %v3663 = vpop.f32.mrf.mxu0
        %v3664 = vadd.f32 0.0, %v3663
        %v3665 = vpop.f32.mrf.mxu0
        %3666 = vdwg.mxu0
        %v3667 = vmul.f32 %v3664, 0.35355338
        %v3668 = vmax.f32 %v3442, %v3517
        %v3669 = vmax.f32 %v3668, %v3592
        %v3670 = vmax.f32 %v3669, %v3667
        %v3671 = vsub.f32 %v3442, %v3670
        %v3672 = vmul.f32 %v3671, 1.442695
        %v3673 = vpow.pop %v3672
        %v3674 = vsub.f32 %v3517, %v3670
        %v3675 = vmul.f32 %v3674, 1.442695
        %v3676 = vpow.pop %v3675
        %v3677 = vsub.f32 %v3592, %v3670
        %v3678 = vmul.f32 %v3677, 1.442695
        %v3679 = vpow.pop %v3678
        %v3680 = vsub.f32 %v3667, %v3670
        %v3681 = vmul.f32 %v3680, 1.442695
        %v3682 = vpow.pop %v3681
        %v3683 = vadd.f32 %v3673, %v3676
        %v3684 = vadd.f32 %v3683, %v3679
        %v3685 = vadd.f32 %v3684, %v3682
        %v3686 = vrcp.pop %v3685
        %v3687 = vmul.f32 %v3673, %v3686
        %v3689 = vsel %vm1381, %v3687, 0
        %3691 = vmatprep.subr.mxu0 0.0
        %3692 = vmatpush1.msra.mxu0 0.0
        %3693 = vmatprep.subr.mxu0 0.0
        %3694 = vmatpush1.msra.mxu0 0.0
        %3695 = vmatprep.subr.mxu0 0.0
        %3696 = vmatpush1.msra.mxu0 0.0
        %3697 = vmatprep.subr.mxu0 0.0
        %3698 = vmatpush1.msra.mxu0 0.0
        %3699 = vmatprep.subr.mxu0 0.0
        %3700 = vmatpush1.msra.mxu0 0.0
        %3701 = vmatprep.subr.mxu0 0.0
        %3702 = vmatpush1.msra.mxu0 0.0
        %3703 = vmatprep.subr.mxu0 0.0
        %3704 = vmatpush1.msra.mxu0 0.0
        %3705 = vmatprep.subr.mxu0 0.0
        %3706 = vmatpush1.msra.mxu0 0.0
        %3707 = vmatprep.subr.mxu0 0.0
        %3708 = vmatpush1.msra.mxu0 0.0
        %3709 = vmatprep.subr.mxu0 0.0
        %3710 = vmatpush1.msra.mxu0 0.0
        %3711 = vmatprep.subr.mxu0 0.0
        %3712 = vmatpush1.msra.mxu0 0.0
        %3713 = vmatprep.subr.mxu0 0.0
        %3714 = vmatpush1.msra.mxu0 0.0
        %3715 = vmatprep.subr.mxu0 0.0
        %3716 = vmatpush1.msra.mxu0 0.0
        %3717 = vmatprep.subr.mxu0 0.0
        %3718 = vmatpush1.msra.mxu0 0.0
        %3719 = vmatprep.subr.mxu0 0.0
        %3720 = vmatpush1.msra.mxu0 0.0
        %3721 = vmatprep.subr.mxu0 0.0
        %3722 = vmatpush1.msra.mxu0 %v1387
        %3723 = vmatprep.subr.mxu0 0.0
        %3724 = vmatpush2.msra.mxu0 0.0
        %3725 = vmatprep.subr.mxu0 0.0
        %3726 = vmatpush2.msra.mxu0 0.0
        %3727 = vmatprep.subr.mxu0 0.0
        %3728 = vmatpush2.msra.mxu0 0.0
        %3729 = vmatprep.subr.mxu0 0.0
        %3730 = vmatpush2.msra.mxu0 0.0
        %3731 = vmatprep.subr.mxu0 0.0
        %3732 = vmatpush2.msra.mxu0 0.0
        %3733 = vmatprep.subr.mxu0 0.0
        %3734 = vmatpush2.msra.mxu0 0.0
        %3735 = vmatprep.subr.mxu0 0.0
        %3736 = vmatpush2.msra.mxu0 0.0
        %3737 = vmatprep.subr.mxu0 0.0
        %3738 = vmatpush2.msra.mxu0 0.0
        %3739 = vmatprep.subr.mxu0 0.0
        %3740 = vmatpush2.msra.mxu0 0.0
        %3741 = vmatprep.subr.mxu0 0.0
        %3742 = vmatpush2.msra.mxu0 0.0
        %3743 = vmatprep.subr.mxu0 0.0
        %3744 = vmatpush2.msra.mxu0 0.0
        %3745 = vmatprep.subr.mxu0 0.0
        %3746 = vmatpush2.msra.mxu0 0.0
        %3747 = vmatprep.subr.mxu0 0.0
        %3748 = vmatpush2.msra.mxu0 0.0
        %3749 = vmatprep.subr.mxu0 0.0
        %3750 = vmatpush2.msra.mxu0 0.0
        %3751 = vmatprep.subr.mxu0 0.0
        %3752 = vmatpush2.msra.mxu0 0.0
        %3753 = vmatprep.subr.mxu0 0.0
        %3754 = vmatpush2.msra.mxu0 0.0
        %3755 = vmatprep.mubr.f32.mxu0 0.0
        %3756 = vmatmul.mubr.f32.gmra.mxu0 %v3689
        %v3757 = vpop.f32.mrf.mxu0
        %v3758 = vadd.f32 0.0, %v3757
        %v3759 = vpop.f32.mrf.mxu0
        %3760 = vdwg.mxu0
        %v3761 = vmul.f32 %v3758, %v774
        %v3762 = vadd.f32 %v3761, 0.0
        %v3763 = vmul.f32 %v3676, %v3686
        %v3765 = vsel %vm1381, %v3763, 0
        %3767 = vmatprep.subr.mxu0 0.0
        %3768 = vmatpush1.msra.mxu0 0.0
        %3769 = vmatprep.subr.mxu0 0.0
        %3770 = vmatpush1.msra.mxu0 0.0
        %3771 = vmatprep.subr.mxu0 0.0
        %3772 = vmatpush1.msra.mxu0 0.0
        %3773 = vmatprep.subr.mxu0 0.0
        %3774 = vmatpush1.msra.mxu0 0.0
        %3775 = vmatprep.subr.mxu0 0.0
        %3776 = vmatpush1.msra.mxu0 0.0
        %3777 = vmatprep.subr.mxu0 0.0
        %3778 = vmatpush1.msra.mxu0 0.0
        %3779 = vmatprep.subr.mxu0 0.0
        %3780 = vmatpush1.msra.mxu0 0.0
        %3781 = vmatprep.subr.mxu0 0.0
        %3782 = vmatpush1.msra.mxu0 0.0
        %3783 = vmatprep.subr.mxu0 0.0
        %3784 = vmatpush1.msra.mxu0 0.0
        %3785 = vmatprep.subr.mxu0 0.0
        %3786 = vmatpush1.msra.mxu0 0.0
        %3787 = vmatprep.subr.mxu0 0.0
        %3788 = vmatpush1.msra.mxu0 0.0
        %3789 = vmatprep.subr.mxu0 0.0
        %3790 = vmatpush1.msra.mxu0 0.0
        %3791 = vmatprep.subr.mxu0 0.0
        %3792 = vmatpush1.msra.mxu0 0.0
        %3793 = vmatprep.subr.mxu0 0.0
        %3794 = vmatpush1.msra.mxu0 0.0
        %3795 = vmatprep.subr.mxu0 0.0
        %3796 = vmatpush1.msra.mxu0 0.0
        %3797 = vmatprep.subr.mxu0 0.0
        %3798 = vmatpush1.msra.mxu0 %v1387
        %3799 = vmatprep.subr.mxu0 0.0
        %3800 = vmatpush2.msra.mxu0 0.0
        %3801 = vmatprep.subr.mxu0 0.0
        %3802 = vmatpush2.msra.mxu0 0.0
        %3803 = vmatprep.subr.mxu0 0.0
        %3804 = vmatpush2.msra.mxu0 0.0
        %3805 = vmatprep.subr.mxu0 0.0
        %3806 = vmatpush2.msra.mxu0 0.0
        %3807 = vmatprep.subr.mxu0 0.0
        %3808 = vmatpush2.msra.mxu0 0.0
        %3809 = vmatprep.subr.mxu0 0.0
        %3810 = vmatpush2.msra.mxu0 0.0
        %3811 = vmatprep.subr.mxu0 0.0
        %3812 = vmatpush2.msra.mxu0 0.0
        %3813 = vmatprep.subr.mxu0 0.0
        %3814 = vmatpush2.msra.mxu0 0.0
        %3815 = vmatprep.subr.mxu0 0.0
        %3816 = vmatpush2.msra.mxu0 0.0
        %3817 = vmatprep.subr.mxu0 0.0
        %3818 = vmatpush2.msra.mxu0 0.0
        %3819 = vmatprep.subr.mxu0 0.0
        %3820 = vmatpush2.msra.mxu0 0.0
        %3821 = vmatprep.subr.mxu0 0.0
        %3822 = vmatpush2.msra.mxu0 0.0
        %3823 = vmatprep.subr.mxu0 0.0
        %3824 = vmatpush2.msra.mxu0 0.0
        %3825 = vmatprep.subr.mxu0 0.0
        %3826 = vmatpush2.msra.mxu0 0.0
        %3827 = vmatprep.subr.mxu0 0.0
        %3828 = vmatpush2.msra.mxu0 0.0
        %3829 = vmatprep.subr.mxu0 0.0
        %3830 = vmatpush2.msra.mxu0 0.0
        %3831 = vmatprep.mubr.f32.mxu0 0.0
        %3832 = vmatmul.mubr.f32.gmra.mxu0 %v3765
        %v3833 = vpop.f32.mrf.mxu0
        %v3834 = vadd.f32 0.0, %v3833
        %v3835 = vpop.f32.mrf.mxu0
        %3836 = vdwg.mxu0
        %v3837 = vmul.f32 %v3834, %v844
        %v3838 = vadd.f32 %v3762, %v3837
        %v3839 = vmul.f32 %v3679, %v3686
        %v3841 = vsel %vm1381, %v3839, 0
        %3843 = vmatprep.subr.mxu0 0.0
        %3844 = vmatpush1.msra.mxu0 0.0
        %3845 = vmatprep.subr.mxu0 0.0
        %3846 = vmatpush1.msra.mxu0 0.0
        %3847 = vmatprep.subr.mxu0 0.0
        %3848 = vmatpush1.msra.mxu0 0.0
        %3849 = vmatprep.subr.mxu0 0.0
        %3850 = vmatpush1.msra.mxu0 0.0
        %3851 = vmatprep.subr.mxu0 0.0
        %3852 = vmatpush1.msra.mxu0 0.0
        %3853 = vmatprep.subr.mxu0 0.0
        %3854 = vmatpush1.msra.mxu0 0.0
        %3855 = vmatprep.subr.mxu0 0.0
        %3856 = vmatpush1.msra.mxu0 0.0
        %3857 = vmatprep.subr.mxu0 0.0
        %3858 = vmatpush1.msra.mxu0 0.0
        %3859 = vmatprep.subr.mxu0 0.0
        %3860 = vmatpush1.msra.mxu0 0.0
        %3861 = vmatprep.subr.mxu0 0.0
        %3862 = vmatpush1.msra.mxu0 0.0
        %3863 = vmatprep.subr.mxu0 0.0
        %3864 = vmatpush1.msra.mxu0 0.0
        %3865 = vmatprep.subr.mxu0 0.0
        %3866 = vmatpush1.msra.mxu0 0.0
        %3867 = vmatprep.subr.mxu0 0.0
        %3868 = vmatpush1.msra.mxu0 0.0
        %3869 = vmatprep.subr.mxu0 0.0
        %3870 = vmatpush1.msra.mxu0 0.0
        %3871 = vmatprep.subr.mxu0 0.0
        %3872 = vmatpush1.msra.mxu0 0.0
        %3873 = vmatprep.subr.mxu0 0.0
        %3874 = vmatpush1.msra.mxu0 %v1387
        %3875 = vmatprep.subr.mxu0 0.0
        %3876 = vmatpush2.msra.mxu0 0.0
        %3877 = vmatprep.subr.mxu0 0.0
        %3878 = vmatpush2.msra.mxu0 0.0
        %3879 = vmatprep.subr.mxu0 0.0
        %3880 = vmatpush2.msra.mxu0 0.0
        %3881 = vmatprep.subr.mxu0 0.0
        %3882 = vmatpush2.msra.mxu0 0.0
        %3883 = vmatprep.subr.mxu0 0.0
        %3884 = vmatpush2.msra.mxu0 0.0
        %3885 = vmatprep.subr.mxu0 0.0
        %3886 = vmatpush2.msra.mxu0 0.0
        %3887 = vmatprep.subr.mxu0 0.0
        %3888 = vmatpush2.msra.mxu0 0.0
        %3889 = vmatprep.subr.mxu0 0.0
        %3890 = vmatpush2.msra.mxu0 0.0
        %3891 = vmatprep.subr.mxu0 0.0
        %3892 = vmatpush2.msra.mxu0 0.0
        %3893 = vmatprep.subr.mxu0 0.0
        %3894 = vmatpush2.msra.mxu0 0.0
        %3895 = vmatprep.subr.mxu0 0.0
        %3896 = vmatpush2.msra.mxu0 0.0
        %3897 = vmatprep.subr.mxu0 0.0
        %3898 = vmatpush2.msra.mxu0 0.0
        %3899 = vmatprep.subr.mxu0 0.0
        %3900 = vmatpush2.msra.mxu0 0.0
        %3901 = vmatprep.subr.mxu0 0.0
        %3902 = vmatpush2.msra.mxu0 0.0
        %3903 = vmatprep.subr.mxu0 0.0
        %3904 = vmatpush2.msra.mxu0 0.0
        %3905 = vmatprep.subr.mxu0 0.0
        %3906 = vmatpush2.msra.mxu0 0.0
        %3907 = vmatprep.mubr.f32.mxu0 0.0
        %3908 = vmatmul.mubr.f32.gmra.mxu0 %v3841
        %v3909 = vpop.f32.mrf.mxu0
        %v3910 = vadd.f32 0.0, %v3909
        %v3911 = vpop.f32.mrf.mxu0
        %3912 = vdwg.mxu0
        %v3913 = vmul.f32 %v3910, %v914
        %v3914 = vadd.f32 %v3838, %v3913
        %v3915 = vmul.f32 %v3682, %v3686
        %v3917 = vsel %vm1381, %v3915, 0
        %3919 = vmatprep.subr.mxu0 0.0
        %3920 = vmatpush1.msra.mxu0 0.0
        %3921 = vmatprep.subr.mxu0 0.0
        %3922 = vmatpush1.msra.mxu0 0.0
        %3923 = vmatprep.subr.mxu0 0.0
        %3924 = vmatpush1.msra.mxu0 0.0
        %3925 = vmatprep.subr.mxu0 0.0
        %3926 = vmatpush1.msra.mxu0 0.0
        %3927 = vmatprep.subr.mxu0 0.0
        %3928 = vmatpush1.msra.mxu0 0.0
        %3929 = vmatprep.subr.mxu0 0.0
        %3930 = vmatpush1.msra.mxu0 0.0
        %3931 = vmatprep.subr.mxu0 0.0
        %3932 = vmatpush1.msra.mxu0 0.0
        %3933 = vmatprep.subr.mxu0 0.0
        %3934 = vmatpush1.msra.mxu0 0.0
        %3935 = vmatprep.subr.mxu0 0.0
        %3936 = vmatpush1.msra.mxu0 0.0
        %3937 = vmatprep.subr.mxu0 0.0
        %3938 = vmatpush1.msra.mxu0 0.0
        %3939 = vmatprep.subr.mxu0 0.0
        %3940 = vmatpush1.msra.mxu0 0.0
        %3941 = vmatprep.subr.mxu0 0.0
        %3942 = vmatpush1.msra.mxu0 0.0
        %3943 = vmatprep.subr.mxu0 0.0
        %3944 = vmatpush1.msra.mxu0 0.0
        %3945 = vmatprep.subr.mxu0 0.0
        %3946 = vmatpush1.msra.mxu0 0.0
        %3947 = vmatprep.subr.mxu0 0.0
        %3948 = vmatpush1.msra.mxu0 0.0
        %3949 = vmatprep.subr.mxu0 0.0
        %3950 = vmatpush1.msra.mxu0 %v1387
        %3951 = vmatprep.subr.mxu0 0.0
        %3952 = vmatpush2.msra.mxu0 0.0
        %3953 = vmatprep.subr.mxu0 0.0
        %3954 = vmatpush2.msra.mxu0 0.0
        %3955 = vmatprep.subr.mxu0 0.0
        %3956 = vmatpush2.msra.mxu0 0.0
        %3957 = vmatprep.subr.mxu0 0.0
        %3958 = vmatpush2.msra.mxu0 0.0
        %3959 = vmatprep.subr.mxu0 0.0
        %3960 = vmatpush2.msra.mxu0 0.0
        %3961 = vmatprep.subr.mxu0 0.0
        %3962 = vmatpush2.msra.mxu0 0.0
        %3963 = vmatprep.subr.mxu0 0.0
        %3964 = vmatpush2.msra.mxu0 0.0
        %3965 = vmatprep.subr.mxu0 0.0
        %3966 = vmatpush2.msra.mxu0 0.0
        %3967 = vmatprep.subr.mxu0 0.0
        %3968 = vmatpush2.msra.mxu0 0.0
        %3969 = vmatprep.subr.mxu0 0.0
        %3970 = vmatpush2.msra.mxu0 0.0
        %3971 = vmatprep.subr.mxu0 0.0
        %3972 = vmatpush2.msra.mxu0 0.0
        %3973 = vmatprep.subr.mxu0 0.0
        %3974 = vmatpush2.msra.mxu0 0.0
        %3975 = vmatprep.subr.mxu0 0.0
        %3976 = vmatpush2.msra.mxu0 0.0
        %3977 = vmatprep.subr.mxu0 0.0
        %3978 = vmatpush2.msra.mxu0 0.0
        %3979 = vmatprep.subr.mxu0 0.0
        %3980 = vmatpush2.msra.mxu0 0.0
        %3981 = vmatprep.subr.mxu0 0.0
        %3982 = vmatpush2.msra.mxu0 0.0
        %3983 = vmatprep.mubr.f32.mxu0 0.0
        %3984 = vmatmul.mubr.f32.gmra.mxu0 %v3917
        %v3985 = vpop.f32.mrf.mxu0
        %v3986 = vadd.f32 0.0, %v3985
        %v3987 = vpop.f32.mrf.mxu0
        %3988 = vdwg.mxu0
        %v3989 = vmul.f32 %v3986, %v984
        %v3990 = vadd.f32 %v3914, %v3989
        %v3992 = vsel %vm410, %v3990, 0
        %3994 = vmatprep.subr.mxu0 0.0
        %3995 = vmatpush1.msra.mxu0 0.0
        %3996 = vmatprep.subr.mxu0 0.0
        %3997 = vmatpush1.msra.mxu0 0.0
        %3998 = vmatprep.subr.mxu0 0.0
        %3999 = vmatpush1.msra.mxu0 0.0
        %4000 = vmatprep.subr.mxu0 0.0
        %4001 = vmatpush1.msra.mxu0 0.0
        %4002 = vmatprep.subr.mxu0 0.0
        %4003 = vmatpush1.msra.mxu0 0.0
        %4004 = vmatprep.subr.mxu0 0.0
        %4005 = vmatpush1.msra.mxu0 0.0
        %4006 = vmatprep.subr.mxu0 0.0
        %4007 = vmatpush1.msra.mxu0 0.0
        %4008 = vmatprep.subr.mxu0 0.0
        %4009 = vmatpush1.msra.mxu0 0.0
        %4010 = vmatprep.subr.mxu0 0.0
        %4011 = vmatpush1.msra.mxu0 0.0
        %4012 = vmatprep.subr.mxu0 0.0
        %4013 = vmatpush1.msra.mxu0 0.0
        %4014 = vmatprep.subr.mxu0 0.0
        %4015 = vmatpush1.msra.mxu0 0.0
        %4016 = vmatprep.subr.mxu0 0.0
        %4017 = vmatpush1.msra.mxu0 0.0
        %4018 = vmatprep.subr.mxu0 0.0
        %4019 = vmatpush1.msra.mxu0 %v405
        %4020 = vmatprep.subr.mxu0 0.0
        %4021 = vmatpush1.msra.mxu0 %v404
        %4022 = vmatprep.subr.mxu0 0.0
        %4023 = vmatpush1.msra.mxu0 %v403
        %4024 = vmatprep.subr.mxu0 0.0
        %4025 = vmatpush1.msra.mxu0 %v402
        %4026 = vmatprep.subr.mxu0 0.0
        %4027 = vmatpush2.msra.mxu0 0.0
        %4028 = vmatprep.subr.mxu0 0.0
        %4029 = vmatpush2.msra.mxu0 0.0
        %4030 = vmatprep.subr.mxu0 0.0
        %4031 = vmatpush2.msra.mxu0 0.0
        %4032 = vmatprep.subr.mxu0 0.0
        %4033 = vmatpush2.msra.mxu0 0.0
        %4034 = vmatprep.subr.mxu0 0.0
        %4035 = vmatpush2.msra.mxu0 0.0
        %4036 = vmatprep.subr.mxu0 0.0
        %4037 = vmatpush2.msra.mxu0 0.0
        %4038 = vmatprep.subr.mxu0 0.0
        %4039 = vmatpush2.msra.mxu0 0.0
        %4040 = vmatprep.subr.mxu0 0.0
        %4041 = vmatpush2.msra.mxu0 0.0
        %4042 = vmatprep.subr.mxu0 0.0
        %4043 = vmatpush2.msra.mxu0 0.0
        %4044 = vmatprep.subr.mxu0 0.0
        %4045 = vmatpush2.msra.mxu0 0.0
        %4046 = vmatprep.subr.mxu0 0.0
        %4047 = vmatpush2.msra.mxu0 0.0
        %4048 = vmatprep.subr.mxu0 0.0
        %4049 = vmatpush2.msra.mxu0 0.0
        %4050 = vmatprep.subr.mxu0 0.0
        %4051 = vmatpush2.msra.mxu0 0.0
        %4052 = vmatprep.subr.mxu0 0.0
        %4053 = vmatpush2.msra.mxu0 0.0
        %4054 = vmatprep.subr.mxu0 0.0
        %4055 = vmatpush2.msra.mxu0 0.0
        %4056 = vmatprep.subr.mxu0 0.0
        %4057 = vmatpush2.msra.mxu0 0.0
        %4058 = vmatprep.mubr.f32.mxu0 0.0
        %4059 = vmatmul.mubr.f32.gmra.mxu0 %v3992
        %v4060 = vpop.f32.mrf.mxu0
        %v4061 = vadd.f32 %v1692, %v4060
        %v4062 = vpop.f32.mrf.mxu0
        %4063 = vdwg.mxu0
        %v4064 = vld [vmem:[%s5] sm:$0xf]
        %v4065 = vld [vmem:[#allocation5] sm:$0xff]
        %v4066 = vld [vmem:[#allocation5 + $0x8] sm:$0xff]
        %v4067 = vld [vmem:[#allocation5 + $0x10] sm:$0xff]
        %v4068 = vld [vmem:[#allocation5 + $0x18] sm:$0xff]
        %s4069 = scalar_lea.vmem [#allocation5], 32
        %v4070 = vld [vmem:[%s4069] sm:$0xff]
        %v4071 = vld [vmem:[%s4069 + $0x8] sm:$0xff]
        %v4072 = vld [vmem:[%s4069 + $0x10] sm:$0xff]
        %v4073 = vld [vmem:[%s4069 + $0x18] sm:$0xff]
        %s4074 = scalar_lea.vmem [#allocation5], 64
        %v4075 = vld [vmem:[%s4074] sm:$0xff]
        %v4076 = vld [vmem:[%s4074 + $0x8] sm:$0xff]
        %v4077 = vld [vmem:[%s4074 + $0x10] sm:$0xff]
        %v4078 = vld [vmem:[%s4074 + $0x18] sm:$0xff]
        %s4079 = scalar_lea.vmem [#allocation5], 96
        %v4080 = vld [vmem:[%s4079] sm:$0xff]
        %v4081 = vld [vmem:[%s4079 + $0x8] sm:$0xff]
        %v4082 = vld [vmem:[%s4079 + $0x10] sm:$0xff]
        %v4083 = vld [vmem:[%s4079 + $0x18] sm:$0xff]
        %v4084 = vlaneseq
        %v4085 = vshrl.u32 %v4084, 7
        %v4086 = vsub.s32 1, %v4085
        %v4087 = vrot.slane %v4064, %v4086
        %v4089 = vsel %vm410, %v1763, 0
        %4091 = vmatprep.subr.mxu0 0.0
        %4092 = vmatpush1.msra.mxu0 0.0
        %4093 = vmatprep.subr.mxu0 0.0
        %4094 = vmatpush1.msra.mxu0 0.0
        %4095 = vmatprep.subr.mxu0 0.0
        %4096 = vmatpush1.msra.mxu0 0.0
        %4097 = vmatprep.subr.mxu0 0.0
        %4098 = vmatpush1.msra.mxu0 0.0
        %4099 = vmatprep.subr.mxu0 0.0
        %4100 = vmatpush1.msra.mxu0 0.0
        %4101 = vmatprep.subr.mxu0 0.0
        %4102 = vmatpush1.msra.mxu0 0.0
        %4103 = vmatprep.subr.mxu0 0.0
        %4104 = vmatpush1.msra.mxu0 0.0
        %4105 = vmatprep.subr.mxu0 0.0
        %4106 = vmatpush1.msra.mxu0 0.0
        %4107 = vmatprep.subr.mxu0 0.0
        %4108 = vmatpush1.msra.mxu0 0.0
        %4109 = vmatprep.subr.mxu0 0.0
        %4110 = vmatpush1.msra.mxu0 0.0
        %4111 = vmatprep.subr.mxu0 0.0
        %4112 = vmatpush1.msra.mxu0 0.0
        %4113 = vmatprep.subr.mxu0 0.0
        %4114 = vmatpush1.msra.mxu0 0.0
        %4115 = vmatprep.subr.mxu0 0.0
        %4116 = vmatpush1.msra.mxu0 %v4073
        %4117 = vmatprep.subr.mxu0 0.0
        %4118 = vmatpush1.msra.mxu0 %v4072
        %4119 = vmatprep.subr.mxu0 0.0
        %4120 = vmatpush1.msra.mxu0 %v4071
        %4121 = vmatprep.subr.mxu0 0.0
        %4122 = vmatpush1.msra.mxu0 %v4070
        %4123 = vmatprep.subr.mxu0 0.0
        %4124 = vmatpush2.msra.mxu0 0.0
        %4125 = vmatprep.subr.mxu0 0.0
        %4126 = vmatpush2.msra.mxu0 0.0
        %4127 = vmatprep.subr.mxu0 0.0
        %4128 = vmatpush2.msra.mxu0 0.0
        %4129 = vmatprep.subr.mxu0 0.0
        %4130 = vmatpush2.msra.mxu0 0.0
        %4131 = vmatprep.subr.mxu0 0.0
        %4132 = vmatpush2.msra.mxu0 0.0
        %4133 = vmatprep.subr.mxu0 0.0
        %4134 = vmatpush2.msra.mxu0 0.0
        %4135 = vmatprep.subr.mxu0 0.0
        %4136 = vmatpush2.msra.mxu0 0.0
        %4137 = vmatprep.subr.mxu0 0.0
        %4138 = vmatpush2.msra.mxu0 0.0
        %4139 = vmatprep.subr.mxu0 0.0
        %4140 = vmatpush2.msra.mxu0 0.0
        %4141 = vmatprep.subr.mxu0 0.0
        %4142 = vmatpush2.msra.mxu0 0.0
        %4143 = vmatprep.subr.mxu0 0.0
        %4144 = vmatpush2.msra.mxu0 0.0
        %4145 = vmatprep.subr.mxu0 0.0
        %4146 = vmatpush2.msra.mxu0 0.0
        %4147 = vmatprep.subr.mxu0 0.0
        %4148 = vmatpush2.msra.mxu0 0.0
        %4149 = vmatprep.subr.mxu0 0.0
        %4150 = vmatpush2.msra.mxu0 0.0
        %4151 = vmatprep.subr.mxu0 0.0
        %4152 = vmatpush2.msra.mxu0 0.0
        %4153 = vmatprep.subr.mxu0 0.0
        %4154 = vmatpush2.msra.mxu0 0.0
        %4155 = vmatprep.mubr.f32.mxu0 0.0
        %4156 = vmatmul.mubr.f32.gmra.mxu0 %v4089
        %v4157 = vpop.f32.mrf.mxu0
        %v4158 = vadd.f32 %v4087, %v4157
        %v4159 = vpop.f32.mrf.mxu0
        %4160 = vdwg.mxu0
        %v4162 = vsel %vm410, %v2529, 0
        %4164 = vmatprep.subr.mxu0 0.0
        %4165 = vmatpush1.msra.mxu0 0.0
        %4166 = vmatprep.subr.mxu0 0.0
        %4167 = vmatpush1.msra.mxu0 0.0
        %4168 = vmatprep.subr.mxu0 0.0
        %4169 = vmatpush1.msra.mxu0 0.0
        %4170 = vmatprep.subr.mxu0 0.0
        %4171 = vmatpush1.msra.mxu0 0.0
        %4172 = vmatprep.subr.mxu0 0.0
        %4173 = vmatpush1.msra.mxu0 0.0
        %4174 = vmatprep.subr.mxu0 0.0
        %4175 = vmatpush1.msra.mxu0 0.0
        %4176 = vmatprep.subr.mxu0 0.0
        %4177 = vmatpush1.msra.mxu0 0.0
        %4178 = vmatprep.subr.mxu0 0.0
        %4179 = vmatpush1.msra.mxu0 0.0
        %4180 = vmatprep.subr.mxu0 0.0
        %4181 = vmatpush1.msra.mxu0 0.0
        %4182 = vmatprep.subr.mxu0 0.0
        %4183 = vmatpush1.msra.mxu0 0.0
        %4184 = vmatprep.subr.mxu0 0.0
        %4185 = vmatpush1.msra.mxu0 0.0
        %4186 = vmatprep.subr.mxu0 0.0
        %4187 = vmatpush1.msra.mxu0 0.0
        %4188 = vmatprep.subr.mxu0 0.0
        %4189 = vmatpush1.msra.mxu0 %v4073
        %4190 = vmatprep.subr.mxu0 0.0
        %4191 = vmatpush1.msra.mxu0 %v4072
        %4192 = vmatprep.subr.mxu0 0.0
        %4193 = vmatpush1.msra.mxu0 %v4071
        %4194 = vmatprep.subr.mxu0 0.0
        %4195 = vmatpush1.msra.mxu0 %v4070
        %4196 = vmatprep.subr.mxu0 0.0
        %4197 = vmatpush2.msra.mxu0 0.0
        %4198 = vmatprep.subr.mxu0 0.0
        %4199 = vmatpush2.msra.mxu0 0.0
        %4200 = vmatprep.subr.mxu0 0.0
        %4201 = vmatpush2.msra.mxu0 0.0
        %4202 = vmatprep.subr.mxu0 0.0
        %4203 = vmatpush2.msra.mxu0 0.0
        %4204 = vmatprep.subr.mxu0 0.0
        %4205 = vmatpush2.msra.mxu0 0.0
        %4206 = vmatprep.subr.mxu0 0.0
        %4207 = vmatpush2.msra.mxu0 0.0
        %4208 = vmatprep.subr.mxu0 0.0
        %4209 = vmatpush2.msra.mxu0 0.0
        %4210 = vmatprep.subr.mxu0 0.0
        %4211 = vmatpush2.msra.mxu0 0.0
        %4212 = vmatprep.subr.mxu0 0.0
        %4213 = vmatpush2.msra.mxu0 0.0
        %4214 = vmatprep.subr.mxu0 0.0
        %4215 = vmatpush2.msra.mxu0 0.0
        %4216 = vmatprep.subr.mxu0 0.0
        %4217 = vmatpush2.msra.mxu0 0.0
        %4218 = vmatprep.subr.mxu0 0.0
        %4219 = vmatpush2.msra.mxu0 0.0
        %4220 = vmatprep.subr.mxu0 0.0
        %4221 = vmatpush2.msra.mxu0 0.0
        %4222 = vmatprep.subr.mxu0 0.0
        %4223 = vmatpush2.msra.mxu0 0.0
        %4224 = vmatprep.subr.mxu0 0.0
        %4225 = vmatpush2.msra.mxu0 0.0
        %4226 = vmatprep.subr.mxu0 0.0
        %4227 = vmatpush2.msra.mxu0 0.0
        %4228 = vmatprep.mubr.f32.mxu0 0.0
        %4229 = vmatmul.mubr.f32.gmra.mxu0 %v4162
        %v4230 = vpop.f32.mrf.mxu0
        %v4231 = vadd.f32 %v4087, %v4230
        %v4232 = vpop.f32.mrf.mxu0
        %4233 = vdwg.mxu0
        %v4235 = vsel %vm410, %v3295, 0
        %4237 = vmatprep.subr.mxu0 0.0
        %4238 = vmatpush1.msra.mxu0 0.0
        %4239 = vmatprep.subr.mxu0 0.0
        %4240 = vmatpush1.msra.mxu0 0.0
        %4241 = vmatprep.subr.mxu0 0.0
        %4242 = vmatpush1.msra.mxu0 0.0
        %4243 = vmatprep.subr.mxu0 0.0
        %4244 = vmatpush1.msra.mxu0 0.0
        %4245 = vmatprep.subr.mxu0 0.0
        %4246 = vmatpush1.msra.mxu0 0.0
        %4247 = vmatprep.subr.mxu0 0.0
        %4248 = vmatpush1.msra.mxu0 0.0
        %4249 = vmatprep.subr.mxu0 0.0
        %4250 = vmatpush1.msra.mxu0 0.0
        %4251 = vmatprep.subr.mxu0 0.0
        %4252 = vmatpush1.msra.mxu0 0.0
        %4253 = vmatprep.subr.mxu0 0.0
        %4254 = vmatpush1.msra.mxu0 0.0
        %4255 = vmatprep.subr.mxu0 0.0
        %4256 = vmatpush1.msra.mxu0 0.0
        %4257 = vmatprep.subr.mxu0 0.0
        %4258 = vmatpush1.msra.mxu0 0.0
        %4259 = vmatprep.subr.mxu0 0.0
        %4260 = vmatpush1.msra.mxu0 0.0
        %4261 = vmatprep.subr.mxu0 0.0
        %4262 = vmatpush1.msra.mxu0 %v4073
        %4263 = vmatprep.subr.mxu0 0.0
        %4264 = vmatpush1.msra.mxu0 %v4072
        %4265 = vmatprep.subr.mxu0 0.0
        %4266 = vmatpush1.msra.mxu0 %v4071
        %4267 = vmatprep.subr.mxu0 0.0
        %4268 = vmatpush1.msra.mxu0 %v4070
        %4269 = vmatprep.subr.mxu0 0.0
        %4270 = vmatpush2.msra.mxu0 0.0
        %4271 = vmatprep.subr.mxu0 0.0
        %4272 = vmatpush2.msra.mxu0 0.0
        %4273 = vmatprep.subr.mxu0 0.0
        %4274 = vmatpush2.msra.mxu0 0.0
        %4275 = vmatprep.subr.mxu0 0.0
        %4276 = vmatpush2.msra.mxu0 0.0
        %4277 = vmatprep.subr.mxu0 0.0
        %4278 = vmatpush2.msra.mxu0 0.0
        %4279 = vmatprep.subr.mxu0 0.0
        %4280 = vmatpush2.msra.mxu0 0.0
        %4281 = vmatprep.subr.mxu0 0.0
        %4282 = vmatpush2.msra.mxu0 0.0
        %4283 = vmatprep.subr.mxu0 0.0
        %4284 = vmatpush2.msra.mxu0 0.0
        %4285 = vmatprep.subr.mxu0 0.0
        %4286 = vmatpush2.msra.mxu0 0.0
        %4287 = vmatprep.subr.mxu0 0.0
        %4288 = vmatpush2.msra.mxu0 0.0
        %4289 = vmatprep.subr.mxu0 0.0
        %4290 = vmatpush2.msra.mxu0 0.0
        %4291 = vmatprep.subr.mxu0 0.0
        %4292 = vmatpush2.msra.mxu0 0.0
        %4293 = vmatprep.subr.mxu0 0.0
        %4294 = vmatpush2.msra.mxu0 0.0
        %4295 = vmatprep.subr.mxu0 0.0
        %4296 = vmatpush2.msra.mxu0 0.0
        %4297 = vmatprep.subr.mxu0 0.0
        %4298 = vmatpush2.msra.mxu0 0.0
        %4299 = vmatprep.subr.mxu0 0.0
        %4300 = vmatpush2.msra.mxu0 0.0
        %4301 = vmatprep.mubr.f32.mxu0 0.0
        %4302 = vmatmul.mubr.f32.gmra.mxu0 %v4235
        %v4303 = vpop.f32.mrf.mxu0
        %v4304 = vadd.f32 %v4087, %v4303
        %v4305 = vpop.f32.mrf.mxu0
        %4306 = vdwg.mxu0
        %v4308 = vsel %vm410, %v4061, 0
        %4310 = vmatprep.subr.mxu0 0.0
        %4311 = vmatpush1.msra.mxu0 0.0
        %4312 = vmatprep.subr.mxu0 0.0
        %4313 = vmatpush1.msra.mxu0 0.0
        %4314 = vmatprep.subr.mxu0 0.0
        %4315 = vmatpush1.msra.mxu0 0.0
        %4316 = vmatprep.subr.mxu0 0.0
        %4317 = vmatpush1.msra.mxu0 0.0
        %4318 = vmatprep.subr.mxu0 0.0
        %4319 = vmatpush1.msra.mxu0 0.0
        %4320 = vmatprep.subr.mxu0 0.0
        %4321 = vmatpush1.msra.mxu0 0.0
        %4322 = vmatprep.subr.mxu0 0.0
        %4323 = vmatpush1.msra.mxu0 0.0
        %4324 = vmatprep.subr.mxu0 0.0
        %4325 = vmatpush1.msra.mxu0 0.0
        %4326 = vmatprep.subr.mxu0 0.0
        %4327 = vmatpush1.msra.mxu0 0.0
        %4328 = vmatprep.subr.mxu0 0.0
        %4329 = vmatpush1.msra.mxu0 0.0
        %4330 = vmatprep.subr.mxu0 0.0
        %4331 = vmatpush1.msra.mxu0 0.0
        %4332 = vmatprep.subr.mxu0 0.0
        %4333 = vmatpush1.msra.mxu0 0.0
        %4334 = vmatprep.subr.mxu0 0.0
        %4335 = vmatpush1.msra.mxu0 %v4073
        %4336 = vmatprep.subr.mxu0 0.0
        %4337 = vmatpush1.msra.mxu0 %v4072
        %4338 = vmatprep.subr.mxu0 0.0
        %4339 = vmatpush1.msra.mxu0 %v4071
        %4340 = vmatprep.subr.mxu0 0.0
        %4341 = vmatpush1.msra.mxu0 %v4070
        %4342 = vmatprep.subr.mxu0 0.0
        %4343 = vmatpush2.msra.mxu0 0.0
        %4344 = vmatprep.subr.mxu0 0.0
        %4345 = vmatpush2.msra.mxu0 0.0
        %4346 = vmatprep.subr.mxu0 0.0
        %4347 = vmatpush2.msra.mxu0 0.0
        %4348 = vmatprep.subr.mxu0 0.0
        %4349 = vmatpush2.msra.mxu0 0.0
        %4350 = vmatprep.subr.mxu0 0.0
        %4351 = vmatpush2.msra.mxu0 0.0
        %4352 = vmatprep.subr.mxu0 0.0
        %4353 = vmatpush2.msra.mxu0 0.0
        %4354 = vmatprep.subr.mxu0 0.0
        %4355 = vmatpush2.msra.mxu0 0.0
        %4356 = vmatprep.subr.mxu0 0.0
        %4357 = vmatpush2.msra.mxu0 0.0
        %4358 = vmatprep.subr.mxu0 0.0
        %4359 = vmatpush2.msra.mxu0 0.0
        %4360 = vmatprep.subr.mxu0 0.0
        %4361 = vmatpush2.msra.mxu0 0.0
        %4362 = vmatprep.subr.mxu0 0.0
        %4363 = vmatpush2.msra.mxu0 0.0
        %4364 = vmatprep.subr.mxu0 0.0
        %4365 = vmatpush2.msra.mxu0 0.0
        %4366 = vmatprep.subr.mxu0 0.0
        %4367 = vmatpush2.msra.mxu0 0.0
        %4368 = vmatprep.subr.mxu0 0.0
        %4369 = vmatpush2.msra.mxu0 0.0
        %4370 = vmatprep.subr.mxu0 0.0
        %4371 = vmatpush2.msra.mxu0 0.0
        %4372 = vmatprep.subr.mxu0 0.0
        %4373 = vmatpush2.msra.mxu0 0.0
        %4374 = vmatprep.mubr.f32.mxu0 0.0
        %4375 = vmatmul.mubr.f32.gmra.mxu0 %v4308
        %v4376 = vpop.f32.mrf.mxu0
        %v4377 = vadd.f32 %v4087, %v4376
        %v4378 = vpop.f32.mrf.mxu0
        %4379 = vdwg.mxu0
        %v4380 = vlaneseq
        %v4381 = vshrl.u32 %v4380, 7
        %v4382 = vsub.s32 2, %v4381
        %v4383 = vrot.slane %v4064, %v4382
        %4384 = vmatprep.subr.mxu0 0.0
        %4385 = vmatpush1.msra.mxu0 0.0
        %4386 = vmatprep.subr.mxu0 0.0
        %4387 = vmatpush1.msra.mxu0 0.0
        %4388 = vmatprep.subr.mxu0 0.0
        %4389 = vmatpush1.msra.mxu0 0.0
        %4390 = vmatprep.subr.mxu0 0.0
        %4391 = vmatpush1.msra.mxu0 0.0
        %4392 = vmatprep.subr.mxu0 0.0
        %4393 = vmatpush1.msra.mxu0 0.0
        %4394 = vmatprep.subr.mxu0 0.0
        %4395 = vmatpush1.msra.mxu0 0.0
        %4396 = vmatprep.subr.mxu0 0.0
        %4397 = vmatpush1.msra.mxu0 0.0
        %4398 = vmatprep.subr.mxu0 0.0
        %4399 = vmatpush1.msra.mxu0 0.0
        %4400 = vmatprep.subr.mxu0 0.0
        %4401 = vmatpush1.msra.mxu0 0.0
        %4402 = vmatprep.subr.mxu0 0.0
        %4403 = vmatpush1.msra.mxu0 0.0
        %4404 = vmatprep.subr.mxu0 0.0
        %4405 = vmatpush1.msra.mxu0 0.0
        %4406 = vmatprep.subr.mxu0 0.0
        %4407 = vmatpush1.msra.mxu0 0.0
        %4408 = vmatprep.subr.mxu0 0.0
        %4409 = vmatpush1.msra.mxu0 %v4078
        %4410 = vmatprep.subr.mxu0 0.0
        %4411 = vmatpush1.msra.mxu0 %v4077
        %4412 = vmatprep.subr.mxu0 0.0
        %4413 = vmatpush1.msra.mxu0 %v4076
        %4414 = vmatprep.subr.mxu0 0.0
        %4415 = vmatpush1.msra.mxu0 %v4075
        %4416 = vmatprep.subr.mxu0 0.0
        %4417 = vmatpush2.msra.mxu0 0.0
        %4418 = vmatprep.subr.mxu0 0.0
        %4419 = vmatpush2.msra.mxu0 0.0
        %4420 = vmatprep.subr.mxu0 0.0
        %4421 = vmatpush2.msra.mxu0 0.0
        %4422 = vmatprep.subr.mxu0 0.0
        %4423 = vmatpush2.msra.mxu0 0.0
        %4424 = vmatprep.subr.mxu0 0.0
        %4425 = vmatpush2.msra.mxu0 0.0
        %4426 = vmatprep.subr.mxu0 0.0
        %4427 = vmatpush2.msra.mxu0 0.0
        %4428 = vmatprep.subr.mxu0 0.0
        %4429 = vmatpush2.msra.mxu0 0.0
        %4430 = vmatprep.subr.mxu0 0.0
        %4431 = vmatpush2.msra.mxu0 0.0
        %4432 = vmatprep.subr.mxu0 0.0
        %4433 = vmatpush2.msra.mxu0 0.0
        %4434 = vmatprep.subr.mxu0 0.0
        %4435 = vmatpush2.msra.mxu0 0.0
        %4436 = vmatprep.subr.mxu0 0.0
        %4437 = vmatpush2.msra.mxu0 0.0
        %4438 = vmatprep.subr.mxu0 0.0
        %4439 = vmatpush2.msra.mxu0 0.0
        %4440 = vmatprep.subr.mxu0 0.0
        %4441 = vmatpush2.msra.mxu0 0.0
        %4442 = vmatprep.subr.mxu0 0.0
        %4443 = vmatpush2.msra.mxu0 0.0
        %4444 = vmatprep.subr.mxu0 0.0
        %4445 = vmatpush2.msra.mxu0 0.0
        %4446 = vmatprep.subr.mxu0 0.0
        %4447 = vmatpush2.msra.mxu0 0.0
        %4448 = vmatprep.mubr.f32.mxu0 0.0
        %4449 = vmatmul.mubr.f32.gmra.mxu0 %v4089
        %v4450 = vpop.f32.mrf.mxu0
        %v4451 = vadd.f32 %v4383, %v4450
        %v4452 = vpop.f32.mrf.mxu0
        %4453 = vdwg.mxu0
        %4454 = vmatprep.subr.mxu0 0.0
        %4455 = vmatpush1.msra.mxu0 0.0
        %4456 = vmatprep.subr.mxu0 0.0
        %4457 = vmatpush1.msra.mxu0 0.0
        %4458 = vmatprep.subr.mxu0 0.0
        %4459 = vmatpush1.msra.mxu0 0.0
        %4460 = vmatprep.subr.mxu0 0.0
        %4461 = vmatpush1.msra.mxu0 0.0
        %4462 = vmatprep.subr.mxu0 0.0
        %4463 = vmatpush1.msra.mxu0 0.0
        %4464 = vmatprep.subr.mxu0 0.0
        %4465 = vmatpush1.msra.mxu0 0.0
        %4466 = vmatprep.subr.mxu0 0.0
        %4467 = vmatpush1.msra.mxu0 0.0
        %4468 = vmatprep.subr.mxu0 0.0
        %4469 = vmatpush1.msra.mxu0 0.0
        %4470 = vmatprep.subr.mxu0 0.0
        %4471 = vmatpush1.msra.mxu0 0.0
        %4472 = vmatprep.subr.mxu0 0.0
        %4473 = vmatpush1.msra.mxu0 0.0
        %4474 = vmatprep.subr.mxu0 0.0
        %4475 = vmatpush1.msra.mxu0 0.0
        %4476 = vmatprep.subr.mxu0 0.0
        %4477 = vmatpush1.msra.mxu0 0.0
        %4478 = vmatprep.subr.mxu0 0.0
        %4479 = vmatpush1.msra.mxu0 %v4078
        %4480 = vmatprep.subr.mxu0 0.0
        %4481 = vmatpush1.msra.mxu0 %v4077
        %4482 = vmatprep.subr.mxu0 0.0
        %4483 = vmatpush1.msra.mxu0 %v4076
        %4484 = vmatprep.subr.mxu0 0.0
        %4485 = vmatpush1.msra.mxu0 %v4075
        %4486 = vmatprep.subr.mxu0 0.0
        %4487 = vmatpush2.msra.mxu0 0.0
        %4488 = vmatprep.subr.mxu0 0.0
        %4489 = vmatpush2.msra.mxu0 0.0
        %4490 = vmatprep.subr.mxu0 0.0
        %4491 = vmatpush2.msra.mxu0 0.0
        %4492 = vmatprep.subr.mxu0 0.0
        %4493 = vmatpush2.msra.mxu0 0.0
        %4494 = vmatprep.subr.mxu0 0.0
        %4495 = vmatpush2.msra.mxu0 0.0
        %4496 = vmatprep.subr.mxu0 0.0
        %4497 = vmatpush2.msra.mxu0 0.0
        %4498 = vmatprep.subr.mxu0 0.0
        %4499 = vmatpush2.msra.mxu0 0.0
        %4500 = vmatprep.subr.mxu0 0.0
        %4501 = vmatpush2.msra.mxu0 0.0
        %4502 = vmatprep.subr.mxu0 0.0
        %4503 = vmatpush2.msra.mxu0 0.0
        %4504 = vmatprep.subr.mxu0 0.0
        %4505 = vmatpush2.msra.mxu0 0.0
        %4506 = vmatprep.subr.mxu0 0.0
        %4507 = vmatpush2.msra.mxu0 0.0
        %4508 = vmatprep.subr.mxu0 0.0
        %4509 = vmatpush2.msra.mxu0 0.0
        %4510 = vmatprep.subr.mxu0 0.0
        %4511 = vmatpush2.msra.mxu0 0.0
        %4512 = vmatprep.subr.mxu0 0.0
        %4513 = vmatpush2.msra.mxu0 0.0
        %4514 = vmatprep.subr.mxu0 0.0
        %4515 = vmatpush2.msra.mxu0 0.0
        %4516 = vmatprep.subr.mxu0 0.0
        %4517 = vmatpush2.msra.mxu0 0.0
        %4518 = vmatprep.mubr.f32.mxu0 0.0
        %4519 = vmatmul.mubr.f32.gmra.mxu0 %v4162
        %v4520 = vpop.f32.mrf.mxu0
        %v4521 = vadd.f32 %v4383, %v4520
        %v4522 = vpop.f32.mrf.mxu0
        %4523 = vdwg.mxu0
        %4524 = vmatprep.subr.mxu0 0.0
        %4525 = vmatpush1.msra.mxu0 0.0
        %4526 = vmatprep.subr.mxu0 0.0
        %4527 = vmatpush1.msra.mxu0 0.0
        %4528 = vmatprep.subr.mxu0 0.0
        %4529 = vmatpush1.msra.mxu0 0.0
        %4530 = vmatprep.subr.mxu0 0.0
        %4531 = vmatpush1.msra.mxu0 0.0
        %4532 = vmatprep.subr.mxu0 0.0
        %4533 = vmatpush1.msra.mxu0 0.0
        %4534 = vmatprep.subr.mxu0 0.0
        %4535 = vmatpush1.msra.mxu0 0.0
        %4536 = vmatprep.subr.mxu0 0.0
        %4537 = vmatpush1.msra.mxu0 0.0
        %4538 = vmatprep.subr.mxu0 0.0
        %4539 = vmatpush1.msra.mxu0 0.0
        %4540 = vmatprep.subr.mxu0 0.0
        %4541 = vmatpush1.msra.mxu0 0.0
        %4542 = vmatprep.subr.mxu0 0.0
        %4543 = vmatpush1.msra.mxu0 0.0
        %4544 = vmatprep.subr.mxu0 0.0
        %4545 = vmatpush1.msra.mxu0 0.0
        %4546 = vmatprep.subr.mxu0 0.0
        %4547 = vmatpush1.msra.mxu0 0.0
        %4548 = vmatprep.subr.mxu0 0.0
        %4549 = vmatpush1.msra.mxu0 %v4078
        %4550 = vmatprep.subr.mxu0 0.0
        %4551 = vmatpush1.msra.mxu0 %v4077
        %4552 = vmatprep.subr.mxu0 0.0
        %4553 = vmatpush1.msra.mxu0 %v4076
        %4554 = vmatprep.subr.mxu0 0.0
        %4555 = vmatpush1.msra.mxu0 %v4075
        %4556 = vmatprep.subr.mxu0 0.0
        %4557 = vmatpush2.msra.mxu0 0.0
        %4558 = vmatprep.subr.mxu0 0.0
        %4559 = vmatpush2.msra.mxu0 0.0
        %4560 = vmatprep.subr.mxu0 0.0
        %4561 = vmatpush2.msra.mxu0 0.0
        %4562 = vmatprep.subr.mxu0 0.0
        %4563 = vmatpush2.msra.mxu0 0.0
        %4564 = vmatprep.subr.mxu0 0.0
        %4565 = vmatpush2.msra.mxu0 0.0
        %4566 = vmatprep.subr.mxu0 0.0
        %4567 = vmatpush2.msra.mxu0 0.0
        %4568 = vmatprep.subr.mxu0 0.0
        %4569 = vmatpush2.msra.mxu0 0.0
        %4570 = vmatprep.subr.mxu0 0.0
        %4571 = vmatpush2.msra.mxu0 0.0
        %4572 = vmatprep.subr.mxu0 0.0
        %4573 = vmatpush2.msra.mxu0 0.0
        %4574 = vmatprep.subr.mxu0 0.0
        %4575 = vmatpush2.msra.mxu0 0.0
        %4576 = vmatprep.subr.mxu0 0.0
        %4577 = vmatpush2.msra.mxu0 0.0
        %4578 = vmatprep.subr.mxu0 0.0
        %4579 = vmatpush2.msra.mxu0 0.0
        %4580 = vmatprep.subr.mxu0 0.0
        %4581 = vmatpush2.msra.mxu0 0.0
        %4582 = vmatprep.subr.mxu0 0.0
        %4583 = vmatpush2.msra.mxu0 0.0
        %4584 = vmatprep.subr.mxu0 0.0
        %4585 = vmatpush2.msra.mxu0 0.0
        %4586 = vmatprep.subr.mxu0 0.0
        %4587 = vmatpush2.msra.mxu0 0.0
        %4588 = vmatprep.mubr.f32.mxu0 0.0
        %4589 = vmatmul.mubr.f32.gmra.mxu0 %v4235
        %v4590 = vpop.f32.mrf.mxu0
        %v4591 = vadd.f32 %v4383, %v4590
        %v4592 = vpop.f32.mrf.mxu0
        %4593 = vdwg.mxu0
        %4594 = vmatprep.subr.mxu0 0.0
        %4595 = vmatpush1.msra.mxu0 0.0
        %4596 = vmatprep.subr.mxu0 0.0
        %4597 = vmatpush1.msra.mxu0 0.0
        %4598 = vmatprep.subr.mxu0 0.0
        %4599 = vmatpush1.msra.mxu0 0.0
        %4600 = vmatprep.subr.mxu0 0.0
        %4601 = vmatpush1.msra.mxu0 0.0
        %4602 = vmatprep.subr.mxu0 0.0
        %4603 = vmatpush1.msra.mxu0 0.0
        %4604 = vmatprep.subr.mxu0 0.0
        %4605 = vmatpush1.msra.mxu0 0.0
        %4606 = vmatprep.subr.mxu0 0.0
        %4607 = vmatpush1.msra.mxu0 0.0
        %4608 = vmatprep.subr.mxu0 0.0
        %4609 = vmatpush1.msra.mxu0 0.0
        %4610 = vmatprep.subr.mxu0 0.0
        %4611 = vmatpush1.msra.mxu0 0.0
        %4612 = vmatprep.subr.mxu0 0.0
        %4613 = vmatpush1.msra.mxu0 0.0
        %4614 = vmatprep.subr.mxu0 0.0
        %4615 = vmatpush1.msra.mxu0 0.0
        %4616 = vmatprep.subr.mxu0 0.0
        %4617 = vmatpush1.msra.mxu0 0.0
        %4618 = vmatprep.subr.mxu0 0.0
        %4619 = vmatpush1.msra.mxu0 %v4078
        %4620 = vmatprep.subr.mxu0 0.0
        %4621 = vmatpush1.msra.mxu0 %v4077
        %4622 = vmatprep.subr.mxu0 0.0
        %4623 = vmatpush1.msra.mxu0 %v4076
        %4624 = vmatprep.subr.mxu0 0.0
        %4625 = vmatpush1.msra.mxu0 %v4075
        %4626 = vmatprep.subr.mxu0 0.0
        %4627 = vmatpush2.msra.mxu0 0.0
        %4628 = vmatprep.subr.mxu0 0.0
        %4629 = vmatpush2.msra.mxu0 0.0
        %4630 = vmatprep.subr.mxu0 0.0
        %4631 = vmatpush2.msra.mxu0 0.0
        %4632 = vmatprep.subr.mxu0 0.0
        %4633 = vmatpush2.msra.mxu0 0.0
        %4634 = vmatprep.subr.mxu0 0.0
        %4635 = vmatpush2.msra.mxu0 0.0
        %4636 = vmatprep.subr.mxu0 0.0
        %4637 = vmatpush2.msra.mxu0 0.0
        %4638 = vmatprep.subr.mxu0 0.0
        %4639 = vmatpush2.msra.mxu0 0.0
        %4640 = vmatprep.subr.mxu0 0.0
        %4641 = vmatpush2.msra.mxu0 0.0
        %4642 = vmatprep.subr.mxu0 0.0
        %4643 = vmatpush2.msra.mxu0 0.0
        %4644 = vmatprep.subr.mxu0 0.0
        %4645 = vmatpush2.msra.mxu0 0.0
        %4646 = vmatprep.subr.mxu0 0.0
        %4647 = vmatpush2.msra.mxu0 0.0
        %4648 = vmatprep.subr.mxu0 0.0
        %4649 = vmatpush2.msra.mxu0 0.0
        %4650 = vmatprep.subr.mxu0 0.0
        %4651 = vmatpush2.msra.mxu0 0.0
        %4652 = vmatprep.subr.mxu0 0.0
        %4653 = vmatpush2.msra.mxu0 0.0
        %4654 = vmatprep.subr.mxu0 0.0
        %4655 = vmatpush2.msra.mxu0 0.0
        %4656 = vmatprep.subr.mxu0 0.0
        %4657 = vmatpush2.msra.mxu0 0.0
        %4658 = vmatprep.mubr.f32.mxu0 0.0
        %4659 = vmatmul.mubr.f32.gmra.mxu0 %v4308
        %v4660 = vpop.f32.mrf.mxu0
        %v4661 = vadd.f32 %v4383, %v4660
        %v4662 = vpop.f32.mrf.mxu0
        %4663 = vdwg.mxu0
        %v4664 = vlaneseq
        %v4665 = vshrl.u32 %v4664, 7
        %v4666 = vsub.s32 0, %v4665
        %v4667 = vrot.slane %v4064, %v4666
        %4668 = vmatprep.subr.mxu0 0.0
        %4669 = vmatpush1.msra.mxu0 0.0
        %4670 = vmatprep.subr.mxu0 0.0
        %4671 = vmatpush1.msra.mxu0 0.0
        %4672 = vmatprep.subr.mxu0 0.0
        %4673 = vmatpush1.msra.mxu0 0.0
        %4674 = vmatprep.subr.mxu0 0.0
        %4675 = vmatpush1.msra.mxu0 0.0
        %4676 = vmatprep.subr.mxu0 0.0
        %4677 = vmatpush1.msra.mxu0 0.0
        %4678 = vmatprep.subr.mxu0 0.0
        %4679 = vmatpush1.msra.mxu0 0.0
        %4680 = vmatprep.subr.mxu0 0.0
        %4681 = vmatpush1.msra.mxu0 0.0
        %4682 = vmatprep.subr.mxu0 0.0
        %4683 = vmatpush1.msra.mxu0 0.0
        %4684 = vmatprep.subr.mxu0 0.0
        %4685 = vmatpush1.msra.mxu0 0.0
        %4686 = vmatprep.subr.mxu0 0.0
        %4687 = vmatpush1.msra.mxu0 0.0
        %4688 = vmatprep.subr.mxu0 0.0
        %4689 = vmatpush1.msra.mxu0 0.0
        %4690 = vmatprep.subr.mxu0 0.0
        %4691 = vmatpush1.msra.mxu0 0.0
        %4692 = vmatprep.subr.mxu0 0.0
        %4693 = vmatpush1.msra.mxu0 %v4068
        %4694 = vmatprep.subr.mxu0 0.0
        %4695 = vmatpush1.msra.mxu0 %v4067
        %4696 = vmatprep.subr.mxu0 0.0
        %4697 = vmatpush1.msra.mxu0 %v4066
        %4698 = vmatprep.subr.mxu0 0.0
        %4699 = vmatpush1.msra.mxu0 %v4065
        %4700 = vmatprep.subr.mxu0 0.0
        %4701 = vmatpush2.msra.mxu0 0.0
        %4702 = vmatprep.subr.mxu0 0.0
        %4703 = vmatpush2.msra.mxu0 0.0
        %4704 = vmatprep.subr.mxu0 0.0
        %4705 = vmatpush2.msra.mxu0 0.0
        %4706 = vmatprep.subr.mxu0 0.0
        %4707 = vmatpush2.msra.mxu0 0.0
        %4708 = vmatprep.subr.mxu0 0.0
        %4709 = vmatpush2.msra.mxu0 0.0
        %4710 = vmatprep.subr.mxu0 0.0
        %4711 = vmatpush2.msra.mxu0 0.0
        %4712 = vmatprep.subr.mxu0 0.0
        %4713 = vmatpush2.msra.mxu0 0.0
        %4714 = vmatprep.subr.mxu0 0.0
        %4715 = vmatpush2.msra.mxu0 0.0
        %4716 = vmatprep.subr.mxu0 0.0
        %4717 = vmatpush2.msra.mxu0 0.0
        %4718 = vmatprep.subr.mxu0 0.0
        %4719 = vmatpush2.msra.mxu0 0.0
        %4720 = vmatprep.subr.mxu0 0.0
        %4721 = vmatpush2.msra.mxu0 0.0
        %4722 = vmatprep.subr.mxu0 0.0
        %4723 = vmatpush2.msra.mxu0 0.0
        %4724 = vmatprep.subr.mxu0 0.0
        %4725 = vmatpush2.msra.mxu0 0.0
        %4726 = vmatprep.subr.mxu0 0.0
        %4727 = vmatpush2.msra.mxu0 0.0
        %4728 = vmatprep.subr.mxu0 0.0
        %4729 = vmatpush2.msra.mxu0 0.0
        %4730 = vmatprep.subr.mxu0 0.0
        %4731 = vmatpush2.msra.mxu0 0.0
        %4732 = vmatprep.mubr.f32.mxu0 0.0
        %4733 = vmatmul.mubr.f32.gmra.mxu0 %v4308
        %v4734 = vpop.f32.mrf.mxu0
        %v4735 = vadd.f32 %v4667, %v4734
        %v4736 = vpop.f32.mrf.mxu0
        %4737 = vdwg.mxu0
        %v4738 = vmul.f32 %v4735, %v4158
        %v4740 = vsel %vm410, %v4738, 0
        %4742 = vmatprep.subr.mxu0 0.0
        %4743 = vmatpush1.msra.mxu0 0.0
        %4744 = vmatprep.subr.mxu0 0.0
        %4745 = vmatpush1.msra.mxu0 0.0
        %4746 = vmatprep.subr.mxu0 0.0
        %4747 = vmatpush1.msra.mxu0 0.0
        %4748 = vmatprep.subr.mxu0 0.0
        %4749 = vmatpush1.msra.mxu0 0.0
        %4750 = vmatprep.subr.mxu0 0.0
        %4751 = vmatpush1.msra.mxu0 0.0
        %4752 = vmatprep.subr.mxu0 0.0
        %4753 = vmatpush1.msra.mxu0 0.0
        %4754 = vmatprep.subr.mxu0 0.0
        %4755 = vmatpush1.msra.mxu0 0.0
        %4756 = vmatprep.subr.mxu0 0.0
        %4757 = vmatpush1.msra.mxu0 0.0
        %4758 = vmatprep.subr.mxu0 0.0
        %4759 = vmatpush1.msra.mxu0 0.0
        %4760 = vmatprep.subr.mxu0 0.0
        %4761 = vmatpush1.msra.mxu0 0.0
        %4762 = vmatprep.subr.mxu0 0.0
        %4763 = vmatpush1.msra.mxu0 0.0
        %4764 = vmatprep.subr.mxu0 0.0
        %4765 = vmatpush1.msra.mxu0 0.0
        %4766 = vmatprep.subr.mxu0 0.0
        %4767 = vmatpush1.msra.mxu0 %v353
        %4768 = vmatprep.subr.mxu0 0.0
        %4769 = vmatpush1.msra.mxu0 %v352
        %4770 = vmatprep.subr.mxu0 0.0
        %4771 = vmatpush1.msra.mxu0 %v351
        %4772 = vmatprep.subr.mxu0 0.0
        %4773 = vmatpush1.msra.mxu0 %v350
        %4774 = vmatprep.subr.mxu0 0.0
        %4775 = vmatpush2.msra.mxu0 0.0
        %4776 = vmatprep.subr.mxu0 0.0
        %4777 = vmatpush2.msra.mxu0 0.0
        %4778 = vmatprep.subr.mxu0 0.0
        %4779 = vmatpush2.msra.mxu0 0.0
        %4780 = vmatprep.subr.mxu0 0.0
        %4781 = vmatpush2.msra.mxu0 0.0
        %4782 = vmatprep.subr.mxu0 0.0
        %4783 = vmatpush2.msra.mxu0 0.0
        %4784 = vmatprep.subr.mxu0 0.0
        %4785 = vmatpush2.msra.mxu0 0.0
        %4786 = vmatprep.subr.mxu0 0.0
        %4787 = vmatpush2.msra.mxu0 0.0
        %4788 = vmatprep.subr.mxu0 0.0
        %4789 = vmatpush2.msra.mxu0 0.0
        %4790 = vmatprep.subr.mxu0 0.0
        %4791 = vmatpush2.msra.mxu0 0.0
        %4792 = vmatprep.subr.mxu0 0.0
        %4793 = vmatpush2.msra.mxu0 0.0
        %4794 = vmatprep.subr.mxu0 0.0
        %4795 = vmatpush2.msra.mxu0 0.0
        %4796 = vmatprep.subr.mxu0 0.0
        %4797 = vmatpush2.msra.mxu0 0.0
        %4798 = vmatprep.subr.mxu0 0.0
        %4799 = vmatpush2.msra.mxu0 0.0
        %4800 = vmatprep.subr.mxu0 0.0
        %4801 = vmatpush2.msra.mxu0 0.0
        %4802 = vmatprep.subr.mxu0 0.0
        %4803 = vmatpush2.msra.mxu0 0.0
        %4804 = vmatprep.subr.mxu0 0.0
        %4805 = vmatpush2.msra.mxu0 0.0
        %4806 = vmatprep.mubr.f32.mxu0 0.0
        %4807 = vmatmul.mubr.f32.gmra.mxu0 %v4740
        %v4808 = vpop.f32.mrf.mxu0
        %v4809 = vadd.f32 0.0, %v4808
        %v4810 = vpop.f32.mrf.mxu0
        %4811 = vdwg.mxu0
        %v4812 = vmul.f32 %v4809, 0.35355338
        %v4813 = vmul.f32 %v4735, %v4231
        %v4815 = vsel %vm410, %v4813, 0
        %4817 = vmatprep.subr.mxu0 0.0
        %4818 = vmatpush1.msra.mxu0 0.0
        %4819 = vmatprep.subr.mxu0 0.0
        %4820 = vmatpush1.msra.mxu0 0.0
        %4821 = vmatprep.subr.mxu0 0.0
        %4822 = vmatpush1.msra.mxu0 0.0
        %4823 = vmatprep.subr.mxu0 0.0
        %4824 = vmatpush1.msra.mxu0 0.0
        %4825 = vmatprep.subr.mxu0 0.0
        %4826 = vmatpush1.msra.mxu0 0.0
        %4827 = vmatprep.subr.mxu0 0.0
        %4828 = vmatpush1.msra.mxu0 0.0
        %4829 = vmatprep.subr.mxu0 0.0
        %4830 = vmatpush1.msra.mxu0 0.0
        %4831 = vmatprep.subr.mxu0 0.0
        %4832 = vmatpush1.msra.mxu0 0.0
        %4833 = vmatprep.subr.mxu0 0.0
        %4834 = vmatpush1.msra.mxu0 0.0
        %4835 = vmatprep.subr.mxu0 0.0
        %4836 = vmatpush1.msra.mxu0 0.0
        %4837 = vmatprep.subr.mxu0 0.0
        %4838 = vmatpush1.msra.mxu0 0.0
        %4839 = vmatprep.subr.mxu0 0.0
        %4840 = vmatpush1.msra.mxu0 0.0
        %4841 = vmatprep.subr.mxu0 0.0
        %4842 = vmatpush1.msra.mxu0 %v353
        %4843 = vmatprep.subr.mxu0 0.0
        %4844 = vmatpush1.msra.mxu0 %v352
        %4845 = vmatprep.subr.mxu0 0.0
        %4846 = vmatpush1.msra.mxu0 %v351
        %4847 = vmatprep.subr.mxu0 0.0
        %4848 = vmatpush1.msra.mxu0 %v350
        %4849 = vmatprep.subr.mxu0 0.0
        %4850 = vmatpush2.msra.mxu0 0.0
        %4851 = vmatprep.subr.mxu0 0.0
        %4852 = vmatpush2.msra.mxu0 0.0
        %4853 = vmatprep.subr.mxu0 0.0
        %4854 = vmatpush2.msra.mxu0 0.0
        %4855 = vmatprep.subr.mxu0 0.0
        %4856 = vmatpush2.msra.mxu0 0.0
        %4857 = vmatprep.subr.mxu0 0.0
        %4858 = vmatpush2.msra.mxu0 0.0
        %4859 = vmatprep.subr.mxu0 0.0
        %4860 = vmatpush2.msra.mxu0 0.0
        %4861 = vmatprep.subr.mxu0 0.0
        %4862 = vmatpush2.msra.mxu0 0.0
        %4863 = vmatprep.subr.mxu0 0.0
        %4864 = vmatpush2.msra.mxu0 0.0
        %4865 = vmatprep.subr.mxu0 0.0
        %4866 = vmatpush2.msra.mxu0 0.0
        %4867 = vmatprep.subr.mxu0 0.0
        %4868 = vmatpush2.msra.mxu0 0.0
        %4869 = vmatprep.subr.mxu0 0.0
        %4870 = vmatpush2.msra.mxu0 0.0
        %4871 = vmatprep.subr.mxu0 0.0
        %4872 = vmatpush2.msra.mxu0 0.0
        %4873 = vmatprep.subr.mxu0 0.0
        %4874 = vmatpush2.msra.mxu0 0.0
        %4875 = vmatprep.subr.mxu0 0.0
        %4876 = vmatpush2.msra.mxu0 0.0
        %4877 = vmatprep.subr.mxu0 0.0
        %4878 = vmatpush2.msra.mxu0 0.0
        %4879 = vmatprep.subr.mxu0 0.0
        %4880 = vmatpush2.msra.mxu0 0.0
        %4881 = vmatprep.mubr.f32.mxu0 0.0
        %4882 = vmatmul.mubr.f32.gmra.mxu0 %v4815
        %v4883 = vpop.f32.mrf.mxu0
        %v4884 = vadd.f32 0.0, %v4883
        %v4885 = vpop.f32.mrf.mxu0
        %4886 = vdwg.mxu0
        %v4887 = vmul.f32 %v4884, 0.35355338
        %v4888 = vmul.f32 %v4735, %v4304
        %v4890 = vsel %vm410, %v4888, 0
        %4892 = vmatprep.subr.mxu0 0.0
        %4893 = vmatpush1.msra.mxu0 0.0
        %4894 = vmatprep.subr.mxu0 0.0
        %4895 = vmatpush1.msra.mxu0 0.0
        %4896 = vmatprep.subr.mxu0 0.0
        %4897 = vmatpush1.msra.mxu0 0.0
        %4898 = vmatprep.subr.mxu0 0.0
        %4899 = vmatpush1.msra.mxu0 0.0
        %4900 = vmatprep.subr.mxu0 0.0
        %4901 = vmatpush1.msra.mxu0 0.0
        %4902 = vmatprep.subr.mxu0 0.0
        %4903 = vmatpush1.msra.mxu0 0.0
        %4904 = vmatprep.subr.mxu0 0.0
        %4905 = vmatpush1.msra.mxu0 0.0
        %4906 = vmatprep.subr.mxu0 0.0
        %4907 = vmatpush1.msra.mxu0 0.0
        %4908 = vmatprep.subr.mxu0 0.0
        %4909 = vmatpush1.msra.mxu0 0.0
        %4910 = vmatprep.subr.mxu0 0.0
        %4911 = vmatpush1.msra.mxu0 0.0
        %4912 = vmatprep.subr.mxu0 0.0
        %4913 = vmatpush1.msra.mxu0 0.0
        %4914 = vmatprep.subr.mxu0 0.0
        %4915 = vmatpush1.msra.mxu0 0.0
        %4916 = vmatprep.subr.mxu0 0.0
        %4917 = vmatpush1.msra.mxu0 %v353
        %4918 = vmatprep.subr.mxu0 0.0
        %4919 = vmatpush1.msra.mxu0 %v352
        %4920 = vmatprep.subr.mxu0 0.0
        %4921 = vmatpush1.msra.mxu0 %v351
        %4922 = vmatprep.subr.mxu0 0.0
        %4923 = vmatpush1.msra.mxu0 %v350
        %4924 = vmatprep.subr.mxu0 0.0
        %4925 = vmatpush2.msra.mxu0 0.0
        %4926 = vmatprep.subr.mxu0 0.0
        %4927 = vmatpush2.msra.mxu0 0.0
        %4928 = vmatprep.subr.mxu0 0.0
        %4929 = vmatpush2.msra.mxu0 0.0
        %4930 = vmatprep.subr.mxu0 0.0
        %4931 = vmatpush2.msra.mxu0 0.0
        %4932 = vmatprep.subr.mxu0 0.0
        %4933 = vmatpush2.msra.mxu0 0.0
        %4934 = vmatprep.subr.mxu0 0.0
        %4935 = vmatpush2.msra.mxu0 0.0
        %4936 = vmatprep.subr.mxu0 0.0
        %4937 = vmatpush2.msra.mxu0 0.0
        %4938 = vmatprep.subr.mxu0 0.0
        %4939 = vmatpush2.msra.mxu0 0.0
        %4940 = vmatprep.subr.mxu0 0.0
        %4941 = vmatpush2.msra.mxu0 0.0
        %4942 = vmatprep.subr.mxu0 0.0
        %4943 = vmatpush2.msra.mxu0 0.0
        %4944 = vmatprep.subr.mxu0 0.0
        %4945 = vmatpush2.msra.mxu0 0.0
        %4946 = vmatprep.subr.mxu0 0.0
        %4947 = vmatpush2.msra.mxu0 0.0
        %4948 = vmatprep.subr.mxu0 0.0
        %4949 = vmatpush2.msra.mxu0 0.0
        %4950 = vmatprep.subr.mxu0 0.0
        %4951 = vmatpush2.msra.mxu0 0.0
        %4952 = vmatprep.subr.mxu0 0.0
        %4953 = vmatpush2.msra.mxu0 0.0
        %4954 = vmatprep.subr.mxu0 0.0
        %4955 = vmatpush2.msra.mxu0 0.0
        %4956 = vmatprep.mubr.f32.mxu0 0.0
        %4957 = vmatmul.mubr.f32.gmra.mxu0 %v4890
        %v4958 = vpop.f32.mrf.mxu0
        %v4959 = vadd.f32 0.0, %v4958
        %v4960 = vpop.f32.mrf.mxu0
        %4961 = vdwg.mxu0
        %v4962 = vmul.f32 %v4959, 0.35355338
        %v4963 = vmul.f32 %v4735, %v4377
        %v4965 = vsel %vm410, %v4963, 0
        %4967 = vmatprep.subr.mxu0 0.0
        %4968 = vmatpush1.msra.mxu0 0.0
        %4969 = vmatprep.subr.mxu0 0.0
        %4970 = vmatpush1.msra.mxu0 0.0
        %4971 = vmatprep.subr.mxu0 0.0
        %4972 = vmatpush1.msra.mxu0 0.0
        %4973 = vmatprep.subr.mxu0 0.0
        %4974 = vmatpush1.msra.mxu0 0.0
        %4975 = vmatprep.subr.mxu0 0.0
        %4976 = vmatpush1.msra.mxu0 0.0
        %4977 = vmatprep.subr.mxu0 0.0
        %4978 = vmatpush1.msra.mxu0 0.0
        %4979 = vmatprep.subr.mxu0 0.0
        %4980 = vmatpush1.msra.mxu0 0.0
        %4981 = vmatprep.subr.mxu0 0.0
        %4982 = vmatpush1.msra.mxu0 0.0
        %4983 = vmatprep.subr.mxu0 0.0
        %4984 = vmatpush1.msra.mxu0 0.0
        %4985 = vmatprep.subr.mxu0 0.0
        %4986 = vmatpush1.msra.mxu0 0.0
        %4987 = vmatprep.subr.mxu0 0.0
        %4988 = vmatpush1.msra.mxu0 0.0
        %4989 = vmatprep.subr.mxu0 0.0
        %4990 = vmatpush1.msra.mxu0 0.0
        %4991 = vmatprep.subr.mxu0 0.0
        %4992 = vmatpush1.msra.mxu0 %v353
        %4993 = vmatprep.subr.mxu0 0.0
        %4994 = vmatpush1.msra.mxu0 %v352
        %4995 = vmatprep.subr.mxu0 0.0
        %4996 = vmatpush1.msra.mxu0 %v351
        %4997 = vmatprep.subr.mxu0 0.0
        %4998 = vmatpush1.msra.mxu0 %v350
        %4999 = vmatprep.subr.mxu0 0.0
        %5000 = vmatpush2.msra.mxu0 0.0
        %5001 = vmatprep.subr.mxu0 0.0
        %5002 = vmatpush2.msra.mxu0 0.0
        %5003 = vmatprep.subr.mxu0 0.0
        %5004 = vmatpush2.msra.mxu0 0.0
        %5005 = vmatprep.subr.mxu0 0.0
        %5006 = vmatpush2.msra.mxu0 0.0
        %5007 = vmatprep.subr.mxu0 0.0
        %5008 = vmatpush2.msra.mxu0 0.0
        %5009 = vmatprep.subr.mxu0 0.0
        %5010 = vmatpush2.msra.mxu0 0.0
        %5011 = vmatprep.subr.mxu0 0.0
        %5012 = vmatpush2.msra.mxu0 0.0
        %5013 = vmatprep.subr.mxu0 0.0
        %5014 = vmatpush2.msra.mxu0 0.0
        %5015 = vmatprep.subr.mxu0 0.0
        %5016 = vmatpush2.msra.mxu0 0.0
        %5017 = vmatprep.subr.mxu0 0.0
        %5018 = vmatpush2.msra.mxu0 0.0
        %5019 = vmatprep.subr.mxu0 0.0
        %5020 = vmatpush2.msra.mxu0 0.0
        %5021 = vmatprep.subr.mxu0 0.0
        %5022 = vmatpush2.msra.mxu0 0.0
        %5023 = vmatprep.subr.mxu0 0.0
        %5024 = vmatpush2.msra.mxu0 0.0
        %5025 = vmatprep.subr.mxu0 0.0
        %5026 = vmatpush2.msra.mxu0 0.0
        %5027 = vmatprep.subr.mxu0 0.0
        %5028 = vmatpush2.msra.mxu0 0.0
        %5029 = vmatprep.subr.mxu0 0.0
        %5030 = vmatpush2.msra.mxu0 0.0
        %5031 = vmatprep.mubr.f32.mxu0 0.0
        %5032 = vmatmul.mubr.f32.gmra.mxu0 %v4965
        %v5033 = vpop.f32.mrf.mxu0
        %v5034 = vadd.f32 0.0, %v5033
        %v5035 = vpop.f32.mrf.mxu0
        %5036 = vdwg.mxu0
        %v5037 = vmul.f32 %v5034, 0.35355338
        %v5038 = vmax.f32 %v4812, %v4887
        %v5039 = vmax.f32 %v5038, %v4962
        %v5040 = vmax.f32 %v5039, %v5037
        %v5041 = vsub.f32 %v4812, %v5040
        %v5042 = vmul.f32 %v5041, 1.442695
        %v5043 = vpow.pop %v5042
        %v5044 = vsub.f32 %v4887, %v5040
        %v5045 = vmul.f32 %v5044, 1.442695
        %v5046 = vpow.pop %v5045
        %v5047 = vsub.f32 %v4962, %v5040
        %v5048 = vmul.f32 %v5047, 1.442695
        %v5049 = vpow.pop %v5048
        %v5050 = vsub.f32 %v5037, %v5040
        %v5051 = vmul.f32 %v5050, 1.442695
        %v5052 = vpow.pop %v5051
        %v5053 = vadd.f32 %v5043, %v5046
        %v5054 = vadd.f32 %v5053, %v5049
        %v5055 = vadd.f32 %v5054, %v5052
        %v5056 = vrcp.pop %v5055
        %v5057 = vmul.f32 %v5043, %v5056
        %v5059 = vsel %vm1381, %v5057, 0
        %5061 = vmatprep.subr.mxu0 0.0
        %5062 = vmatpush1.msra.mxu0 0.0
        %5063 = vmatprep.subr.mxu0 0.0
        %5064 = vmatpush1.msra.mxu0 0.0
        %5065 = vmatprep.subr.mxu0 0.0
        %5066 = vmatpush1.msra.mxu0 0.0
        %5067 = vmatprep.subr.mxu0 0.0
        %5068 = vmatpush1.msra.mxu0 0.0
        %5069 = vmatprep.subr.mxu0 0.0
        %5070 = vmatpush1.msra.mxu0 0.0
        %5071 = vmatprep.subr.mxu0 0.0
        %5072 = vmatpush1.msra.mxu0 0.0
        %5073 = vmatprep.subr.mxu0 0.0
        %5074 = vmatpush1.msra.mxu0 0.0
        %5075 = vmatprep.subr.mxu0 0.0
        %5076 = vmatpush1.msra.mxu0 0.0
        %5077 = vmatprep.subr.mxu0 0.0
        %5078 = vmatpush1.msra.mxu0 0.0
        %5079 = vmatprep.subr.mxu0 0.0
        %5080 = vmatpush1.msra.mxu0 0.0
        %5081 = vmatprep.subr.mxu0 0.0
        %5082 = vmatpush1.msra.mxu0 0.0
        %5083 = vmatprep.subr.mxu0 0.0
        %5084 = vmatpush1.msra.mxu0 0.0
        %5085 = vmatprep.subr.mxu0 0.0
        %5086 = vmatpush1.msra.mxu0 0.0
        %5087 = vmatprep.subr.mxu0 0.0
        %5088 = vmatpush1.msra.mxu0 0.0
        %5089 = vmatprep.subr.mxu0 0.0
        %5090 = vmatpush1.msra.mxu0 0.0
        %5091 = vmatprep.subr.mxu0 0.0
        %5092 = vmatpush1.msra.mxu0 %v1387
        %5093 = vmatprep.subr.mxu0 0.0
        %5094 = vmatpush2.msra.mxu0 0.0
        %5095 = vmatprep.subr.mxu0 0.0
        %5096 = vmatpush2.msra.mxu0 0.0
        %5097 = vmatprep.subr.mxu0 0.0
        %5098 = vmatpush2.msra.mxu0 0.0
        %5099 = vmatprep.subr.mxu0 0.0
        %5100 = vmatpush2.msra.mxu0 0.0
        %5101 = vmatprep.subr.mxu0 0.0
        %5102 = vmatpush2.msra.mxu0 0.0
        %5103 = vmatprep.subr.mxu0 0.0
        %5104 = vmatpush2.msra.mxu0 0.0
        %5105 = vmatprep.subr.mxu0 0.0
        %5106 = vmatpush2.msra.mxu0 0.0
        %5107 = vmatprep.subr.mxu0 0.0
        %5108 = vmatpush2.msra.mxu0 0.0
        %5109 = vmatprep.subr.mxu0 0.0
        %5110 = vmatpush2.msra.mxu0 0.0
        %5111 = vmatprep.subr.mxu0 0.0
        %5112 = vmatpush2.msra.mxu0 0.0
        %5113 = vmatprep.subr.mxu0 0.0
        %5114 = vmatpush2.msra.mxu0 0.0
        %5115 = vmatprep.subr.mxu0 0.0
        %5116 = vmatpush2.msra.mxu0 0.0
        %5117 = vmatprep.subr.mxu0 0.0
        %5118 = vmatpush2.msra.mxu0 0.0
        %5119 = vmatprep.subr.mxu0 0.0
        %5120 = vmatpush2.msra.mxu0 0.0
        %5121 = vmatprep.subr.mxu0 0.0
        %5122 = vmatpush2.msra.mxu0 0.0
        %5123 = vmatprep.subr.mxu0 0.0
        %5124 = vmatpush2.msra.mxu0 0.0
        %5125 = vmatprep.mubr.f32.mxu0 0.0
        %5126 = vmatmul.mubr.f32.gmra.mxu0 %v5059
        %v5127 = vpop.f32.mrf.mxu0
        %v5128 = vadd.f32 0.0, %v5127
        %v5129 = vpop.f32.mrf.mxu0
        %5130 = vdwg.mxu0
        %v5131 = vmul.f32 %v5128, %v4451
        %v5132 = vadd.f32 %v5131, 0.0
        %v5133 = vmul.f32 %v5046, %v5056
        %v5135 = vsel %vm1381, %v5133, 0
        %5137 = vmatprep.subr.mxu0 0.0
        %5138 = vmatpush1.msra.mxu0 0.0
        %5139 = vmatprep.subr.mxu0 0.0
        %5140 = vmatpush1.msra.mxu0 0.0
        %5141 = vmatprep.subr.mxu0 0.0
        %5142 = vmatpush1.msra.mxu0 0.0
        %5143 = vmatprep.subr.mxu0 0.0
        %5144 = vmatpush1.msra.mxu0 0.0
        %5145 = vmatprep.subr.mxu0 0.0
        %5146 = vmatpush1.msra.mxu0 0.0
        %5147 = vmatprep.subr.mxu0 0.0
        %5148 = vmatpush1.msra.mxu0 0.0
        %5149 = vmatprep.subr.mxu0 0.0
        %5150 = vmatpush1.msra.mxu0 0.0
        %5151 = vmatprep.subr.mxu0 0.0
        %5152 = vmatpush1.msra.mxu0 0.0
        %5153 = vmatprep.subr.mxu0 0.0
        %5154 = vmatpush1.msra.mxu0 0.0
        %5155 = vmatprep.subr.mxu0 0.0
        %5156 = vmatpush1.msra.mxu0 0.0
        %5157 = vmatprep.subr.mxu0 0.0
        %5158 = vmatpush1.msra.mxu0 0.0
        %5159 = vmatprep.subr.mxu0 0.0
        %5160 = vmatpush1.msra.mxu0 0.0
        %5161 = vmatprep.subr.mxu0 0.0
        %5162 = vmatpush1.msra.mxu0 0.0
        %5163 = vmatprep.subr.mxu0 0.0
        %5164 = vmatpush1.msra.mxu0 0.0
        %5165 = vmatprep.subr.mxu0 0.0
        %5166 = vmatpush1.msra.mxu0 0.0
        %5167 = vmatprep.subr.mxu0 0.0
        %5168 = vmatpush1.msra.mxu0 %v1387
        %5169 = vmatprep.subr.mxu0 0.0
        %5170 = vmatpush2.msra.mxu0 0.0
        %5171 = vmatprep.subr.mxu0 0.0
        %5172 = vmatpush2.msra.mxu0 0.0
        %5173 = vmatprep.subr.mxu0 0.0
        %5174 = vmatpush2.msra.mxu0 0.0
        %5175 = vmatprep.subr.mxu0 0.0
        %5176 = vmatpush2.msra.mxu0 0.0
        %5177 = vmatprep.subr.mxu0 0.0
        %5178 = vmatpush2.msra.mxu0 0.0
        %5179 = vmatprep.subr.mxu0 0.0
        %5180 = vmatpush2.msra.mxu0 0.0
        %5181 = vmatprep.subr.mxu0 0.0
        %5182 = vmatpush2.msra.mxu0 0.0
        %5183 = vmatprep.subr.mxu0 0.0
        %5184 = vmatpush2.msra.mxu0 0.0
        %5185 = vmatprep.subr.mxu0 0.0
        %5186 = vmatpush2.msra.mxu0 0.0
        %5187 = vmatprep.subr.mxu0 0.0
        %5188 = vmatpush2.msra.mxu0 0.0
        %5189 = vmatprep.subr.mxu0 0.0
        %5190 = vmatpush2.msra.mxu0 0.0
        %5191 = vmatprep.subr.mxu0 0.0
        %5192 = vmatpush2.msra.mxu0 0.0
        %5193 = vmatprep.subr.mxu0 0.0
        %5194 = vmatpush2.msra.mxu0 0.0
        %5195 = vmatprep.subr.mxu0 0.0
        %5196 = vmatpush2.msra.mxu0 0.0
        %5197 = vmatprep.subr.mxu0 0.0
        %5198 = vmatpush2.msra.mxu0 0.0
        %5199 = vmatprep.subr.mxu0 0.0
        %5200 = vmatpush2.msra.mxu0 0.0
        %5201 = vmatprep.mubr.f32.mxu0 0.0
        %5202 = vmatmul.mubr.f32.gmra.mxu0 %v5135
        %v5203 = vpop.f32.mrf.mxu0
        %v5204 = vadd.f32 0.0, %v5203
        %v5205 = vpop.f32.mrf.mxu0
        %5206 = vdwg.mxu0
        %v5207 = vmul.f32 %v5204, %v4521
        %v5208 = vadd.f32 %v5132, %v5207
        %v5209 = vmul.f32 %v5049, %v5056
        %v5211 = vsel %vm1381, %v5209, 0
        %5213 = vmatprep.subr.mxu0 0.0
        %5214 = vmatpush1.msra.mxu0 0.0
        %5215 = vmatprep.subr.mxu0 0.0
        %5216 = vmatpush1.msra.mxu0 0.0
        %5217 = vmatprep.subr.mxu0 0.0
        %5218 = vmatpush1.msra.mxu0 0.0
        %5219 = vmatprep.subr.mxu0 0.0
        %5220 = vmatpush1.msra.mxu0 0.0
        %5221 = vmatprep.subr.mxu0 0.0
        %5222 = vmatpush1.msra.mxu0 0.0
        %5223 = vmatprep.subr.mxu0 0.0
        %5224 = vmatpush1.msra.mxu0 0.0
        %5225 = vmatprep.subr.mxu0 0.0
        %5226 = vmatpush1.msra.mxu0 0.0
        %5227 = vmatprep.subr.mxu0 0.0
        %5228 = vmatpush1.msra.mxu0 0.0
        %5229 = vmatprep.subr.mxu0 0.0
        %5230 = vmatpush1.msra.mxu0 0.0
        %5231 = vmatprep.subr.mxu0 0.0
        %5232 = vmatpush1.msra.mxu0 0.0
        %5233 = vmatprep.subr.mxu0 0.0
        %5234 = vmatpush1.msra.mxu0 0.0
        %5235 = vmatprep.subr.mxu0 0.0
        %5236 = vmatpush1.msra.mxu0 0.0
        %5237 = vmatprep.subr.mxu0 0.0
        %5238 = vmatpush1.msra.mxu0 0.0
        %5239 = vmatprep.subr.mxu0 0.0
        %5240 = vmatpush1.msra.mxu0 0.0
        %5241 = vmatprep.subr.mxu0 0.0
        %5242 = vmatpush1.msra.mxu0 0.0
        %5243 = vmatprep.subr.mxu0 0.0
        %5244 = vmatpush1.msra.mxu0 %v1387
        %5245 = vmatprep.subr.mxu0 0.0
        %5246 = vmatpush2.msra.mxu0 0.0
        %5247 = vmatprep.subr.mxu0 0.0
        %5248 = vmatpush2.msra.mxu0 0.0
        %5249 = vmatprep.subr.mxu0 0.0
        %5250 = vmatpush2.msra.mxu0 0.0
        %5251 = vmatprep.subr.mxu0 0.0
        %5252 = vmatpush2.msra.mxu0 0.0
        %5253 = vmatprep.subr.mxu0 0.0
        %5254 = vmatpush2.msra.mxu0 0.0
        %5255 = vmatprep.subr.mxu0 0.0
        %5256 = vmatpush2.msra.mxu0 0.0
        %5257 = vmatprep.subr.mxu0 0.0
        %5258 = vmatpush2.msra.mxu0 0.0
        %5259 = vmatprep.subr.mxu0 0.0
        %5260 = vmatpush2.msra.mxu0 0.0
        %5261 = vmatprep.subr.mxu0 0.0
        %5262 = vmatpush2.msra.mxu0 0.0
        %5263 = vmatprep.subr.mxu0 0.0
        %5264 = vmatpush2.msra.mxu0 0.0
        %5265 = vmatprep.subr.mxu0 0.0
        %5266 = vmatpush2.msra.mxu0 0.0
        %5267 = vmatprep.subr.mxu0 0.0
        %5268 = vmatpush2.msra.mxu0 0.0
        %5269 = vmatprep.subr.mxu0 0.0
        %5270 = vmatpush2.msra.mxu0 0.0
        %5271 = vmatprep.subr.mxu0 0.0
        %5272 = vmatpush2.msra.mxu0 0.0
        %5273 = vmatprep.subr.mxu0 0.0
        %5274 = vmatpush2.msra.mxu0 0.0
        %5275 = vmatprep.subr.mxu0 0.0
        %5276 = vmatpush2.msra.mxu0 0.0
        %5277 = vmatprep.mubr.f32.mxu0 0.0
        %5278 = vmatmul.mubr.f32.gmra.mxu0 %v5211
        %v5279 = vpop.f32.mrf.mxu0
        %v5280 = vadd.f32 0.0, %v5279
        %v5281 = vpop.f32.mrf.mxu0
        %5282 = vdwg.mxu0
        %v5283 = vmul.f32 %v5280, %v4591
        %v5284 = vadd.f32 %v5208, %v5283
        %v5285 = vmul.f32 %v5052, %v5056
        %v5287 = vsel %vm1381, %v5285, 0
        %5289 = vmatprep.subr.mxu0 0.0
        %5290 = vmatpush1.msra.mxu0 0.0
        %5291 = vmatprep.subr.mxu0 0.0
        %5292 = vmatpush1.msra.mxu0 0.0
        %5293 = vmatprep.subr.mxu0 0.0
        %5294 = vmatpush1.msra.mxu0 0.0
        %5295 = vmatprep.subr.mxu0 0.0
        %5296 = vmatpush1.msra.mxu0 0.0
        %5297 = vmatprep.subr.mxu0 0.0
        %5298 = vmatpush1.msra.mxu0 0.0
        %5299 = vmatprep.subr.mxu0 0.0
        %5300 = vmatpush1.msra.mxu0 0.0
        %5301 = vmatprep.subr.mxu0 0.0
        %5302 = vmatpush1.msra.mxu0 0.0
        %5303 = vmatprep.subr.mxu0 0.0
        %5304 = vmatpush1.msra.mxu0 0.0
        %5305 = vmatprep.subr.mxu0 0.0
        %5306 = vmatpush1.msra.mxu0 0.0
        %5307 = vmatprep.subr.mxu0 0.0
        %5308 = vmatpush1.msra.mxu0 0.0
        %5309 = vmatprep.subr.mxu0 0.0
        %5310 = vmatpush1.msra.mxu0 0.0
        %5311 = vmatprep.subr.mxu0 0.0
        %5312 = vmatpush1.msra.mxu0 0.0
        %5313 = vmatprep.subr.mxu0 0.0
        %5314 = vmatpush1.msra.mxu0 0.0
        %5315 = vmatprep.subr.mxu0 0.0
        %5316 = vmatpush1.msra.mxu0 0.0
        %5317 = vmatprep.subr.mxu0 0.0
        %5318 = vmatpush1.msra.mxu0 0.0
        %5319 = vmatprep.subr.mxu0 0.0
        %5320 = vmatpush1.msra.mxu0 %v1387
        %5321 = vmatprep.subr.mxu0 0.0
        %5322 = vmatpush2.msra.mxu0 0.0
        %5323 = vmatprep.subr.mxu0 0.0
        %5324 = vmatpush2.msra.mxu0 0.0
        %5325 = vmatprep.subr.mxu0 0.0
        %5326 = vmatpush2.msra.mxu0 0.0
        %5327 = vmatprep.subr.mxu0 0.0
        %5328 = vmatpush2.msra.mxu0 0.0
        %5329 = vmatprep.subr.mxu0 0.0
        %5330 = vmatpush2.msra.mxu0 0.0
        %5331 = vmatprep.subr.mxu0 0.0
        %5332 = vmatpush2.msra.mxu0 0.0
        %5333 = vmatprep.subr.mxu0 0.0
        %5334 = vmatpush2.msra.mxu0 0.0
        %5335 = vmatprep.subr.mxu0 0.0
        %5336 = vmatpush2.msra.mxu0 0.0
        %5337 = vmatprep.subr.mxu0 0.0
        %5338 = vmatpush2.msra.mxu0 0.0
        %5339 = vmatprep.subr.mxu0 0.0
        %5340 = vmatpush2.msra.mxu0 0.0
        %5341 = vmatprep.subr.mxu0 0.0
        %5342 = vmatpush2.msra.mxu0 0.0
        %5343 = vmatprep.subr.mxu0 0.0
        %5344 = vmatpush2.msra.mxu0 0.0
        %5345 = vmatprep.subr.mxu0 0.0
        %5346 = vmatpush2.msra.mxu0 0.0
        %5347 = vmatprep.subr.mxu0 0.0
        %5348 = vmatpush2.msra.mxu0 0.0
        %5349 = vmatprep.subr.mxu0 0.0
        %5350 = vmatpush2.msra.mxu0 0.0
        %5351 = vmatprep.subr.mxu0 0.0
        %5352 = vmatpush2.msra.mxu0 0.0
        %5353 = vmatprep.mubr.f32.mxu0 0.0
        %5354 = vmatmul.mubr.f32.gmra.mxu0 %v5287
        %v5355 = vpop.f32.mrf.mxu0
        %v5356 = vadd.f32 0.0, %v5355
        %v5357 = vpop.f32.mrf.mxu0
        %5358 = vdwg.mxu0
        %v5359 = vmul.f32 %v5356, %v4661
        %v5360 = vadd.f32 %v5284, %v5359
        %v5361 = vlaneseq
        %v5362 = vshrl.u32 %v5361, 7
        %v5363 = vsub.s32 3, %v5362
        %v5364 = vrot.slane %v4064, %v5363
        %v5366 = vsel %vm410, %v5360, 0
        %5368 = vmatprep.subr.mxu0 0.0
        %5369 = vmatpush1.msra.mxu0 0.0
        %5370 = vmatprep.subr.mxu0 0.0
        %5371 = vmatpush1.msra.mxu0 0.0
        %5372 = vmatprep.subr.mxu0 0.0
        %5373 = vmatpush1.msra.mxu0 0.0
        %5374 = vmatprep.subr.mxu0 0.0
        %5375 = vmatpush1.msra.mxu0 0.0
        %5376 = vmatprep.subr.mxu0 0.0
        %5377 = vmatpush1.msra.mxu0 0.0
        %5378 = vmatprep.subr.mxu0 0.0
        %5379 = vmatpush1.msra.mxu0 0.0
        %5380 = vmatprep.subr.mxu0 0.0
        %5381 = vmatpush1.msra.mxu0 0.0
        %5382 = vmatprep.subr.mxu0 0.0
        %5383 = vmatpush1.msra.mxu0 0.0
        %5384 = vmatprep.subr.mxu0 0.0
        %5385 = vmatpush1.msra.mxu0 0.0
        %5386 = vmatprep.subr.mxu0 0.0
        %5387 = vmatpush1.msra.mxu0 0.0
        %5388 = vmatprep.subr.mxu0 0.0
        %5389 = vmatpush1.msra.mxu0 0.0
        %5390 = vmatprep.subr.mxu0 0.0
        %5391 = vmatpush1.msra.mxu0 0.0
        %5392 = vmatprep.subr.mxu0 0.0
        %5393 = vmatpush1.msra.mxu0 %v4083
        %5394 = vmatprep.subr.mxu0 0.0
        %5395 = vmatpush1.msra.mxu0 %v4082
        %5396 = vmatprep.subr.mxu0 0.0
        %5397 = vmatpush1.msra.mxu0 %v4081
        %5398 = vmatprep.subr.mxu0 0.0
        %5399 = vmatpush1.msra.mxu0 %v4080
        %5400 = vmatprep.subr.mxu0 0.0
        %5401 = vmatpush2.msra.mxu0 0.0
        %5402 = vmatprep.subr.mxu0 0.0
        %5403 = vmatpush2.msra.mxu0 0.0
        %5404 = vmatprep.subr.mxu0 0.0
        %5405 = vmatpush2.msra.mxu0 0.0
        %5406 = vmatprep.subr.mxu0 0.0
        %5407 = vmatpush2.msra.mxu0 0.0
        %5408 = vmatprep.subr.mxu0 0.0
        %5409 = vmatpush2.msra.mxu0 0.0
        %5410 = vmatprep.subr.mxu0 0.0
        %5411 = vmatpush2.msra.mxu0 0.0
        %5412 = vmatprep.subr.mxu0 0.0
        %5413 = vmatpush2.msra.mxu0 0.0
        %5414 = vmatprep.subr.mxu0 0.0
        %5415 = vmatpush2.msra.mxu0 0.0
        %5416 = vmatprep.subr.mxu0 0.0
        %5417 = vmatpush2.msra.mxu0 0.0
        %5418 = vmatprep.subr.mxu0 0.0
        %5419 = vmatpush2.msra.mxu0 0.0
        %5420 = vmatprep.subr.mxu0 0.0
        %5421 = vmatpush2.msra.mxu0 0.0
        %5422 = vmatprep.subr.mxu0 0.0
        %5423 = vmatpush2.msra.mxu0 0.0
        %5424 = vmatprep.subr.mxu0 0.0
        %5425 = vmatpush2.msra.mxu0 0.0
        %5426 = vmatprep.subr.mxu0 0.0
        %5427 = vmatpush2.msra.mxu0 0.0
        %5428 = vmatprep.subr.mxu0 0.0
        %5429 = vmatpush2.msra.mxu0 0.0
        %5430 = vmatprep.subr.mxu0 0.0
        %5431 = vmatpush2.msra.mxu0 0.0
        %5432 = vmatprep.mubr.f32.mxu0 0.0
        %5433 = vmatmul.mubr.f32.gmra.mxu0 %v5366
        %v5434 = vpop.f32.mrf.mxu0
        %v5435 = vadd.f32 %v5364, %v5434
        %v5436 = vpop.f32.mrf.mxu0
        %5437 = vdwg.mxu0
        %5438 = vst.msk [vmem:[%s342] sm:$0xff] %vm410, %v5435
        %s5439 = sand.u32 %s219, 1
        %s5440 = scalar_lea.sflag [#allocation4], %s5439
        %s5441 = sand.u32 %s219, 1
        %s5442 = smul.addr %s5441, 8
        %s5443 = scalar_lea.vmem [#allocation7], %s5442
        // Predicated region
        $region61: #{tpu_custom_call.1} parent=51 // pred_check
          %p5444 = pneg %p229
        $region62: #{tpu_custom_call.1} parent=51 // pred_check_branch
          %5446 = sbr.rel (%p5444) target = $region64
        $region63: #{tpu_custom_call.1} parent=51 // pred_region
          %s5448 = ssub.s32 128, 128
          %5449 = vsyncadd %s5440, %s5448
          %s5450 = sadd.s32 %s29, %s28
          %s5451 = smul.addr %s5450, 128
          %s5452 = scalar_lea.hbm %s8, %s5451
          %s5454 = sshll.u32 %s5443, 4
          %s5455 = int_to_ptr.vmem [resolvable:$true] %s5454
          %5457 = dma.vmem_to_hbm [thread:$0]  %s5455, 128, %s5452, %s5440
        $region64: #{tpu_custom_call.1} parent=51 // pred_fallthru
          _
      $region52: #{tpu_custom_call.1} parent=5 // pred_fallthru
        _
      %p5458 = scmp.le.s32.totalorder 2, %s19
      // Predicated region
      $region65: #{tpu_custom_call.1} parent=5 // pred_check
        %p5459 = pneg %p5458
      $region66: #{tpu_custom_call.1} parent=5 // pred_check_branch
        %5461 = sbr.rel (%p5459) target = $region68
      $region67: #{tpu_custom_call.1} parent=5 // pred_region
        %s5462 = ssub.s32 %s19, 2
        // Predicated region
        $region69: #{tpu_custom_call.1} parent=67 // pred_check
          %p5463 = pneg %p235
        $region70: #{tpu_custom_call.1} parent=67 // pred_check_branch
          %5465 = sbr.rel (%p5463) target = $region72
        $region71: #{tpu_custom_call.1} parent=67 // pred_region
          %s5466 = sand.u32 %s220, 1
          %s5467 = scalar_lea.sflag [#allocation4], %s5466
          %s5468 = sand.u32 %s220, 1
          %s5469 = smul.addr %s5468, 8
          %s5470 = scalar_lea.vmem [#allocation7], %s5469
          %5471 = dma.done %s5467, 128
        $region72: #{tpu_custom_call.1} parent=67 // pred_fallthru
          _
      $region68: #{tpu_custom_call.1} parent=5 // pred_fallthru
        _
    $region6: #{tpu_custom_call.1} parent=1 // loop_footer
      %s23 = sadd.s32 1, %s19
    $region7: #{tpu_custom_call.1} parent=1 // loop_footer_branch
      %18 = sbr.rel target = $region3
    $region8: #{tpu_custom_call.1} parent=1 // loop_exit
      _
    %5472 = vsyncpa [#allocation3], 1
    %s5473 = scalar_lea.sflag [#allocation3], 1
    %5474 = vsyncpa %s5473, 1
    %5475 = vsyncpa [#allocation6], 1
    %5476 = vsyncpa [#allocation4], 1
    %s5477 = scalar_lea.sflag [#allocation4], 1
    %5478 = vsyncpa %s5477, 1

</llo_original>
